<compile_context>
chip_gen: v7x
topology: tpu7x:2x2x1
jax: 0.10.0
libtpu: 0.0.40
codegen_flags: <defaults>
</compile_context>

<pallas_src>
import functools
import math

import jax
import jax.numpy as jnp
from jax import lax
from jax.experimental import pallas as pl
from jax.experimental.pallas import tpu as pltpu


# ---------------------------------------------------------------------------
# Kernel 1: fused Q/K/V projections over the collapsed (B*S, dmodel) row slab.
# ---------------------------------------------------------------------------
def _proj_kernel(xq_ref, xk_ref, xv_ref,
                 wqt_ref, bq_ref, wkt_ref, bk_ref, wvt_ref, bv_ref,
                 q_ref, k_ref, v_ref):
    # x @ W^T + b ; weights arrive pre-transposed (dmodel, d*) and the
    # 1/sqrt(dk) scale is already folded into WQ/bQ.  f32 accumulation.
    q = jnp.dot(xq_ref[...], wqt_ref[...],
                preferred_element_type=jnp.float32) + bq_ref[...]
    k = jnp.dot(xk_ref[...], wkt_ref[...],
                preferred_element_type=jnp.float32) + bk_ref[...]
    v = jnp.dot(xv_ref[...], wvt_ref[...],
                preferred_element_type=jnp.float32) + bv_ref[...]
    q_ref[...] = q.astype(q_ref.dtype)
    k_ref[...] = k.astype(k_ref.dtype)
    v_ref[...] = v.astype(v_ref.dtype)


def _project_qkv(xq2, xk2, xv2, wqt, bqs, wkt, bkf, wvt, bvf,
                 *, out_dtype, row_tile):
    rows, dmodel = xq2.shape
    dk = wqt.shape[1]
    dv = wvt.shape[1]
    tm = row_tile if rows % row_tile == 0 else rows   # fall back to one big tile

    def const(shape):
        return pl.BlockSpec(shape, lambda i: tuple(0 for _ in shape))

    return pl.pallas_call(
        _proj_kernel,
        out_shape=(jax.ShapeDtypeStruct((rows, dk), out_dtype),
                   jax.ShapeDtypeStruct((rows, dk), out_dtype),
                   jax.ShapeDtypeStruct((rows, dv), out_dtype)),
        grid=(rows // tm,),
        in_specs=[
            pl.BlockSpec((tm, dmodel), lambda i: (i, 0)),   # XQ rows
            pl.BlockSpec((tm, dmodel), lambda i: (i, 0)),   # XK rows
            pl.BlockSpec((tm, dmodel), lambda i: (i, 0)),   # XV rows
            const((dmodel, dk)), const((1, dk)),            # WQ^T (scaled), bQ (scaled)
            const((dmodel, dk)), const((1, dk)),            # WK^T, bK
            const((dmodel, dv)), const((1, dv)),            # WV^T, bV
        ],
        out_specs=(
            pl.BlockSpec((tm, dk), lambda i: (i, 0)),
            pl.BlockSpec((tm, dk), lambda i: (i, 0)),
            pl.BlockSpec((tm, dv), lambda i: (i, 0)),
        ),
        compiler_params=pltpu.CompilerParams(
            dimension_semantics=("parallel",)),
    )(xq2, xk2, xv2, wqt, bqs, wkt, bkf, wvt, bvf)


# ---------------------------------------------------------------------------
# Kernel 2: flash-style attention with online softmax over KV tiles.
# ---------------------------------------------------------------------------
def _flash_attn_kernel(q_ref, k_ref, v_ref, o_ref, m_sc, l_sc, acc_sc,
                       *, masked, tq, tk):
    qi = pl.program_id(1)
    ki = pl.program_id(2)

    @pl.when(ki == 0)
    def _init():
        m_sc[...] = jnp.full_like(m_sc, -jnp.inf)
        l_sc[...] = jnp.zeros_like(l_sc)
        acc_sc[...] = jnp.zeros_like(acc_sc)

    def accumulate(apply_diag_mask):
        # Scores: contract the feature axis of both q and k (no k.T transpose).
        s = lax.dot_general(q_ref[...], k_ref[...], (((1,), (1,)), ((), ())),
                            preferred_element_type=jnp.float32)
        if apply_diag_mask:
            row = lax.broadcasted_iota(jnp.int32, s.shape, 0) + qi * tq
            col = lax.broadcasted_iota(jnp.int32, s.shape, 1) + ki * tk
            s = jnp.where(col > row, -jnp.inf, s)
        m_prev = m_sc[...]
        m_new = jnp.maximum(m_prev, jnp.max(s, axis=-1, keepdims=True))
        alpha = jnp.exp(m_prev - m_new)
        p = jnp.exp(s - m_new)
        l_sc[...] = alpha * l_sc[...] + jnp.sum(p, axis=-1, keepdims=True)
        acc_sc[...] = alpha * acc_sc[...] + jnp.dot(
            p.astype(v_ref.dtype), v_ref[...],
            preferred_element_type=jnp.float32)
        m_sc[...] = m_new

    if masked:
        q_start = qi * tq
        kv_start = ki * tk
        fully_unmasked = (kv_start + tk - 1) <= q_start          # tile below diagonal
        fully_masked = kv_start > (q_start + tq - 1)              # tile above diagonal
        straddles = jnp.logical_not(
            jnp.logical_or(fully_unmasked, fully_masked))

        @pl.when(fully_unmasked)
        def _():
            accumulate(apply_diag_mask=False)

        @pl.when(straddles)
        def _():
            accumulate(apply_diag_mask=True)
        # Fully-masked tiles are skipped entirely: causal does ~half the work.
    else:
        accumulate(apply_diag_mask=False)

    @pl.when(ki == pl.num_programs(2) - 1)
    def _finalize():
        denom = l_sc[...]
        inv = pl.reciprocal(denom, approx=True)      # EUP slot, not a VALU divide
        inv = inv * (2.0 - denom * inv)              # one Newton step -> ~exact f32
        o_ref[...] = (acc_sc[...] * inv).astype(o_ref.dtype)


def _flash_attention(q, k, v, *, masked, seq_tile):
    B, S, dk = q.shape
    dv = v.shape[-1]
    tq = seq_tile if S % seq_tile == 0 else S
    tk = tq
    nq = S // tq
    nkv = S // tk

    kernel = functools.partial(_flash_attn_kernel, masked=masked, tq=tq, tk=tk)

    return pl.pallas_call(
        kernel,
        out_shape=jax.ShapeDtypeStruct((B, S, dv), jnp.float32),
        grid=(B, nq, nkv),
        in_specs=[
            pl.BlockSpec((None, tq, dk), lambda b, i, j: (b, i, 0)),  # Q (resident over kv)
            pl.BlockSpec((None, tk, dk), lambda b, i, j: (b, j, 0)),  # K tile
            pl.BlockSpec((None, tk, dv), lambda b, i, j: (b, j, 0)),  # V tile
        ],
        out_specs=pl.BlockSpec((None, tq, dv), lambda b, i, j: (b, i, 0)),
        scratch_shapes=[
            pltpu.VMEM((tq, 1), jnp.float32),    # running max m
            pltpu.VMEM((tq, 1), jnp.float32),    # running denom l
            pltpu.VMEM((tq, dv), jnp.float32),   # output accumulator
        ],
        compiler_params=pltpu.CompilerParams(
            dimension_semantics=("parallel", "parallel", "arbitrary")),
    )(q, k, v)


# ---------------------------------------------------------------------------
# Wrapper: host-side layout/algebra, then the two pallas_calls.
# ---------------------------------------------------------------------------
def attention_forward(xq, xk, xv, params, *, masked,
                      compute_dtype=jnp.float32, row_tile=256, seq_tile=128):
    """xq/xk/xv: (B, S, dmodel) float32. Returns (B, S, dv) float32."""
    B, S, dmodel = xq.shape
    wq, bq, wk, bk, wv, bv = params
    dk = wq.shape[0]
    dv = wv.shape[0]
    scale = 1.0 / math.sqrt(dk)

    # Done once outside the kernels: transpose weights so the contracted dim is
    # contiguous for the MXU, fold 1/sqrt(dk) into WQ/bQ, and cast MXU operands
    # to compute_dtype (bf16 on v6e/v7x when tolerance allows).
    wqt = (wq.T * scale).astype(compute_dtype)   # (dmodel, dk), scaled
    wkt = wk.T.astype(compute_dtype)             # (dmodel, dk)
    wvt = wv.T.astype(compute_dtype)             # (dmodel, dv)
    bqs = (bq * scale).astype(jnp.float32)       # biases added in f32 post-dot
    bkf = bk.astype(jnp.float32)
    bvf = bv.astype(jnp.float32)

    # Collapse batch into the row dim so the projection matmul has big M tiles.
    xq2 = xq.reshape(B * S, dmodel).astype(compute_dtype)
    xk2 = xk.reshape(B * S, dmodel).astype(compute_dtype)
    xv2 = xv.reshape(B * S, dmodel).astype(compute_dtype)

    q2, k2, v2 = _project_qkv(xq2, xk2, xv2, wqt, bqs, wkt, bkf, wvt, bvf,
                              out_dtype=compute_dtype, row_tile=row_tile)

    q = q2.reshape(B, S, dk)
    k = k2.reshape(B, S, dk)
    v = v2.reshape(B, S, dv)
    return _flash_attention(q, k, v, masked=masked, seq_tile=seq_tile)


# ---------------------------------------------------------------------------
# Parameter init + plain-JAX reference (matches the PyTorch module).
# ---------------------------------------------------------------------------
def init_params(key, dmodel, dk, dv):
    """Deterministic nn.Linear-style init (uniform +/- 1/sqrt(fan_in))."""
    ks = jax.random.split(key, 6)
    bound = 1.0 / math.sqrt(dmodel)
    wq = jax.random.uniform(ks[0], (dk, dmodel), jnp.float32, -bound, bound)
    bq = jax.random.uniform(ks[1], (1, dk), jnp.float32, -bound, bound)
    wk = jax.random.uniform(ks[2], (dk, dmodel), jnp.float32, -bound, bound)
    bk = jax.random.uniform(ks[3], (1, dk), jnp.float32, -bound, bound)
    wv = jax.random.uniform(ks[4], (dv, dmodel), jnp.float32, -bound, bound)
    bv = jax.random.uniform(ks[5], (1, dv), jnp.float32, -bound, bound)
    return wq, bq, wk, bk, wv, bv


def reference_forward(xq, xk, xv, params, masked):
    wq, bq, wk, bk, wv, bv = params
    dk = wq.shape[0]
    S = xq.shape[1]
    q = xq @ wq.T + bq
    k = xk @ wk.T + bk
    v = xv @ wv.T + bv
    s = q @ jnp.swapaxes(k, -1, -2) / math.sqrt(dk)
    if masked:
        row = jnp.arange(S)[:, None]
        col = jnp.arange(S)[None, :]
        s = s + jnp.where(col > row, -jnp.inf, 0.0).astype(jnp.float32)
    p = jax.nn.softmax(s, axis=-1)
    return p @ v


if __name__ == "__main__":
    # Small but multi-tile shapes: S=256 with 128-row tiles exercises the
    # flash kv loop, causal tile skipping, and both q tiles; feature dims are
    # lane-dense 128-multiples.
    B, S = 2, 256
    dmodel, dk, dv = 512, 128, 128

    key = jax.random.PRNGKey(0)
    kx, kp = jax.random.split(key)
    kq, kk, kv_ = jax.random.split(kx, 3)
    xq = jax.random.normal(kq, (B, S, dmodel), jnp.float32)
    xk = jax.random.normal(kk, (B, S, dmodel), jnp.float32)
    xv = jax.random.normal(kv_, (B, S, dmodel), jnp.float32)

    params = init_params(kp, dmodel, dk, dv)

    ok = True
    for masked in (True, False):
        ref = reference_forward(xq, xk, xv, params, masked)

        # f32 path: strict tolerance vs reference.
        out = jax.block_until_ready(
            attention_forward(xq, xk, xv, params, masked=masked))
        assert out.shape == (B, S, dv)
        ok &= bool(jnp.allclose(out, ref, atol=1e-4, rtol=1e-4))

        # bf16 MXU-operand path (f32 accumulation): looser tolerance.
        out_bf16 = jax.block_until_ready(
            attention_forward(xq, xk, xv, params, masked=masked,
                              compute_dtype=jnp.bfloat16))
        assert out_bf16.shape == (B, S, dv)
        ok &= bool(jnp.allclose(out_bf16, ref, atol=5e-2, rtol=5e-2))

    assert ok, "mismatch vs reference"
    print("KERNEL_OK")
</pallas_src>

<mosaic_0001>
module attributes {stable_mosaic.version = 11 : i64} {
  func.func @_proj_kernel(%arg0: i32, %arg1: memref<256x512xf32, #tpu.memory_space<vmem>>, %arg2: memref<256x512xf32, #tpu.memory_space<vmem>>, %arg3: memref<256x512xf32, #tpu.memory_space<vmem>>, %arg4: memref<512x128xf32, #tpu.memory_space<vmem>>, %arg5: memref<1x128xf32, #tpu.memory_space<vmem>>, %arg6: memref<512x128xf32, #tpu.memory_space<vmem>>, %arg7: memref<1x128xf32, #tpu.memory_space<vmem>>, %arg8: memref<512x128xf32, #tpu.memory_space<vmem>>, %arg9: memref<1x128xf32, #tpu.memory_space<vmem>>, %arg10: memref<256x128xf32, #tpu.memory_space<vmem>>, %arg11: memref<256x128xf32, #tpu.memory_space<vmem>>, %arg12: memref<256x128xf32, #tpu.memory_space<vmem>>) attributes {dimension_semantics = [#tpu.dimension_semantics<parallel>], iteration_bounds = array<i64: 2>, scalar_prefetch = 0 : i64, scratch_operands = 0 : i64, tpu.core_type = #tpu.core_type<tc>, window_params = [{transform_indices = @transform_0, window_bounds = array<i64: 256, 512>}, {transform_indices = @transform_1, window_bounds = array<i64: 256, 512>}, {transform_indices = @transform_2, window_bounds = array<i64: 256, 512>}, {pipeline_mode = #tpu.pipeline_mode<synchronous>, transform_indices = @transform_3, window_bounds = array<i64: 512, 128>}, {pipeline_mode = #tpu.pipeline_mode<synchronous>, transform_indices = @transform_4, window_bounds = array<i64: 1, 128>}, {pipeline_mode = #tpu.pipeline_mode<synchronous>, transform_indices = @transform_5, window_bounds = array<i64: 512, 128>}, {pipeline_mode = #tpu.pipeline_mode<synchronous>, transform_indices = @transform_6, window_bounds = array<i64: 1, 128>}, {pipeline_mode = #tpu.pipeline_mode<synchronous>, transform_indices = @transform_7, window_bounds = array<i64: 512, 128>}, {pipeline_mode = #tpu.pipeline_mode<synchronous>, transform_indices = @transform_8, window_bounds = array<i64: 1, 128>}, {transform_indices = @transform_9, window_bounds = array<i64: 256, 128>}, {transform_indices = @transform_10, window_bounds = array<i64: 256, 128>}, {transform_indices = @transform_11, window_bounds = array<i64: 256, 128>}]} {
    %c0 = arith.constant 0 : index
    %c0_0 = arith.constant 0 : index
    %0 = vector.load %arg1[%c0, %c0_0] : memref<256x512xf32, #tpu.memory_space<vmem>>, vector<256x512xf32>
    %c0_1 = arith.constant 0 : index
    %c0_2 = arith.constant 0 : index
    %1 = vector.load %arg4[%c0_1, %c0_2] : memref<512x128xf32, #tpu.memory_space<vmem>>, vector<512x128xf32>
    %cst = arith.constant dense<0.000000e+00> : vector<256x128xf32>
    %2 = tpu.matmul %0, %1, %cst {dimension_numbers = #tpu.dot_dimension_numbers<[1], [0], [0], [1], [0, 0, 1, 1], [], []>} : vector<256x512xf32>, vector<512x128xf32>, vector<256x128xf32> -> vector<256x128xf32>
    %c0_3 = arith.constant 0 : index
    %c0_4 = arith.constant 0 : index
    %3 = vector.load %arg5[%c0_3, %c0_4] : memref<1x128xf32, #tpu.memory_space<vmem>>, vector<1x128xf32>
    %4 = vector.broadcast %3 : vector<1x128xf32> to vector<256x128xf32>
    %5 = arith.addf %2, %4 : vector<256x128xf32>
    %c0_5 = arith.constant 0 : index
    %c0_6 = arith.constant 0 : index
    %6 = vector.load %arg2[%c0_5, %c0_6] : memref<256x512xf32, #tpu.memory_space<vmem>>, vector<256x512xf32>
    %c0_7 = arith.constant 0 : index
    %c0_8 = arith.constant 0 : index
    %7 = vector.load %arg6[%c0_7, %c0_8] : memref<512x128xf32, #tpu.memory_space<vmem>>, vector<512x128xf32>
    %cst_9 = arith.constant dense<0.000000e+00> : vector<256x128xf32>
    %8 = tpu.matmul %6, %7, %cst_9 {dimension_numbers = #tpu.dot_dimension_numbers<[1], [0], [0], [1], [0, 0, 1, 1], [], []>} : vector<256x512xf32>, vector<512x128xf32>, vector<256x128xf32> -> vector<256x128xf32>
    %c0_10 = arith.constant 0 : index
    %c0_11 = arith.constant 0 : index
    %9 = vector.load %arg7[%c0_10, %c0_11] : memref<1x128xf32, #tpu.memory_space<vmem>>, vector<1x128xf32>
    %10 = vector.broadcast %9 : vector<1x128xf32> to vector<256x128xf32>
    %11 = arith.addf %8, %10 : vector<256x128xf32>
    %c0_12 = arith.constant 0 : index
    %c0_13 = arith.constant 0 : index
    %12 = vector.load %arg3[%c0_12, %c0_13] : memref<256x512xf32, #tpu.memory_space<vmem>>, vector<256x512xf32>
    %c0_14 = arith.constant 0 : index
    %c0_15 = arith.constant 0 : index
    %13 = vector.load %arg8[%c0_14, %c0_15] : memref<512x128xf32, #tpu.memory_space<vmem>>, vector<512x128xf32>
    %cst_16 = arith.constant dense<0.000000e+00> : vector<256x128xf32>
    %14 = tpu.matmul %12, %13, %cst_16 {dimension_numbers = #tpu.dot_dimension_numbers<[1], [0], [0], [1], [0, 0, 1, 1], [], []>} : vector<256x512xf32>, vector<512x128xf32>, vector<256x128xf32> -> vector<256x128xf32>
    %c0_17 = arith.constant 0 : index
    %c0_18 = arith.constant 0 : index
    %15 = vector.load %arg9[%c0_17, %c0_18] : memref<1x128xf32, #tpu.memory_space<vmem>>, vector<1x128xf32>
    %16 = vector.broadcast %15 : vector<1x128xf32> to vector<256x128xf32>
    %17 = arith.addf %14, %16 : vector<256x128xf32>
    %c0_19 = arith.constant 0 : index
    %c0_20 = arith.constant 0 : index
    %18 = vector.load %arg10[%c0_19, %c0_20] : memref<256x128xf32, #tpu.memory_space<vmem>>, vector<256x128xf32>
    tpu.vector_store %arg10[%c0_19, %c0_20], %5 {strides = array<i32>} : memref<256x128xf32, #tpu.memory_space<vmem>>, vector<256x128xf32>,
    %c0_21 = arith.constant 0 : index
    %c0_22 = arith.constant 0 : index
    %19 = vector.load %arg11[%c0_21, %c0_22] : memref<256x128xf32, #tpu.memory_space<vmem>>, vector<256x128xf32>
    tpu.vector_store %arg11[%c0_21, %c0_22], %11 {strides = array<i32>} : memref<256x128xf32, #tpu.memory_space<vmem>>, vector<256x128xf32>,
    %c0_23 = arith.constant 0 : index
    %c0_24 = arith.constant 0 : index
    %20 = vector.load %arg12[%c0_23, %c0_24] : memref<256x128xf32, #tpu.memory_space<vmem>>, vector<256x128xf32>
    tpu.vector_store %arg12[%c0_23, %c0_24], %17 {strides = array<i32>} : memref<256x128xf32, #tpu.memory_space<vmem>>, vector<256x128xf32>,
    return
  }
  func.func @transform_0(%arg0: i32) -> (i32, i32) {
    %c0_i32 = arith.constant 0 : i32
    %c0_i32_0 = arith.constant 0 : i32
    return %arg0, %c0_i32 : i32, i32
  }
  func.func @transform_1(%arg0: i32) -> (i32, i32) {
    %c0_i32 = arith.constant 0 : i32
    %c0_i32_0 = arith.constant 0 : i32
    return %arg0, %c0_i32 : i32, i32
  }
  func.func @transform_2(%arg0: i32) -> (i32, i32) {
    %c0_i32 = arith.constant 0 : i32
    %c0_i32_0 = arith.constant 0 : i32
    return %arg0, %c0_i32 : i32, i32
  }
  func.func @transform_3(%arg0: i32) -> (i32, i32) {
    %c0_i32 = arith.constant 0 : i32
    %c0_i32_0 = arith.constant 0 : i32
    %c0_i32_1 = arith.constant 0 : i32
    return %c0_i32, %c0_i32_0 : i32, i32
  }
  func.func @transform_4(%arg0: i32) -> (i32, i32) {
    %c0_i32 = arith.constant 0 : i32
    %c0_i32_0 = arith.constant 0 : i32
    %c0_i32_1 = arith.constant 0 : i32
    return %c0_i32, %c0_i32_0 : i32, i32
  }
  func.func @transform_5(%arg0: i32) -> (i32, i32) {
    %c0_i32 = arith.constant 0 : i32
    %c0_i32_0 = arith.constant 0 : i32
    %c0_i32_1 = arith.constant 0 : i32
    return %c0_i32, %c0_i32_0 : i32, i32
  }
  func.func @transform_6(%arg0: i32) -> (i32, i32) {
    %c0_i32 = arith.constant 0 : i32
    %c0_i32_0 = arith.constant 0 : i32
    %c0_i32_1 = arith.constant 0 : i32
    return %c0_i32, %c0_i32_0 : i32, i32
  }
  func.func @transform_7(%arg0: i32) -> (i32, i32) {
    %c0_i32 = arith.constant 0 : i32
    %c0_i32_0 = arith.constant 0 : i32
    %c0_i32_1 = arith.constant 0 : i32
    return %c0_i32, %c0_i32_0 : i32, i32
  }
  func.func @transform_8(%arg0: i32) -> (i32, i32) {
    %c0_i32 = arith.constant 0 : i32
    %c0_i32_0 = arith.constant 0 : i32
    %c0_i32_1 = arith.constant 0 : i32
    return %c0_i32, %c0_i32_0 : i32, i32
  }
  func.func @transform_9(%arg0: i32) -> (i32, i32) {
    %c0_i32 = arith.constant 0 : i32
    %c0_i32_0 = arith.constant 0 : i32
    return %arg0, %c0_i32 : i32, i32
  }
  func.func @transform_10(%arg0: i32) -> (i32, i32) {
    %c0_i32 = arith.constant 0 : i32
    %c0_i32_0 = arith.constant 0 : i32
    return %arg0, %c0_i32 : i32, i32
  }
  func.func @transform_11(%arg0: i32) -> (i32, i32) {
    %c0_i32 = arith.constant 0 : i32
    %c0_i32_0 = arith.constant 0 : i32
    return %arg0, %c0_i32 : i32, i32
  }
}

</mosaic_0001>

<llo_original>
// kernel: tpu_custom_call.1
$region0: #{tpu_custom_call.1}
  #allocation0 [shape = 'u32[]', space=smem, size = 0x4, offset = 0x4, fixed_abs, tag = 'smem constant byte address 0x4 - core index']
  #allocation1 [shape = 'u32[144,128]{1,0:T(1,128)}', space=vmem, size = 0x12000, scoped, tag = 'internal scratch']
  %s0 = inlined_call_operand.hbm [shape: f32[512,512], index: 0, kind: input, shape index: {}]
  %s1 = inlined_call_operand.hbm [shape: f32[512,512], index: 1, kind: input, shape index: {}]
  %s2 = inlined_call_operand.hbm [shape: f32[512,512], index: 2, kind: input, shape index: {}]
  %s3 = inlined_call_operand.hbm [shape: f32[512,128], index: 3, kind: input, shape index: {}]
  %s4 = inlined_call_operand.vmem [shape: f32[1,128], index: 4, kind: input, shape index: {}]
  %s5 = inlined_call_operand.hbm [shape: f32[512,128], index: 5, kind: input, shape index: {}]
  %s6 = inlined_call_operand.vmem [shape: f32[1,128], index: 6, kind: input, shape index: {}]
  %s7 = inlined_call_operand.hbm [shape: f32[512,128], index: 7, kind: input, shape index: {}]
  %s8 = inlined_call_operand.vmem [shape: f32[1,128], index: 8, kind: input, shape index: {}]
  %s9 = inlined_call_operand.hbm [shape: f32[512,128], index: 9, kind: output, shape index: {0}]
  %s10 = inlined_call_operand.hbm [shape: f32[512,128], index: 10, kind: output, shape index: {1}]
  %s11 = inlined_call_operand.hbm [shape: f32[512,128], index: 11, kind: output, shape index: {2}]
  %12 = xla_tuple %s9, %s10, %s11
  %s13 = sld [smem:[#allocation0]]
  $region109: #{tpu_custom_call.1} parent=0
    _
  %s15 = ssub.s32 1, %s13
  %s16 = scalar_select 0, %s15, %s13
  $region1: #{tpu_custom_call.1} parent=0
    #allocation2 [shape = 'u8[1048576]{0}', space=vmem, size = 0x100000, scoped, tag = 'input window, operand 0']
    #allocation3 [shape = 's32[2]{0}', space=sflag, size = 0x8, scoped, tag = 'scoped memory for tpu_custom_call.1']
    #allocation4 [shape = 's32[2]{0}', space=sflag, size = 0x8, scoped, tag = 'scoped memory for tpu_custom_call.1']
    #allocation5 [shape = 'u8[1048576]{0}', space=vmem, size = 0x100000, scoped, tag = 'input window, operand 1']
    #allocation6 [shape = 's32[2]{0}', space=sflag, size = 0x8, scoped, tag = 'scoped memory for tpu_custom_call.1']
    #allocation7 [shape = 'u8[1048576]{0}', space=vmem, size = 0x100000, scoped, tag = 'input window, operand 2']
    #allocation8 [shape = 'u8[262144]{0}', space=vmem, size = 0x40000, scoped, tag = 'input window, operand 3, single buffered']
    #allocation9 [shape = 's32[1]{0}', space=sflag, size = 0x4, scoped, tag = 'scoped memory for tpu_custom_call.1']
    #allocation10 [shape = 'u8[262144]{0}', space=vmem, size = 0x40000, scoped, tag = 'input window, operand 5, single buffered']
    #allocation11 [shape = 'u8[262144]{0}', space=vmem, size = 0x40000, scoped, tag = 'input window, operand 7, single buffered']
    #allocation12 [shape = 's32[1]{0}', space=sflag, size = 0x4, scoped, tag = 'scoped memory for tpu_custom_call.1']
    #allocation13 [shape = 'u8[262144]{0}', space=vmem, size = 0x40000, scoped, tag = 'output window, operand 0']
    #allocation14 [shape = 'u8[262144]{0}', space=vmem, size = 0x40000, scoped, tag = 'output window, operand 1']
    #allocation15 [shape = 's32[2]{0}', space=sflag, size = 0x8, scoped, tag = 'scoped memory for tpu_custom_call.1']
    #allocation16 [shape = 'u8[262144]{0}', space=vmem, size = 0x40000, scoped, tag = 'output window, operand 2']
    %17 = vsyncpa [#allocation3], 0
    %s18 = scalar_lea.sflag [#allocation3], 1
    %19 = vsyncpa %s18, 0
    %20 = vsyncpa [#allocation6], 0
    %s21 = scalar_lea.sflag [#allocation6], 1
    %22 = vsyncpa %s21, 0
    %23 = vsyncpa [#allocation9], 0
    %24 = vsyncpa [#allocation12], 0
    %25 = vsyncpa [#allocation4], 0
    %s26 = scalar_lea.sflag [#allocation4], 1
    %27 = vsyncpa %s26, 0
    %28 = vsyncpa [#allocation15], 0
    %s29 = scalar_lea.sflag [#allocation15], 1
    %30 = vsyncpa %s29, 0
    loop: start=0, step=1, limit=4
    $region2: #{tpu_custom_call.1} parent=1 // loop_pre_header
      _
    $region3: #{tpu_custom_call.1} parent=1 // loop_header
      %s32 = sphi 0, %s36
      %p33 = scmp.ge.s32.totalorder %s32, 4
      %s42 = sphi 0, %s44
      %s45 = sphi 0, %s42
      %s46 = sphi 0, %s45
      %s62 = sphi 0, %s46
      %s68 = sphi 0, %s70
      %s71 = sphi 0, %s68
      %s72 = sphi 0, %s71
      %s88 = sphi 0, %s72
      %s94 = sphi 0, %s96
      %s97 = sphi 0, %s94
      %s98 = sphi 0, %s97
      %s114 = sphi 0, %s98
      %s118 = sphi 0, %s118
      %s120 = sphi 0, %s118
      %s121 = sphi 0, %s120
      %s135 = sphi 0, %s121
      %s139 = sphi 0, %s139
      %s141 = sphi 0, %s139
      %s142 = sphi 0, %s141
      %s156 = sphi 0, %s142
      %s160 = sphi 0, %s160
      %s162 = sphi 0, %s160
      %s163 = sphi 0, %s162
      %s177 = sphi 0, %s163
      %s181 = sphi 0, %s181
      %s183 = sphi 0, %s181
      %s184 = sphi 0, %s183
      %s198 = sphi 0, %s184
      %s202 = sphi 0, %s202
      %s204 = sphi 0, %s202
      %s205 = sphi 0, %s204
      %s219 = sphi 0, %s205
      %s223 = sphi 0, %s223
      %s225 = sphi 0, %s223
      %s226 = sphi 0, %s225
      %s240 = sphi 0, %s226
      %s246 = sphi 0, %s248
      %s249 = sphi 0, %s246
      %s250 = sphi 0, %s249
      %s266 = sphi 0, %s250
      %s272 = sphi 0, %s274
      %s275 = sphi 0, %s272
      %s276 = sphi 0, %s275
      %s292 = sphi 0, %s276
      %s298 = sphi 0, %s300
      %s301 = sphi 0, %s298
      %s302 = sphi 0, %s301
      %s318 = sphi 0, %s302
    $region4: #{tpu_custom_call.1} parent=1 // loop_header_branch
      %35 = sbr.rel (%p33) target = $region8
    $region5: #{tpu_custom_call.1} parent=1 // loop_body
      %s37 = ssub.s32 %s32, 1
      %s38 = ssub.s32 %s32, 2
      %s39 = sadd.s32 %s32, 1
      %s40 = ssub.s32 %s32, %s39
      %p41 = scmp.eq.s32.totalorder %s40, 0
      %s43 = sadd.s32 %s42, 1
      %s44 = scalar_select %p41, %s42, %s43
      %p47 = pneg %p41
      %p48 = scmp.eq.s32.totalorder %s32, 1
      %p49 = por %p47, %p48
      %p50 = scmp.ne.s32.totalorder %s42, %s45
      %p51 = scmp.eq.s32.totalorder %s32, 0
      %p52 = por %p50, %p51
      %p53 = scmp.ne.s32.totalorder %s42, %s45
      %p54 = scmp.eq.s32.totalorder %s37, 1
      %p55 = por %p53, %p54
      %p56 = scmp.ne.s32.totalorder %s45, %s46
      %p57 = scmp.eq.s32.totalorder %s37, 0
      %p58 = por %p56, %p57
      %p59 = scmp.ne.s32.totalorder %s45, %s46
      %p60 = scmp.eq.s32.totalorder %s38, 1
      %p61 = por %p59, %p60
      %p63 = scmp.ne.s32.totalorder %s46, %s62
      %p64 = scmp.eq.s32.totalorder %s38, 0
      %p65 = por %p63, %p64
      %s66 = ssub.s32 %s32, %s39
      %p67 = scmp.eq.s32.totalorder %s66, 0
      %s69 = sadd.s32 %s68, 1
      %s70 = scalar_select %p67, %s68, %s69
      %p73 = pneg %p67
      %p74 = scmp.eq.s32.totalorder %s32, 1
      %p75 = por %p73, %p74
      %p76 = scmp.ne.s32.totalorder %s68, %s71
      %p77 = scmp.eq.s32.totalorder %s32, 0
      %p78 = por %p76, %p77
      %p79 = scmp.ne.s32.totalorder %s68, %s71
      %p80 = scmp.eq.s32.totalorder %s37, 1
      %p81 = por %p79, %p80
      %p82 = scmp.ne.s32.totalorder %s71, %s72
      %p83 = scmp.eq.s32.totalorder %s37, 0
      %p84 = por %p82, %p83
      %p85 = scmp.ne.s32.totalorder %s71, %s72
      %p86 = scmp.eq.s32.totalorder %s38, 1
      %p87 = por %p85, %p86
      %p89 = scmp.ne.s32.totalorder %s72, %s88
      %p90 = scmp.eq.s32.totalorder %s38, 0
      %p91 = por %p89, %p90
      %s92 = ssub.s32 %s32, %s39
      %p93 = scmp.eq.s32.totalorder %s92, 0
      %s95 = sadd.s32 %s94, 1
      %s96 = scalar_select %p93, %s94, %s95
      %p99 = pneg %p93
      %p100 = scmp.eq.s32.totalorder %s32, 1
      %p101 = por %p99, %p100
      %p102 = scmp.ne.s32.totalorder %s94, %s97
      %p103 = scmp.eq.s32.totalorder %s32, 0
      %p104 = por %p102, %p103
      %p105 = scmp.ne.s32.totalorder %s94, %s97
      %p106 = scmp.eq.s32.totalorder %s37, 1
      %p107 = por %p105, %p106
      %p108 = scmp.ne.s32.totalorder %s97, %s98
      %p109 = scmp.eq.s32.totalorder %s37, 0
      %p110 = por %p108, %p109
      %p111 = scmp.ne.s32.totalorder %s97, %s98
      %p112 = scmp.eq.s32.totalorder %s38, 1
      %p113 = por %p111, %p112
      %p115 = scmp.ne.s32.totalorder %s98, %s114
      %p116 = scmp.eq.s32.totalorder %s38, 0
      %p117 = por %p115, %p116
      %s119 = sadd.s32 %s118, 1
      %p122 = scmp.eq.s32.totalorder %s32, 1
      %p123 = scmp.ne.s32.totalorder %s118, %s120
      %p124 = scmp.eq.s32.totalorder %s32, 0
      %p125 = por %p123, %p124
      %p126 = scmp.ne.s32.totalorder %s118, %s120
      %p127 = scmp.eq.s32.totalorder %s37, 1
      %p128 = por %p126, %p127
      %p129 = scmp.ne.s32.totalorder %s120, %s121
      %p130 = scmp.eq.s32.totalorder %s37, 0
      %p131 = por %p129, %p130
      %p132 = scmp.ne.s32.totalorder %s120, %s121
      %p133 = scmp.eq.s32.totalorder %s38, 1
      %p134 = por %p132, %p133
      %p136 = scmp.ne.s32.totalorder %s121, %s135
      %p137 = scmp.eq.s32.totalorder %s38, 0
      %p138 = por %p136, %p137
      %s140 = sadd.s32 %s139, 1
      %p143 = scmp.eq.s32.totalorder %s32, 1
      %p144 = scmp.ne.s32.totalorder %s139, %s141
      %p145 = scmp.eq.s32.totalorder %s32, 0
      %p146 = por %p144, %p145
      %p147 = scmp.ne.s32.totalorder %s139, %s141
      %p148 = scmp.eq.s32.totalorder %s37, 1
      %p149 = por %p147, %p148
      %p150 = scmp.ne.s32.totalorder %s141, %s142
      %p151 = scmp.eq.s32.totalorder %s37, 0
      %p152 = por %p150, %p151
      %p153 = scmp.ne.s32.totalorder %s141, %s142
      %p154 = scmp.eq.s32.totalorder %s38, 1
      %p155 = por %p153, %p154
      %p157 = scmp.ne.s32.totalorder %s142, %s156
      %p158 = scmp.eq.s32.totalorder %s38, 0
      %p159 = por %p157, %p158
      %s161 = sadd.s32 %s160, 1
      %p164 = scmp.eq.s32.totalorder %s32, 1
      %p165 = scmp.ne.s32.totalorder %s160, %s162
      %p166 = scmp.eq.s32.totalorder %s32, 0
      %p167 = por %p165, %p166
      %p168 = scmp.ne.s32.totalorder %s160, %s162
      %p169 = scmp.eq.s32.totalorder %s37, 1
      %p170 = por %p168, %p169
      %p171 = scmp.ne.s32.totalorder %s162, %s163
      %p172 = scmp.eq.s32.totalorder %s37, 0
      %p173 = por %p171, %p172
      %p174 = scmp.ne.s32.totalorder %s162, %s163
      %p175 = scmp.eq.s32.totalorder %s38, 1
      %p176 = por %p174, %p175
      %p178 = scmp.ne.s32.totalorder %s163, %s177
      %p179 = scmp.eq.s32.totalorder %s38, 0
      %p180 = por %p178, %p179
      %s182 = sadd.s32 %s181, 1
      %p185 = scmp.eq.s32.totalorder %s32, 1
      %p186 = scmp.ne.s32.totalorder %s181, %s183
      %p187 = scmp.eq.s32.totalorder %s32, 0
      %p188 = por %p186, %p187
      %p189 = scmp.ne.s32.totalorder %s181, %s183
      %p190 = scmp.eq.s32.totalorder %s37, 1
      %p191 = por %p189, %p190
      %p192 = scmp.ne.s32.totalorder %s183, %s184
      %p193 = scmp.eq.s32.totalorder %s37, 0
      %p194 = por %p192, %p193
      %p195 = scmp.ne.s32.totalorder %s183, %s184
      %p196 = scmp.eq.s32.totalorder %s38, 1
      %p197 = por %p195, %p196
      %p199 = scmp.ne.s32.totalorder %s184, %s198
      %p200 = scmp.eq.s32.totalorder %s38, 0
      %p201 = por %p199, %p200
      %s203 = sadd.s32 %s202, 1
      %p206 = scmp.eq.s32.totalorder %s32, 1
      %p207 = scmp.ne.s32.totalorder %s202, %s204
      %p208 = scmp.eq.s32.totalorder %s32, 0
      %p209 = por %p207, %p208
      %p210 = scmp.ne.s32.totalorder %s202, %s204
      %p211 = scmp.eq.s32.totalorder %s37, 1
      %p212 = por %p210, %p211
      %p213 = scmp.ne.s32.totalorder %s204, %s205
      %p214 = scmp.eq.s32.totalorder %s37, 0
      %p215 = por %p213, %p214
      %p216 = scmp.ne.s32.totalorder %s204, %s205
      %p217 = scmp.eq.s32.totalorder %s38, 1
      %p218 = por %p216, %p217
      %p220 = scmp.ne.s32.totalorder %s205, %s219
      %p221 = scmp.eq.s32.totalorder %s38, 0
      %p222 = por %p220, %p221
      %s224 = sadd.s32 %s223, 1
      %p227 = scmp.eq.s32.totalorder %s32, 1
      %p228 = scmp.ne.s32.totalorder %s223, %s225
      %p229 = scmp.eq.s32.totalorder %s32, 0
      %p230 = por %p228, %p229
      %p231 = scmp.ne.s32.totalorder %s223, %s225
      %p232 = scmp.eq.s32.totalorder %s37, 1
      %p233 = por %p231, %p232
      %p234 = scmp.ne.s32.totalorder %s225, %s226
      %p235 = scmp.eq.s32.totalorder %s37, 0
      %p236 = por %p234, %p235
      %p237 = scmp.ne.s32.totalorder %s225, %s226
      %p238 = scmp.eq.s32.totalorder %s38, 1
      %p239 = por %p237, %p238
      %p241 = scmp.ne.s32.totalorder %s226, %s240
      %p242 = scmp.eq.s32.totalorder %s38, 0
      %p243 = por %p241, %p242
      %s244 = ssub.s32 %s32, %s39
      %p245 = scmp.eq.s32.totalorder %s244, 0
      %s247 = sadd.s32 %s246, 1
      %s248 = scalar_select %p245, %s246, %s247
      %p251 = pneg %p245
      %p252 = scmp.eq.s32.totalorder %s32, 1
      %p253 = por %p251, %p252
      %p254 = scmp.ne.s32.totalorder %s246, %s249
      %p255 = scmp.eq.s32.totalorder %s32, 0
      %p256 = por %p254, %p255
      %p257 = scmp.ne.s32.totalorder %s246, %s249
      %p258 = scmp.eq.s32.totalorder %s37, 1
      %p259 = por %p257, %p258
      %p260 = scmp.ne.s32.totalorder %s249, %s250
      %p261 = scmp.eq.s32.totalorder %s37, 0
      %p262 = por %p260, %p261
      %p263 = scmp.ne.s32.totalorder %s249, %s250
      %p264 = scmp.eq.s32.totalorder %s38, 1
      %p265 = por %p263, %p264
      %p267 = scmp.ne.s32.totalorder %s250, %s266
      %p268 = scmp.eq.s32.totalorder %s38, 0
      %p269 = por %p267, %p268
      %s270 = ssub.s32 %s32, %s39
      %p271 = scmp.eq.s32.totalorder %s270, 0
      %s273 = sadd.s32 %s272, 1
      %s274 = scalar_select %p271, %s272, %s273
      %p277 = pneg %p271
      %p278 = scmp.eq.s32.totalorder %s32, 1
      %p279 = por %p277, %p278
      %p280 = scmp.ne.s32.totalorder %s272, %s275
      %p281 = scmp.eq.s32.totalorder %s32, 0
      %p282 = por %p280, %p281
      %p283 = scmp.ne.s32.totalorder %s272, %s275
      %p284 = scmp.eq.s32.totalorder %s37, 1
      %p285 = por %p283, %p284
      %p286 = scmp.ne.s32.totalorder %s275, %s276
      %p287 = scmp.eq.s32.totalorder %s37, 0
      %p288 = por %p286, %p287
      %p289 = scmp.ne.s32.totalorder %s275, %s276
      %p290 = scmp.eq.s32.totalorder %s38, 1
      %p291 = por %p289, %p290
      %p293 = scmp.ne.s32.totalorder %s276, %s292
      %p294 = scmp.eq.s32.totalorder %s38, 0
      %p295 = por %p293, %p294
      %s296 = ssub.s32 %s32, %s39
      %p297 = scmp.eq.s32.totalorder %s296, 0
      %s299 = sadd.s32 %s298, 1
      %s300 = scalar_select %p297, %s298, %s299
      %p303 = pneg %p297
      %p304 = scmp.eq.s32.totalorder %s32, 1
      %p305 = por %p303, %p304
      %p306 = scmp.ne.s32.totalorder %s298, %s301
      %p307 = scmp.eq.s32.totalorder %s32, 0
      %p308 = por %p306, %p307
      %p309 = scmp.ne.s32.totalorder %s298, %s301
      %p310 = scmp.eq.s32.totalorder %s37, 1
      %p311 = por %p309, %p310
      %p312 = scmp.ne.s32.totalorder %s301, %s302
      %p313 = scmp.eq.s32.totalorder %s37, 0
      %p314 = por %p312, %p313
      %p315 = scmp.ne.s32.totalorder %s301, %s302
      %p316 = scmp.eq.s32.totalorder %s38, 1
      %p317 = por %p315, %p316
      %p319 = scmp.ne.s32.totalorder %s302, %s318
      %p320 = scmp.eq.s32.totalorder %s38, 0
      %p321 = por %p319, %p320
      %p322 = scmp.le.s32.totalorder 1, %s32
      %p323 = scmp.lt.s32.totalorder %s32, 3
      %p324 = pnand %p322, %p323
      %p325 = pneg %p324
      // Predicated region
      $region9: #{tpu_custom_call.1} parent=5 // pred_check
        _
      $region10: #{tpu_custom_call.1} parent=5 // pred_check_branch
        %327 = sbr.rel (%p324) target = $region12
      $region11: #{tpu_custom_call.1} parent=5 // pred_region
        %s328 = ssub.s32 %s32, 1
        // Predicated region
        $region13: #{tpu_custom_call.1} parent=11 // pred_check
          %p329 = pneg %p131
        $region14: #{tpu_custom_call.1} parent=11 // pred_check_branch
          %331 = sbr.rel (%p329) target = $region16
        $region15: #{tpu_custom_call.1} parent=11 // pred_region
          %s333 = ssub.s32 8192, 8192
          %334 = vsyncadd [#allocation9], %s333
          %s335 = sshll.u32 [#allocation8], 4
          %s336 = int_to_ptr.vmem [resolvable:$true] %s335
          %341 = dma.hbm_to_vmem [thread:$0]  %s3, 8192, %s336, [#allocation9], 128, 128, 8
        $region16: #{tpu_custom_call.1} parent=11 // pred_fallthru
          _
        // Predicated region
        $region17: #{tpu_custom_call.1} parent=11 // pred_check
          %p342 = pneg %p152
        $region18: #{tpu_custom_call.1} parent=11 // pred_check_branch
          %344 = sbr.rel (%p342) target = $region20
        $region19: #{tpu_custom_call.1} parent=11 // pred_region
          _
        $region20: #{tpu_custom_call.1} parent=11 // pred_fallthru
          _
        // Predicated region
        $region21: #{tpu_custom_call.1} parent=11 // pred_check
          %p345 = pneg %p173
        $region22: #{tpu_custom_call.1} parent=11 // pred_check_branch
          %347 = sbr.rel (%p345) target = $region24
        $region23: #{tpu_custom_call.1} parent=11 // pred_region
          %s349 = ssub.s32 8192, 8192
          %350 = vsyncadd [#allocation9], %s349
          %s351 = sshll.u32 [#allocation10], 4
          %s352 = int_to_ptr.vmem [resolvable:$true] %s351
          %357 = dma.hbm_to_vmem [thread:$0]  %s5, 8192, %s352, [#allocation9], 128, 128, 8
        $region24: #{tpu_custom_call.1} parent=11 // pred_fallthru
          _
        // Predicated region
        $region25: #{tpu_custom_call.1} parent=11 // pred_check
          %p358 = pneg %p194
        $region26: #{tpu_custom_call.1} parent=11 // pred_check_branch
          %360 = sbr.rel (%p358) target = $region28
        $region27: #{tpu_custom_call.1} parent=11 // pred_region
          _
        $region28: #{tpu_custom_call.1} parent=11 // pred_fallthru
          _
        // Predicated region
        $region29: #{tpu_custom_call.1} parent=11 // pred_check
          %p361 = pneg %p215
        $region30: #{tpu_custom_call.1} parent=11 // pred_check_branch
          %363 = sbr.rel (%p361) target = $region32
        $region31: #{tpu_custom_call.1} parent=11 // pred_region
          %s365 = ssub.s32 8192, 8192
          %366 = vsyncadd [#allocation12], %s365
          %s367 = sshll.u32 [#allocation11], 4
          %s368 = int_to_ptr.vmem [resolvable:$true] %s367
          %373 = dma.hbm_to_vmem [thread:$0]  %s7, 8192, %s368, [#allocation12], 128, 128, 8
        $region32: #{tpu_custom_call.1} parent=11 // pred_fallthru
          _
        // Predicated region
        $region33: #{tpu_custom_call.1} parent=11 // pred_check
          %p374 = pneg %p236
        $region34: #{tpu_custom_call.1} parent=11 // pred_check_branch
          %376 = sbr.rel (%p374) target = $region36
        $region35: #{tpu_custom_call.1} parent=11 // pred_region
          _
        $region36: #{tpu_custom_call.1} parent=11 // pred_fallthru
          _
      $region12: #{tpu_custom_call.1} parent=5 // pred_fallthru
        _
      %p377 = scmp.lt.s32.totalorder %s32, 2
      // Predicated region
      $region37: #{tpu_custom_call.1} parent=5 // pred_check
        %p378 = pneg %p377
      $region38: #{tpu_custom_call.1} parent=5 // pred_check_branch
        %380 = sbr.rel (%p378) target = $region40
      $region39: #{tpu_custom_call.1} parent=5 // pred_region
        // Predicated region
        $region41: #{tpu_custom_call.1} parent=39 // pred_check
          %p381 = pneg %p52
        $region42: #{tpu_custom_call.1} parent=39 // pred_check_branch
          %383 = sbr.rel (%p381) target = $region44
        $region43: #{tpu_custom_call.1} parent=39 // pred_region
          %s384 = sand.u32 %s42, 1
          %s385 = scalar_lea.sflag [#allocation3], %s384
          %s386 = sand.u32 %s42, 1
          %s387 = smul.addr %s386, 1024
          %s388 = scalar_lea.vmem [#allocation2], %s387
          %s389 = smul.u32 32, %s32
          %s391 = ssub.s32 16384, 16384
          %392 = vsyncadd %s385, %s391
          %s393 = smul.addr %s389, 4
          %s394 = smul.addr %s393, 128
          %s395 = scalar_lea.hbm %s0, %s394
          %s396 = sshll.u32 %s388, 4
          %s397 = int_to_ptr.vmem [resolvable:$true] %s396
          %402 = dma.hbm_to_vmem [thread:$0]  %s395, 16384, %s397, %s385, 512, 512, 32
        $region44: #{tpu_custom_call.1} parent=39 // pred_fallthru
          _
        // Predicated region
        $region45: #{tpu_custom_call.1} parent=39 // pred_check
          %p403 = pneg %p78
        $region46: #{tpu_custom_call.1} parent=39 // pred_check_branch
          %405 = sbr.rel (%p403) target = $region48
        $region47: #{tpu_custom_call.1} parent=39 // pred_region
          %s406 = sand.u32 %s32, 1
          %s407 = scalar_lea.sflag [#allocation6], %s406
          %s408 = sand.u32 %s68, 1
          %s409 = smul.addr %s408, 1024
          %s410 = scalar_lea.vmem [#allocation5], %s409
          %s411 = smul.u32 32, %s32
          %s413 = ssub.s32 16384, 16384
          %414 = vsyncadd %s407, %s413
          %s415 = smul.addr %s411, 4
          %s416 = smul.addr %s415, 128
          %s417 = scalar_lea.hbm %s1, %s416
          %s418 = sshll.u32 %s410, 4
          %s419 = int_to_ptr.vmem [resolvable:$true] %s418
          %424 = dma.hbm_to_vmem [thread:$0]  %s417, 16384, %s419, %s407, 512, 512, 32
        $region48: #{tpu_custom_call.1} parent=39 // pred_fallthru
          _
        // Predicated region
        $region49: #{tpu_custom_call.1} parent=39 // pred_check
          %p425 = pneg %p104
        $region50: #{tpu_custom_call.1} parent=39 // pred_check_branch
          %427 = sbr.rel (%p425) target = $region52
        $region51: #{tpu_custom_call.1} parent=39 // pred_region
          %s428 = sand.u32 %s32, 1
          %s429 = scalar_lea.sflag [#allocation6], %s428
          %s430 = sand.u32 %s94, 1
          %s431 = smul.addr %s430, 1024
          %s432 = scalar_lea.vmem [#allocation7], %s431
          %s433 = smul.u32 32, %s32
          %s435 = ssub.s32 16384, 16384
          %436 = vsyncadd %s429, %s435
          %s437 = smul.addr %s433, 4
          %s438 = smul.addr %s437, 128
          %s439 = scalar_lea.hbm %s2, %s438
          %s440 = sshll.u32 %s432, 4
          %s441 = int_to_ptr.vmem [resolvable:$true] %s440
          %446 = dma.hbm_to_vmem [thread:$0]  %s439, 16384, %s441, %s429, 512, 512, 32
        $region52: #{tpu_custom_call.1} parent=39 // pred_fallthru
          _
      $region40: #{tpu_custom_call.1} parent=5 // pred_fallthru
        _
      %p447 = scmp.le.s32.totalorder 1, %s32
      %p448 = scmp.lt.s32.totalorder %s32, 3
      %p449 = pnand %p447, %p448
      %p450 = pneg %p449
      // Predicated region
      $region53: #{tpu_custom_call.1} parent=5 // pred_check
        _
      $region54: #{tpu_custom_call.1} parent=5 // pred_check_branch
        %452 = sbr.rel (%p449) target = $region56
      $region55: #{tpu_custom_call.1} parent=5 // pred_region
        %s453 = ssub.s32 %s32, 1
        %s454 = sand.u32 %s45, 1
        %s455 = scalar_lea.sflag [#allocation3], %s454
        %s456 = sand.u32 %s45, 1
        %s457 = smul.addr %s456, 1024
        %s458 = scalar_lea.vmem [#allocation2], %s457
        // Predicated region
        $region57: #{tpu_custom_call.1} parent=55 // pred_check
          %p459 = pneg %p58
        $region58: #{tpu_custom_call.1} parent=55 // pred_check_branch
          %461 = sbr.rel (%p459) target = $region60
        $region59: #{tpu_custom_call.1} parent=55 // pred_region
          %462 = dma.done %s455, 16384
        $region60: #{tpu_custom_call.1} parent=55 // pred_fallthru
          _
        %s463 = sand.u32 %s37, 1
        %s464 = scalar_lea.sflag [#allocation6], %s463
        %s465 = sand.u32 %s71, 1
        %s466 = smul.addr %s465, 1024
        %s467 = scalar_lea.vmem [#allocation5], %s466
        // Predicated region
        $region61: #{tpu_custom_call.1} parent=55 // pred_check
          %p468 = pneg %p84
        $region62: #{tpu_custom_call.1} parent=55 // pred_check_branch
          %470 = sbr.rel (%p468) target = $region64
        $region63: #{tpu_custom_call.1} parent=55 // pred_region
          %471 = dma.done %s464, 16384
        $region64: #{tpu_custom_call.1} parent=55 // pred_fallthru
          _
        %s472 = sand.u32 %s37, 1
        %s473 = scalar_lea.sflag [#allocation6], %s472
        %s474 = sand.u32 %s97, 1
        %s475 = smul.addr %s474, 1024
        %s476 = scalar_lea.vmem [#allocation7], %s475
        // Predicated region
        $region65: #{tpu_custom_call.1} parent=55 // pred_check
          %p477 = pneg %p110
        $region66: #{tpu_custom_call.1} parent=55 // pred_check_branch
          %479 = sbr.rel (%p477) target = $region68
        $region67: #{tpu_custom_call.1} parent=55 // pred_region
          %480 = dma.done %s473, 16384
        $region68: #{tpu_custom_call.1} parent=55 // pred_fallthru
          _
        // Predicated region
        $region69: #{tpu_custom_call.1} parent=55 // pred_check
          %p481 = pneg %p131
        $region70: #{tpu_custom_call.1} parent=55 // pred_check_branch
          %483 = sbr.rel (%p481) target = $region72
        $region71: #{tpu_custom_call.1} parent=55 // pred_region
          %484 = dma.done [#allocation9], 8192
        $region72: #{tpu_custom_call.1} parent=55 // pred_fallthru
          _
        // Predicated region
        $region73: #{tpu_custom_call.1} parent=55 // pred_check
          %p485 = pneg %p173
        $region74: #{tpu_custom_call.1} parent=55 // pred_check_branch
          %487 = sbr.rel (%p485) target = $region76
        $region75: #{tpu_custom_call.1} parent=55 // pred_region
          %488 = dma.done [#allocation9], 8192
        $region76: #{tpu_custom_call.1} parent=55 // pred_fallthru
          _
        // Predicated region
        $region77: #{tpu_custom_call.1} parent=55 // pred_check
          %p489 = pneg %p215
        $region78: #{tpu_custom_call.1} parent=55 // pred_check_branch
          %491 = sbr.rel (%p489) target = $region80
        $region79: #{tpu_custom_call.1} parent=55 // pred_region
          %492 = dma.done [#allocation12], 8192
        $region80: #{tpu_custom_call.1} parent=55 // pred_fallthru
          _
        %s493 = sand.u32 %s45, 1
        %s494 = scalar_lea.sflag [#allocation3], %s493
        %s495 = sand.u32 %s45, 1
        %s496 = smul.addr %s495, 1024
        %s497 = scalar_lea.vmem [#allocation2], %s496
        %p498 = pneg %p58
        %p499 = pneg %p55
        %s500 = sand.u32 %s37, 1
        %s501 = scalar_lea.sflag [#allocation6], %s500
        %s502 = sand.u32 %s71, 1
        %s503 = smul.addr %s502, 1024
        %s504 = scalar_lea.vmem [#allocation5], %s503
        %p505 = pneg %p84
        %p506 = pneg %p81
        %s507 = sand.u32 %s37, 1
        %s508 = scalar_lea.sflag [#allocation6], %s507
        %s509 = sand.u32 %s97, 1
        %s510 = smul.addr %s509, 1024
        %s511 = scalar_lea.vmem [#allocation7], %s510
        %p512 = pneg %p110
        %p513 = pneg %p107
        %p514 = pneg %p131
        %p515 = pneg %p128
        %p516 = pneg %p152
        %p517 = pneg %p149
        %p518 = pneg %p173
        %p519 = pneg %p170
        %p520 = pneg %p194
        %p521 = pneg %p191
        %p522 = pneg %p215
        %p523 = pneg %p212
        %p524 = pneg %p236
        %p525 = pneg %p233
        %p526 = pneg %p262
        %p527 = pneg %p259
        %s528 = sand.u32 %s249, 1
        %s529 = scalar_lea.sflag [#allocation4], %s528
        %s530 = sand.u32 %s249, 1
        %s531 = smul.addr %s530, 256
        %s532 = scalar_lea.vmem [#allocation13], %s531
        %p533 = pneg %p288
        %p534 = pneg %p285
        %s535 = sand.u32 %s37, 1
        %s536 = scalar_lea.sflag [#allocation15], %s535
        %s537 = sand.u32 %s275, 1
        %s538 = smul.addr %s537, 256
        %s539 = scalar_lea.vmem [#allocation14], %s538
        %p540 = pneg %p314
        %p541 = pneg %p311
        %s542 = sand.u32 %s37, 1
        %s543 = scalar_lea.sflag [#allocation15], %s542
        %s544 = sand.u32 %s301, 1
        %s545 = smul.addr %s544, 256
        %s546 = scalar_lea.vmem [#allocation16], %s545
        %s547 = smul.u32 32, %s37
        %s548 = smul.u32 32, %s37
        %s549 = smul.u32 32, %s37
        %s550 = smul.u32 32, %s37
        %s551 = smul.u32 32, %s37
        %s552 = smul.u32 32, %s37
        %v553 = vld [vmem:[%s458] sm:$0xff]
        %v554 = vld [vmem:[%s458 + $0x8] sm:$0xff]
        %v555 = vld [vmem:[%s458 + $0x10] sm:$0xff]
        %v556 = vld [vmem:[%s458 + $0x18] sm:$0xff]
        %v557 = vld [vmem:[%s458 + $0x20] sm:$0xff]
        %v558 = vld [vmem:[%s458 + $0x28] sm:$0xff]
        %v559 = vld [vmem:[%s458 + $0x30] sm:$0xff]
        %v560 = vld [vmem:[%s458 + $0x38] sm:$0xff]
        %v561 = vld [vmem:[%s458 + $0x40] sm:$0xff]
        %v562 = vld [vmem:[%s458 + $0x48] sm:$0xff]
        %v563 = vld [vmem:[%s458 + $0x50] sm:$0xff]
        %v564 = vld [vmem:[%s458 + $0x58] sm:$0xff]
        %v565 = vld [vmem:[%s458 + $0x60] sm:$0xff]
        %v566 = vld [vmem:[%s458 + $0x68] sm:$0xff]
        %v567 = vld [vmem:[%s458 + $0x70] sm:$0xff]
        %v568 = vld [vmem:[%s458 + $0x78] sm:$0xff]
        %v569 = vld [vmem:[%s458 + $0x80] sm:$0xff]
        %v570 = vld [vmem:[%s458 + $0x88] sm:$0xff]
        %v571 = vld [vmem:[%s458 + $0x90] sm:$0xff]
        %v572 = vld [vmem:[%s458 + $0x98] sm:$0xff]
        %v573 = vld [vmem:[%s458 + $0xa0] sm:$0xff]
        %v574 = vld [vmem:[%s458 + $0xa8] sm:$0xff]
        %v575 = vld [vmem:[%s458 + $0xb0] sm:$0xff]
        %v576 = vld [vmem:[%s458 + $0xb8] sm:$0xff]
        %v577 = vld [vmem:[%s458 + $0xc0] sm:$0xff]
        %v578 = vld [vmem:[%s458 + $0xc8] sm:$0xff]
        %v579 = vld [vmem:[%s458 + $0xd0] sm:$0xff]
        %v580 = vld [vmem:[%s458 + $0xd8] sm:$0xff]
        %v581 = vld [vmem:[%s458 + $0xe0] sm:$0xff]
        %v582 = vld [vmem:[%s458 + $0xe8] sm:$0xff]
        %v583 = vld [vmem:[%s458 + $0xf0] sm:$0xff]
        %v584 = vld [vmem:[%s458 + $0xf8] sm:$0xff]
        %v585 = vld [vmem:[%s458 + $0x100] sm:$0xff]
        %v586 = vld [vmem:[%s458 + $0x108] sm:$0xff]
        %v587 = vld [vmem:[%s458 + $0x110] sm:$0xff]
        %v588 = vld [vmem:[%s458 + $0x118] sm:$0xff]
        %v589 = vld [vmem:[%s458 + $0x120] sm:$0xff]
        %v590 = vld [vmem:[%s458 + $0x128] sm:$0xff]
        %v591 = vld [vmem:[%s458 + $0x130] sm:$0xff]
        %v592 = vld [vmem:[%s458 + $0x138] sm:$0xff]
        %v593 = vld [vmem:[%s458 + $0x140] sm:$0xff]
        %v594 = vld [vmem:[%s458 + $0x148] sm:$0xff]
        %v595 = vld [vmem:[%s458 + $0x150] sm:$0xff]
        %v596 = vld [vmem:[%s458 + $0x158] sm:$0xff]
        %v597 = vld [vmem:[%s458 + $0x160] sm:$0xff]
        %v598 = vld [vmem:[%s458 + $0x168] sm:$0xff]
        %v599 = vld [vmem:[%s458 + $0x170] sm:$0xff]
        %v600 = vld [vmem:[%s458 + $0x178] sm:$0xff]
        %v601 = vld [vmem:[%s458 + $0x180] sm:$0xff]
        %v602 = vld [vmem:[%s458 + $0x188] sm:$0xff]
        %v603 = vld [vmem:[%s458 + $0x190] sm:$0xff]
        %v604 = vld [vmem:[%s458 + $0x198] sm:$0xff]
        %v605 = vld [vmem:[%s458 + $0x1a0] sm:$0xff]
        %v606 = vld [vmem:[%s458 + $0x1a8] sm:$0xff]
        %v607 = vld [vmem:[%s458 + $0x1b0] sm:$0xff]
        %v608 = vld [vmem:[%s458 + $0x1b8] sm:$0xff]
        %v609 = vld [vmem:[%s458 + $0x1c0] sm:$0xff]
        %v610 = vld [vmem:[%s458 + $0x1c8] sm:$0xff]
        %v611 = vld [vmem:[%s458 + $0x1d0] sm:$0xff]
        %v612 = vld [vmem:[%s458 + $0x1d8] sm:$0xff]
        %v613 = vld [vmem:[%s458 + $0x1e0] sm:$0xff]
        %v614 = vld [vmem:[%s458 + $0x1e8] sm:$0xff]
        %v615 = vld [vmem:[%s458 + $0x1f0] sm:$0xff]
        %v616 = vld [vmem:[%s458 + $0x1f8] sm:$0xff]
        %v617 = vld [vmem:[%s458 + $0x200] sm:$0xff]
        %v618 = vld [vmem:[%s458 + $0x208] sm:$0xff]
        %v619 = vld [vmem:[%s458 + $0x210] sm:$0xff]
        %v620 = vld [vmem:[%s458 + $0x218] sm:$0xff]
        %v621 = vld [vmem:[%s458 + $0x220] sm:$0xff]
        %v622 = vld [vmem:[%s458 + $0x228] sm:$0xff]
        %v623 = vld [vmem:[%s458 + $0x230] sm:$0xff]
        %v624 = vld [vmem:[%s458 + $0x238] sm:$0xff]
        %v625 = vld [vmem:[%s458 + $0x240] sm:$0xff]
        %v626 = vld [vmem:[%s458 + $0x248] sm:$0xff]
        %v627 = vld [vmem:[%s458 + $0x250] sm:$0xff]
        %v628 = vld [vmem:[%s458 + $0x258] sm:$0xff]
        %v629 = vld [vmem:[%s458 + $0x260] sm:$0xff]
        %v630 = vld [vmem:[%s458 + $0x268] sm:$0xff]
        %v631 = vld [vmem:[%s458 + $0x270] sm:$0xff]
        %v632 = vld [vmem:[%s458 + $0x278] sm:$0xff]
        %v633 = vld [vmem:[%s458 + $0x280] sm:$0xff]
        %v634 = vld [vmem:[%s458 + $0x288] sm:$0xff]
        %v635 = vld [vmem:[%s458 + $0x290] sm:$0xff]
        %v636 = vld [vmem:[%s458 + $0x298] sm:$0xff]
        %v637 = vld [vmem:[%s458 + $0x2a0] sm:$0xff]
        %v638 = vld [vmem:[%s458 + $0x2a8] sm:$0xff]
        %v639 = vld [vmem:[%s458 + $0x2b0] sm:$0xff]
        %v640 = vld [vmem:[%s458 + $0x2b8] sm:$0xff]
        %v641 = vld [vmem:[%s458 + $0x2c0] sm:$0xff]
        %v642 = vld [vmem:[%s458 + $0x2c8] sm:$0xff]
        %v643 = vld [vmem:[%s458 + $0x2d0] sm:$0xff]
        %v644 = vld [vmem:[%s458 + $0x2d8] sm:$0xff]
        %v645 = vld [vmem:[%s458 + $0x2e0] sm:$0xff]
        %v646 = vld [vmem:[%s458 + $0x2e8] sm:$0xff]
        %v647 = vld [vmem:[%s458 + $0x2f0] sm:$0xff]
        %v648 = vld [vmem:[%s458 + $0x2f8] sm:$0xff]
        %v649 = vld [vmem:[%s458 + $0x300] sm:$0xff]
        %v650 = vld [vmem:[%s458 + $0x308] sm:$0xff]
        %v651 = vld [vmem:[%s458 + $0x310] sm:$0xff]
        %v652 = vld [vmem:[%s458 + $0x318] sm:$0xff]
        %v653 = vld [vmem:[%s458 + $0x320] sm:$0xff]
        %v654 = vld [vmem:[%s458 + $0x328] sm:$0xff]
        %v655 = vld [vmem:[%s458 + $0x330] sm:$0xff]
        %v656 = vld [vmem:[%s458 + $0x338] sm:$0xff]
        %v657 = vld [vmem:[%s458 + $0x340] sm:$0xff]
        %v658 = vld [vmem:[%s458 + $0x348] sm:$0xff]
        %v659 = vld [vmem:[%s458 + $0x350] sm:$0xff]
        %v660 = vld [vmem:[%s458 + $0x358] sm:$0xff]
        %v661 = vld [vmem:[%s458 + $0x360] sm:$0xff]
        %v662 = vld [vmem:[%s458 + $0x368] sm:$0xff]
        %v663 = vld [vmem:[%s458 + $0x370] sm:$0xff]
        %v664 = vld [vmem:[%s458 + $0x378] sm:$0xff]
        %v665 = vld [vmem:[%s458 + $0x380] sm:$0xff]
        %v666 = vld [vmem:[%s458 + $0x388] sm:$0xff]
        %v667 = vld [vmem:[%s458 + $0x390] sm:$0xff]
        %v668 = vld [vmem:[%s458 + $0x398] sm:$0xff]
        %v669 = vld [vmem:[%s458 + $0x3a0] sm:$0xff]
        %v670 = vld [vmem:[%s458 + $0x3a8] sm:$0xff]
        %v671 = vld [vmem:[%s458 + $0x3b0] sm:$0xff]
        %v672 = vld [vmem:[%s458 + $0x3b8] sm:$0xff]
        %v673 = vld [vmem:[%s458 + $0x3c0] sm:$0xff]
        %v674 = vld [vmem:[%s458 + $0x3c8] sm:$0xff]
        %v675 = vld [vmem:[%s458 + $0x3d0] sm:$0xff]
        %v676 = vld [vmem:[%s458 + $0x3d8] sm:$0xff]
        %v677 = vld [vmem:[%s458 + $0x3e0] sm:$0xff]
        %v678 = vld [vmem:[%s458 + $0x3e8] sm:$0xff]
        %v679 = vld [vmem:[%s458 + $0x3f0] sm:$0xff]
        %v680 = vld [vmem:[%s458 + $0x3f8] sm:$0xff]
        %v681 = vld [vmem:[#allocation8] sm:$0xff]
        %v682 = vld [vmem:[#allocation8 + $0x8] sm:$0xff]
        %v683 = vld [vmem:[#allocation8 + $0x10] sm:$0xff]
        %v684 = vld [vmem:[#allocation8 + $0x18] sm:$0xff]
        %v685 = vld [vmem:[#allocation8 + $0x20] sm:$0xff]
        %v686 = vld [vmem:[#allocation8 + $0x28] sm:$0xff]
        %v687 = vld [vmem:[#allocation8 + $0x30] sm:$0xff]
        %v688 = vld [vmem:[#allocation8 + $0x38] sm:$0xff]
        %v689 = vld [vmem:[#allocation8 + $0x40] sm:$0xff]
        %v690 = vld [vmem:[#allocation8 + $0x48] sm:$0xff]
        %v691 = vld [vmem:[#allocation8 + $0x50] sm:$0xff]
        %v692 = vld [vmem:[#allocation8 + $0x58] sm:$0xff]
        %v693 = vld [vmem:[#allocation8 + $0x60] sm:$0xff]
        %v694 = vld [vmem:[#allocation8 + $0x68] sm:$0xff]
        %v695 = vld [vmem:[#allocation8 + $0x70] sm:$0xff]
        %v696 = vld [vmem:[#allocation8 + $0x78] sm:$0xff]
        %v697 = vld [vmem:[#allocation8 + $0x80] sm:$0xff]
        %v698 = vld [vmem:[#allocation8 + $0x88] sm:$0xff]
        %v699 = vld [vmem:[#allocation8 + $0x90] sm:$0xff]
        %v700 = vld [vmem:[#allocation8 + $0x98] sm:$0xff]
        %v701 = vld [vmem:[#allocation8 + $0xa0] sm:$0xff]
        %v702 = vld [vmem:[#allocation8 + $0xa8] sm:$0xff]
        %v703 = vld [vmem:[#allocation8 + $0xb0] sm:$0xff]
        %v704 = vld [vmem:[#allocation8 + $0xb8] sm:$0xff]
        %v705 = vld [vmem:[#allocation8 + $0xc0] sm:$0xff]
        %v706 = vld [vmem:[#allocation8 + $0xc8] sm:$0xff]
        %v707 = vld [vmem:[#allocation8 + $0xd0] sm:$0xff]
        %v708 = vld [vmem:[#allocation8 + $0xd8] sm:$0xff]
        %v709 = vld [vmem:[#allocation8 + $0xe0] sm:$0xff]
        %v710 = vld [vmem:[#allocation8 + $0xe8] sm:$0xff]
        %v711 = vld [vmem:[#allocation8 + $0xf0] sm:$0xff]
        %v712 = vld [vmem:[#allocation8 + $0xf8] sm:$0xff]
        %v713 = vld [vmem:[#allocation8 + $0x100] sm:$0xff]
        %v714 = vld [vmem:[#allocation8 + $0x108] sm:$0xff]
        %v715 = vld [vmem:[#allocation8 + $0x110] sm:$0xff]
        %v716 = vld [vmem:[#allocation8 + $0x118] sm:$0xff]
        %v717 = vld [vmem:[#allocation8 + $0x120] sm:$0xff]
        %v718 = vld [vmem:[#allocation8 + $0x128] sm:$0xff]
        %v719 = vld [vmem:[#allocation8 + $0x130] sm:$0xff]
        %v720 = vld [vmem:[#allocation8 + $0x138] sm:$0xff]
        %v721 = vld [vmem:[#allocation8 + $0x140] sm:$0xff]
        %v722 = vld [vmem:[#allocation8 + $0x148] sm:$0xff]
        %v723 = vld [vmem:[#allocation8 + $0x150] sm:$0xff]
        %v724 = vld [vmem:[#allocation8 + $0x158] sm:$0xff]
        %v725 = vld [vmem:[#allocation8 + $0x160] sm:$0xff]
        %v726 = vld [vmem:[#allocation8 + $0x168] sm:$0xff]
        %v727 = vld [vmem:[#allocation8 + $0x170] sm:$0xff]
        %v728 = vld [vmem:[#allocation8 + $0x178] sm:$0xff]
        %v729 = vld [vmem:[#allocation8 + $0x180] sm:$0xff]
        %v730 = vld [vmem:[#allocation8 + $0x188] sm:$0xff]
        %v731 = vld [vmem:[#allocation8 + $0x190] sm:$0xff]
        %v732 = vld [vmem:[#allocation8 + $0x198] sm:$0xff]
        %v733 = vld [vmem:[#allocation8 + $0x1a0] sm:$0xff]
        %v734 = vld [vmem:[#allocation8 + $0x1a8] sm:$0xff]
        %v735 = vld [vmem:[#allocation8 + $0x1b0] sm:$0xff]
        %v736 = vld [vmem:[#allocation8 + $0x1b8] sm:$0xff]
        %v737 = vld [vmem:[#allocation8 + $0x1c0] sm:$0xff]
        %v738 = vld [vmem:[#allocation8 + $0x1c8] sm:$0xff]
        %v739 = vld [vmem:[#allocation8 + $0x1d0] sm:$0xff]
        %v740 = vld [vmem:[#allocation8 + $0x1d8] sm:$0xff]
        %v741 = vld [vmem:[#allocation8 + $0x1e0] sm:$0xff]
        %v742 = vld [vmem:[#allocation8 + $0x1e8] sm:$0xff]
        %v743 = vld [vmem:[#allocation8 + $0x1f0] sm:$0xff]
        %v744 = vld [vmem:[#allocation8 + $0x1f8] sm:$0xff]
        %v745 = vld [vmem:[%s4] sm:$0x1]
        %v747 = vlaneseq
        %v748 = vshrl.u32 %v747, 7
        %v749 = vsub.s32 0, %v748
        %v750 = vrot.slane %v745, %v749
        %752 = vmatprep.subr.mxu0 0.0
        %753 = vmatpush1.msra.mxu0 %v681
        %754 = vmatprep.subr.mxu0 0.0
        %755 = vmatpush1.msra.mxu0 %v682
        %756 = vmatprep.subr.mxu0 0.0
        %757 = vmatpush1.msra.mxu0 %v683
        %758 = vmatprep.subr.mxu0 0.0
        %759 = vmatpush1.msra.mxu0 %v684
        %760 = vmatprep.subr.mxu0 0.0
        %761 = vmatpush1.msra.mxu0 %v685
        %762 = vmatprep.subr.mxu0 0.0
        %763 = vmatpush1.msra.mxu0 %v686
        %764 = vmatprep.subr.mxu0 0.0
        %765 = vmatpush1.msra.mxu0 %v687
        %766 = vmatprep.subr.mxu0 0.0
        %767 = vmatpush1.msra.mxu0 %v688
        %768 = vmatprep.subr.mxu0 0.0
        %769 = vmatpush1.msra.mxu0 %v689
        %770 = vmatprep.subr.mxu0 0.0
        %771 = vmatpush1.msra.mxu0 %v690
        %772 = vmatprep.subr.mxu0 0.0
        %773 = vmatpush1.msra.mxu0 %v691
        %774 = vmatprep.subr.mxu0 0.0
        %775 = vmatpush1.msra.mxu0 %v692
        %776 = vmatprep.subr.mxu0 0.0
        %777 = vmatpush1.msra.mxu0 %v693
        %778 = vmatprep.subr.mxu0 0.0
        %779 = vmatpush1.msra.mxu0 %v694
        %780 = vmatprep.subr.mxu0 0.0
        %781 = vmatpush1.msra.mxu0 %v695
        %782 = vmatprep.subr.mxu0 0.0
        %783 = vmatpush1.msra.mxu0 %v696
        %784 = vmatprep.subr.mxu0 0.0
        %785 = vmatpush1.msra.mxu0 %v697
        %786 = vmatprep.subr.mxu0 0.0
        %787 = vmatpush1.msra.mxu0 %v698
        %788 = vmatprep.subr.mxu0 0.0
        %789 = vmatpush1.msra.mxu0 %v699
        %790 = vmatprep.subr.mxu0 0.0
        %791 = vmatpush1.msra.mxu0 %v700
        %792 = vmatprep.subr.mxu0 0.0
        %793 = vmatpush1.msra.mxu0 %v701
        %794 = vmatprep.subr.mxu0 0.0
        %795 = vmatpush1.msra.mxu0 %v702
        %796 = vmatprep.subr.mxu0 0.0
        %797 = vmatpush1.msra.mxu0 %v703
        %798 = vmatprep.subr.mxu0 0.0
        %799 = vmatpush1.msra.mxu0 %v704
        %800 = vmatprep.subr.mxu0 0.0
        %801 = vmatpush1.msra.mxu0 %v705
        %802 = vmatprep.subr.mxu0 0.0
        %803 = vmatpush1.msra.mxu0 %v706
        %804 = vmatprep.subr.mxu0 0.0
        %805 = vmatpush1.msra.mxu0 %v707
        %806 = vmatprep.subr.mxu0 0.0
        %807 = vmatpush1.msra.mxu0 %v708
        %808 = vmatprep.subr.mxu0 0.0
        %809 = vmatpush1.msra.mxu0 %v709
        %810 = vmatprep.subr.mxu0 0.0
        %811 = vmatpush1.msra.mxu0 %v710
        %812 = vmatprep.subr.mxu0 0.0
        %813 = vmatpush1.msra.mxu0 %v711
        %814 = vmatprep.subr.mxu0 0.0
        %815 = vmatpush1.msra.mxu0 %v712
        %816 = vmatprep.mubr.f32.mxu0 %v554
        %817 = vmatmul.mubr.f32.gmra.mrb[0].mxu0 %v553
        %v818 = vpop.f32.mrb[0].mxu0
        %v819 = vadd.f32 %v750, %v818
        %v820 = vpop.f32.mrb[0].mxu0
        %821 = vmatprep.mubr.f32.mxu0 %v558
        %822 = vmatmul.mubr.f32.gmra.mrb[0].mxu0 %v557
        %v823 = vpop.f32.mrb[0].mxu0
        %v824 = vadd.f32 %v750, %v823
        %v825 = vpop.f32.mrb[0].mxu0
        %826 = vmatprep.mubr.f32.mxu0 %v562
        %827 = vmatmul.mubr.f32.gmra.mrb[0].mxu0 %v561
        %v828 = vpop.f32.mrb[0].mxu0
        %v829 = vadd.f32 %v750, %v828
        %v830 = vpop.f32.mrb[0].mxu0
        %831 = vmatprep.mubr.f32.mxu0 %v566
        %832 = vmatmul.mubr.f32.gmra.mrb[0].mxu0 %v565
        %v833 = vpop.f32.mrb[0].mxu0
        %v834 = vadd.f32 %v750, %v833
        %v835 = vpop.f32.mrb[0].mxu0
        %836 = vmatprep.mubr.f32.mxu0 %v570
        %837 = vmatmul.mubr.f32.gmra.mrb[0].mxu0 %v569
        %v838 = vpop.f32.mrb[0].mxu0
        %v839 = vadd.f32 %v750, %v838
        %v840 = vpop.f32.mrb[0].mxu0
        %841 = vmatprep.mubr.f32.mxu0 %v574
        %842 = vmatmul.mubr.f32.gmra.mrb[0].mxu0 %v573
        %v843 = vpop.f32.mrb[0].mxu0
        %v844 = vadd.f32 %v750, %v843
        %v845 = vpop.f32.mrb[0].mxu0
        %846 = vmatprep.mubr.f32.mxu0 %v578
        %847 = vmatmul.mubr.f32.gmra.mrb[0].mxu0 %v577
        %v848 = vpop.f32.mrb[0].mxu0
        %v849 = vadd.f32 %v750, %v848
        %v850 = vpop.f32.mrb[0].mxu0
        %851 = vmatprep.mubr.f32.mxu0 %v582
        %852 = vmatmul.mubr.f32.gmra.mrb[0].mxu0 %v581
        %v853 = vpop.f32.mrb[0].mxu0
        %v854 = vadd.f32 %v750, %v853
        %v855 = vpop.f32.mrb[0].mxu0
        %856 = vmatprep.mubr.f32.mxu0 %v586
        %857 = vmatmul.mubr.f32.gmra.mrb[0].mxu0 %v585
        %v858 = vpop.f32.mrb[0].mxu0
        %v859 = vadd.f32 %v750, %v858
        %v860 = vpop.f32.mrb[0].mxu0
        %861 = vmatprep.mubr.f32.mxu0 %v590
        %862 = vmatmul.mubr.f32.gmra.mrb[0].mxu0 %v589
        %v863 = vpop.f32.mrb[0].mxu0
        %v864 = vadd.f32 %v750, %v863
        %v865 = vpop.f32.mrb[0].mxu0
        %866 = vmatprep.mubr.f32.mxu0 %v594
        %867 = vmatmul.mubr.f32.gmra.mrb[0].mxu0 %v593
        %v868 = vpop.f32.mrb[0].mxu0
        %v869 = vadd.f32 %v750, %v868
        %v870 = vpop.f32.mrb[0].mxu0
        %871 = vmatprep.mubr.f32.mxu0 %v598
        %872 = vmatmul.mubr.f32.gmra.mrb[0].mxu0 %v597
        %v873 = vpop.f32.mrb[0].mxu0
        %v874 = vadd.f32 %v750, %v873
        %v875 = vpop.f32.mrb[0].mxu0
        %876 = vmatprep.mubr.f32.mxu0 %v602
        %877 = vmatmul.mubr.f32.gmra.mrb[0].mxu0 %v601
        %v878 = vpop.f32.mrb[0].mxu0
        %v879 = vadd.f32 %v750, %v878
        %v880 = vpop.f32.mrb[0].mxu0
        %881 = vmatprep.mubr.f32.mxu0 %v606
        %882 = vmatmul.mubr.f32.gmra.mrb[0].mxu0 %v605
        %v883 = vpop.f32.mrb[0].mxu0
        %v884 = vadd.f32 %v750, %v883
        %v885 = vpop.f32.mrb[0].mxu0
        %886 = vmatprep.mubr.f32.mxu0 %v610
        %887 = vmatmul.mubr.f32.gmra.mrb[0].mxu0 %v609
        %v888 = vpop.f32.mrb[0].mxu0
        %v889 = vadd.f32 %v750, %v888
        %v890 = vpop.f32.mrb[0].mxu0
        %891 = vmatprep.mubr.f32.mxu0 %v614
        %892 = vmatmul.mubr.f32.gmra.mrb[0].mxu0 %v613
        %v893 = vpop.f32.mrb[0].mxu0
        %v894 = vadd.f32 %v750, %v893
        %v895 = vpop.f32.mrb[0].mxu0
        %896 = vmatprep.mubr.f32.mxu0 %v618
        %897 = vmatmul.mubr.f32.gmra.mrb[0].mxu0 %v617
        %v898 = vpop.f32.mrb[0].mxu0
        %v899 = vadd.f32 %v750, %v898
        %v900 = vpop.f32.mrb[0].mxu0
        %901 = vmatprep.mubr.f32.mxu0 %v622
        %902 = vmatmul.mubr.f32.gmra.mrb[0].mxu0 %v621
        %v903 = vpop.f32.mrb[0].mxu0
        %v904 = vadd.f32 %v750, %v903
        %v905 = vpop.f32.mrb[0].mxu0
        %906 = vmatprep.mubr.f32.mxu0 %v626
        %907 = vmatmul.mubr.f32.gmra.mrb[0].mxu0 %v625
        %v908 = vpop.f32.mrb[0].mxu0
        %v909 = vadd.f32 %v750, %v908
        %v910 = vpop.f32.mrb[0].mxu0
        %911 = vmatprep.mubr.f32.mxu0 %v630
        %912 = vmatmul.mubr.f32.gmra.mrb[0].mxu0 %v629
        %v913 = vpop.f32.mrb[0].mxu0
        %v914 = vadd.f32 %v750, %v913
        %v915 = vpop.f32.mrb[0].mxu0
        %916 = vmatprep.mubr.f32.mxu0 %v634
        %917 = vmatmul.mubr.f32.gmra.mrb[0].mxu0 %v633
        %v918 = vpop.f32.mrb[0].mxu0
        %v919 = vadd.f32 %v750, %v918
        %v920 = vpop.f32.mrb[0].mxu0
        %921 = vmatprep.mubr.f32.mxu0 %v638
        %922 = vmatmul.mubr.f32.gmra.mrb[0].mxu0 %v637
        %v923 = vpop.f32.mrb[0].mxu0
        %v924 = vadd.f32 %v750, %v923
        %v925 = vpop.f32.mrb[0].mxu0
        %926 = vmatprep.mubr.f32.mxu0 %v642
        %927 = vmatmul.mubr.f32.gmra.mrb[0].mxu0 %v641
        %v928 = vpop.f32.mrb[0].mxu0
        %v929 = vadd.f32 %v750, %v928
        %v930 = vpop.f32.mrb[0].mxu0
        %931 = vmatprep.mubr.f32.mxu0 %v646
        %932 = vmatmul.mubr.f32.gmra.mrb[0].mxu0 %v645
        %v933 = vpop.f32.mrb[0].mxu0
        %v934 = vadd.f32 %v750, %v933
        %v935 = vpop.f32.mrb[0].mxu0
        %936 = vmatprep.mubr.f32.mxu0 %v650
        %937 = vmatmul.mubr.f32.gmra.mrb[0].mxu0 %v649
        %v938 = vpop.f32.mrb[0].mxu0
        %v939 = vadd.f32 %v750, %v938
        %v940 = vpop.f32.mrb[0].mxu0
        %941 = vmatprep.mubr.f32.mxu0 %v654
        %942 = vmatmul.mubr.f32.gmra.mrb[0].mxu0 %v653
        %v943 = vpop.f32.mrb[0].mxu0
        %v944 = vadd.f32 %v750, %v943
        %v945 = vpop.f32.mrb[0].mxu0
        %946 = vmatprep.mubr.f32.mxu0 %v658
        %947 = vmatmul.mubr.f32.gmra.mrb[0].mxu0 %v657
        %v948 = vpop.f32.mrb[0].mxu0
        %v949 = vadd.f32 %v750, %v948
        %v950 = vpop.f32.mrb[0].mxu0
        %951 = vmatprep.mubr.f32.mxu0 %v662
        %952 = vmatmul.mubr.f32.gmra.mrb[0].mxu0 %v661
        %v953 = vpop.f32.mrb[0].mxu0
        %v954 = vadd.f32 %v750, %v953
        %v955 = vpop.f32.mrb[0].mxu0
        %956 = vmatprep.mubr.f32.mxu0 %v666
        %957 = vmatmul.mubr.f32.gmra.mrb[0].mxu0 %v665
        %v958 = vpop.f32.mrb[0].mxu0
        %v959 = vadd.f32 %v750, %v958
        %v960 = vpop.f32.mrb[0].mxu0
        %961 = vmatprep.mubr.f32.mxu0 %v670
        %962 = vmatmul.mubr.f32.gmra.mrb[0].mxu0 %v669
        %v963 = vpop.f32.mrb[0].mxu0
        %v964 = vadd.f32 %v750, %v963
        %v965 = vpop.f32.mrb[0].mxu0
        %966 = vmatprep.mubr.f32.mxu0 %v674
        %967 = vmatmul.mubr.f32.gmra.mrb[0].mxu0 %v673
        %v968 = vpop.f32.mrb[0].mxu0
        %v969 = vadd.f32 %v750, %v968
        %v970 = vpop.f32.mrb[0].mxu0
        %971 = vmatprep.mubr.f32.mxu0 %v678
        %972 = vmatmul.mubr.f32.gmra.mrb[0].mxu0 %v677
        %v973 = vpop.f32.mrb[0].mxu0
        %v974 = vadd.f32 %v750, %v973
        %v975 = vpop.f32.mrb[0].mxu0
        %976 = vdwg.mxu0
        %977 = vmatprep.subr.mxu0 0.0
        %978 = vmatpush1.msra.mxu0 %v713
        %979 = vmatprep.subr.mxu0 0.0
        %980 = vmatpush1.msra.mxu0 %v714
        %981 = vmatprep.subr.mxu0 0.0
        %982 = vmatpush1.msra.mxu0 %v715
        %983 = vmatprep.subr.mxu0 0.0
        %984 = vmatpush1.msra.mxu0 %v716
        %985 = vmatprep.subr.mxu0 0.0
        %986 = vmatpush1.msra.mxu0 %v717
        %987 = vmatprep.subr.mxu0 0.0
        %988 = vmatpush1.msra.mxu0 %v718
        %989 = vmatprep.subr.mxu0 0.0
        %990 = vmatpush1.msra.mxu0 %v719
        %991 = vmatprep.subr.mxu0 0.0
        %992 = vmatpush1.msra.mxu0 %v720
        %993 = vmatprep.subr.mxu0 0.0
        %994 = vmatpush1.msra.mxu0 %v721
        %995 = vmatprep.subr.mxu0 0.0
        %996 = vmatpush1.msra.mxu0 %v722
        %997 = vmatprep.subr.mxu0 0.0
        %998 = vmatpush1.msra.mxu0 %v723
        %999 = vmatprep.subr.mxu0 0.0
        %1000 = vmatpush1.msra.mxu0 %v724
        %1001 = vmatprep.subr.mxu0 0.0
        %1002 = vmatpush1.msra.mxu0 %v725
        %1003 = vmatprep.subr.mxu0 0.0
        %1004 = vmatpush1.msra.mxu0 %v726
        %1005 = vmatprep.subr.mxu0 0.0
        %1006 = vmatpush1.msra.mxu0 %v727
        %1007 = vmatprep.subr.mxu0 0.0
        %1008 = vmatpush1.msra.mxu0 %v728
        %1009 = vmatprep.subr.mxu0 0.0
        %1010 = vmatpush1.msra.mxu0 %v729
        %1011 = vmatprep.subr.mxu0 0.0
        %1012 = vmatpush1.msra.mxu0 %v730
        %1013 = vmatprep.subr.mxu0 0.0
        %1014 = vmatpush1.msra.mxu0 %v731
        %1015 = vmatprep.subr.mxu0 0.0
        %1016 = vmatpush1.msra.mxu0 %v732
        %1017 = vmatprep.subr.mxu0 0.0
        %1018 = vmatpush1.msra.mxu0 %v733
        %1019 = vmatprep.subr.mxu0 0.0
        %1020 = vmatpush1.msra.mxu0 %v734
        %1021 = vmatprep.subr.mxu0 0.0
        %1022 = vmatpush1.msra.mxu0 %v735
        %1023 = vmatprep.subr.mxu0 0.0
        %1024 = vmatpush1.msra.mxu0 %v736
        %1025 = vmatprep.subr.mxu0 0.0
        %1026 = vmatpush1.msra.mxu0 %v737
        %1027 = vmatprep.subr.mxu0 0.0
        %1028 = vmatpush1.msra.mxu0 %v738
        %1029 = vmatprep.subr.mxu0 0.0
        %1030 = vmatpush1.msra.mxu0 %v739
        %1031 = vmatprep.subr.mxu0 0.0
        %1032 = vmatpush1.msra.mxu0 %v740
        %1033 = vmatprep.subr.mxu0 0.0
        %1034 = vmatpush1.msra.mxu0 %v741
        %1035 = vmatprep.subr.mxu0 0.0
        %1036 = vmatpush1.msra.mxu0 %v742
        %1037 = vmatprep.subr.mxu0 0.0
        %1038 = vmatpush1.msra.mxu0 %v743
        %1039 = vmatprep.subr.mxu0 0.0
        %1040 = vmatpush1.msra.mxu0 %v744
        %1041 = vmatprep.mubr.f32.mxu0 %v556
        %1042 = vmatmul.mubr.f32.gmra.mrb[0].mxu0 %v555
        %v1043 = vpop.f32.mrb[0].mxu0
        %v1044 = vadd.f32 %v819, %v1043
        %v1045 = vpop.f32.mrb[0].mxu0
        %1046 = vmatprep.mubr.f32.mxu0 %v560
        %1047 = vmatmul.mubr.f32.gmra.mrb[0].mxu0 %v559
        %v1048 = vpop.f32.mrb[0].mxu0
        %v1049 = vadd.f32 %v824, %v1048
        %v1050 = vpop.f32.mrb[0].mxu0
        %1051 = vmatprep.mubr.f32.mxu0 %v564
        %1052 = vmatmul.mubr.f32.gmra.mrb[0].mxu0 %v563
        %v1053 = vpop.f32.mrb[0].mxu0
        %v1054 = vadd.f32 %v829, %v1053
        %v1055 = vpop.f32.mrb[0].mxu0
        %1056 = vmatprep.mubr.f32.mxu0 %v568
        %1057 = vmatmul.mubr.f32.gmra.mrb[0].mxu0 %v567
        %v1058 = vpop.f32.mrb[0].mxu0
        %v1059 = vadd.f32 %v834, %v1058
        %v1060 = vpop.f32.mrb[0].mxu0
        %1061 = vmatprep.mubr.f32.mxu0 %v572
        %1062 = vmatmul.mubr.f32.gmra.mrb[0].mxu0 %v571
        %v1063 = vpop.f32.mrb[0].mxu0
        %v1064 = vadd.f32 %v839, %v1063
        %v1065 = vpop.f32.mrb[0].mxu0
        %1066 = vmatprep.mubr.f32.mxu0 %v576
        %1067 = vmatmul.mubr.f32.gmra.mrb[0].mxu0 %v575
        %v1068 = vpop.f32.mrb[0].mxu0
        %v1069 = vadd.f32 %v844, %v1068
        %v1070 = vpop.f32.mrb[0].mxu0
        %1071 = vmatprep.mubr.f32.mxu0 %v580
        %1072 = vmatmul.mubr.f32.gmra.mrb[0].mxu0 %v579
        %v1073 = vpop.f32.mrb[0].mxu0
        %v1074 = vadd.f32 %v849, %v1073
        %v1075 = vpop.f32.mrb[0].mxu0
        %1076 = vmatprep.mubr.f32.mxu0 %v584
        %1077 = vmatmul.mubr.f32.gmra.mrb[0].mxu0 %v583
        %v1078 = vpop.f32.mrb[0].mxu0
        %v1079 = vadd.f32 %v854, %v1078
        %v1080 = vpop.f32.mrb[0].mxu0
        %1081 = vmatprep.mubr.f32.mxu0 %v588
        %1082 = vmatmul.mubr.f32.gmra.mrb[0].mxu0 %v587
        %v1083 = vpop.f32.mrb[0].mxu0
        %v1084 = vadd.f32 %v859, %v1083
        %v1085 = vpop.f32.mrb[0].mxu0
        %1086 = vmatprep.mubr.f32.mxu0 %v592
        %1087 = vmatmul.mubr.f32.gmra.mrb[0].mxu0 %v591
        %v1088 = vpop.f32.mrb[0].mxu0
        %v1089 = vadd.f32 %v864, %v1088
        %v1090 = vpop.f32.mrb[0].mxu0
        %1091 = vmatprep.mubr.f32.mxu0 %v596
        %1092 = vmatmul.mubr.f32.gmra.mrb[0].mxu0 %v595
        %v1093 = vpop.f32.mrb[0].mxu0
        %v1094 = vadd.f32 %v869, %v1093
        %v1095 = vpop.f32.mrb[0].mxu0
        %1096 = vmatprep.mubr.f32.mxu0 %v600
        %1097 = vmatmul.mubr.f32.gmra.mrb[0].mxu0 %v599
        %v1098 = vpop.f32.mrb[0].mxu0
        %v1099 = vadd.f32 %v874, %v1098
        %v1100 = vpop.f32.mrb[0].mxu0
        %1101 = vmatprep.mubr.f32.mxu0 %v604
        %1102 = vmatmul.mubr.f32.gmra.mrb[0].mxu0 %v603
        %v1103 = vpop.f32.mrb[0].mxu0
        %v1104 = vadd.f32 %v879, %v1103
        %v1105 = vpop.f32.mrb[0].mxu0
        %1106 = vmatprep.mubr.f32.mxu0 %v608
        %1107 = vmatmul.mubr.f32.gmra.mrb[0].mxu0 %v607
        %v1108 = vpop.f32.mrb[0].mxu0
        %v1109 = vadd.f32 %v884, %v1108
        %v1110 = vpop.f32.mrb[0].mxu0
        %1111 = vmatprep.mubr.f32.mxu0 %v612
        %1112 = vmatmul.mubr.f32.gmra.mrb[0].mxu0 %v611
        %v1113 = vpop.f32.mrb[0].mxu0
        %v1114 = vadd.f32 %v889, %v1113
        %v1115 = vpop.f32.mrb[0].mxu0
        %1116 = vmatprep.mubr.f32.mxu0 %v616
        %1117 = vmatmul.mubr.f32.gmra.mrb[0].mxu0 %v615
        %v1118 = vpop.f32.mrb[0].mxu0
        %v1119 = vadd.f32 %v894, %v1118
        %v1120 = vpop.f32.mrb[0].mxu0
        %1121 = vmatprep.mubr.f32.mxu0 %v620
        %1122 = vmatmul.mubr.f32.gmra.mrb[0].mxu0 %v619
        %v1123 = vpop.f32.mrb[0].mxu0
        %v1124 = vadd.f32 %v899, %v1123
        %v1125 = vpop.f32.mrb[0].mxu0
        %1126 = vmatprep.mubr.f32.mxu0 %v624
        %1127 = vmatmul.mubr.f32.gmra.mrb[0].mxu0 %v623
        %v1128 = vpop.f32.mrb[0].mxu0
        %v1129 = vadd.f32 %v904, %v1128
        %v1130 = vpop.f32.mrb[0].mxu0
        %1131 = vmatprep.mubr.f32.mxu0 %v628
        %1132 = vmatmul.mubr.f32.gmra.mrb[0].mxu0 %v627
        %v1133 = vpop.f32.mrb[0].mxu0
        %v1134 = vadd.f32 %v909, %v1133
        %v1135 = vpop.f32.mrb[0].mxu0
        %1136 = vmatprep.mubr.f32.mxu0 %v632
        %1137 = vmatmul.mubr.f32.gmra.mrb[0].mxu0 %v631
        %v1138 = vpop.f32.mrb[0].mxu0
        %v1139 = vadd.f32 %v914, %v1138
        %v1140 = vpop.f32.mrb[0].mxu0
        %1141 = vmatprep.mubr.f32.mxu0 %v636
        %1142 = vmatmul.mubr.f32.gmra.mrb[0].mxu0 %v635
        %v1143 = vpop.f32.mrb[0].mxu0
        %v1144 = vadd.f32 %v919, %v1143
        %v1145 = vpop.f32.mrb[0].mxu0
        %1146 = vmatprep.mubr.f32.mxu0 %v640
        %1147 = vmatmul.mubr.f32.gmra.mrb[0].mxu0 %v639
        %v1148 = vpop.f32.mrb[0].mxu0
        %v1149 = vadd.f32 %v924, %v1148
        %v1150 = vpop.f32.mrb[0].mxu0
        %1151 = vmatprep.mubr.f32.mxu0 %v644
        %1152 = vmatmul.mubr.f32.gmra.mrb[0].mxu0 %v643
        %v1153 = vpop.f32.mrb[0].mxu0
        %v1154 = vadd.f32 %v929, %v1153
        %v1155 = vpop.f32.mrb[0].mxu0
        %1156 = vmatprep.mubr.f32.mxu0 %v648
        %1157 = vmatmul.mubr.f32.gmra.mrb[0].mxu0 %v647
        %v1158 = vpop.f32.mrb[0].mxu0
        %v1159 = vadd.f32 %v934, %v1158
        %v1160 = vpop.f32.mrb[0].mxu0
        %1161 = vmatprep.mubr.f32.mxu0 %v652
        %1162 = vmatmul.mubr.f32.gmra.mrb[0].mxu0 %v651
        %v1163 = vpop.f32.mrb[0].mxu0
        %v1164 = vadd.f32 %v939, %v1163
        %v1165 = vpop.f32.mrb[0].mxu0
        %1166 = vmatprep.mubr.f32.mxu0 %v656
        %1167 = vmatmul.mubr.f32.gmra.mrb[0].mxu0 %v655
        %v1168 = vpop.f32.mrb[0].mxu0
        %v1169 = vadd.f32 %v944, %v1168
        %v1170 = vpop.f32.mrb[0].mxu0
        %1171 = vmatprep.mubr.f32.mxu0 %v660
        %1172 = vmatmul.mubr.f32.gmra.mrb[0].mxu0 %v659
        %v1173 = vpop.f32.mrb[0].mxu0
        %v1174 = vadd.f32 %v949, %v1173
        %v1175 = vpop.f32.mrb[0].mxu0
        %1176 = vmatprep.mubr.f32.mxu0 %v664
        %1177 = vmatmul.mubr.f32.gmra.mrb[0].mxu0 %v663
        %v1178 = vpop.f32.mrb[0].mxu0
        %v1179 = vadd.f32 %v954, %v1178
        %v1180 = vpop.f32.mrb[0].mxu0
        %1181 = vmatprep.mubr.f32.mxu0 %v668
        %1182 = vmatmul.mubr.f32.gmra.mrb[0].mxu0 %v667
        %v1183 = vpop.f32.mrb[0].mxu0
        %v1184 = vadd.f32 %v959, %v1183
        %v1185 = vpop.f32.mrb[0].mxu0
        %1186 = vmatprep.mubr.f32.mxu0 %v672
        %1187 = vmatmul.mubr.f32.gmra.mrb[0].mxu0 %v671
        %v1188 = vpop.f32.mrb[0].mxu0
        %v1189 = vadd.f32 %v964, %v1188
        %v1190 = vpop.f32.mrb[0].mxu0
        %1191 = vmatprep.mubr.f32.mxu0 %v676
        %1192 = vmatmul.mubr.f32.gmra.mrb[0].mxu0 %v675
        %v1193 = vpop.f32.mrb[0].mxu0
        %v1194 = vadd.f32 %v969, %v1193
        %v1195 = vpop.f32.mrb[0].mxu0
        %1196 = vmatprep.mubr.f32.mxu0 %v680
        %1197 = vmatmul.mubr.f32.gmra.mrb[0].mxu0 %v679
        %v1198 = vpop.f32.mrb[0].mxu0
        %v1199 = vadd.f32 %v974, %v1198
        %v1200 = vpop.f32.mrb[0].mxu0
        %1201 = vdwg.mxu0
        %v1202 = vld [vmem:[%s467] sm:$0xff]
        %v1203 = vld [vmem:[%s467 + $0x8] sm:$0xff]
        %v1204 = vld [vmem:[%s467 + $0x10] sm:$0xff]
        %v1205 = vld [vmem:[%s467 + $0x18] sm:$0xff]
        %v1206 = vld [vmem:[%s467 + $0x20] sm:$0xff]
        %v1207 = vld [vmem:[%s467 + $0x28] sm:$0xff]
        %v1208 = vld [vmem:[%s467 + $0x30] sm:$0xff]
        %v1209 = vld [vmem:[%s467 + $0x38] sm:$0xff]
        %v1210 = vld [vmem:[%s467 + $0x40] sm:$0xff]
        %v1211 = vld [vmem:[%s467 + $0x48] sm:$0xff]
        %v1212 = vld [vmem:[%s467 + $0x50] sm:$0xff]
        %v1213 = vld [vmem:[%s467 + $0x58] sm:$0xff]
        %v1214 = vld [vmem:[%s467 + $0x60] sm:$0xff]
        %v1215 = vld [vmem:[%s467 + $0x68] sm:$0xff]
        %v1216 = vld [vmem:[%s467 + $0x70] sm:$0xff]
        %v1217 = vld [vmem:[%s467 + $0x78] sm:$0xff]
        %v1218 = vld [vmem:[%s467 + $0x80] sm:$0xff]
        %v1219 = vld [vmem:[%s467 + $0x88] sm:$0xff]
        %v1220 = vld [vmem:[%s467 + $0x90] sm:$0xff]
        %v1221 = vld [vmem:[%s467 + $0x98] sm:$0xff]
        %v1222 = vld [vmem:[%s467 + $0xa0] sm:$0xff]
        %v1223 = vld [vmem:[%s467 + $0xa8] sm:$0xff]
        %v1224 = vld [vmem:[%s467 + $0xb0] sm:$0xff]
        %v1225 = vld [vmem:[%s467 + $0xb8] sm:$0xff]
        %v1226 = vld [vmem:[%s467 + $0xc0] sm:$0xff]
        %v1227 = vld [vmem:[%s467 + $0xc8] sm:$0xff]
        %v1228 = vld [vmem:[%s467 + $0xd0] sm:$0xff]
        %v1229 = vld [vmem:[%s467 + $0xd8] sm:$0xff]
        %v1230 = vld [vmem:[%s467 + $0xe0] sm:$0xff]
        %v1231 = vld [vmem:[%s467 + $0xe8] sm:$0xff]
        %v1232 = vld [vmem:[%s467 + $0xf0] sm:$0xff]
        %v1233 = vld [vmem:[%s467 + $0xf8] sm:$0xff]
        %v1234 = vld [vmem:[%s467 + $0x100] sm:$0xff]
        %v1235 = vld [vmem:[%s467 + $0x108] sm:$0xff]
        %v1236 = vld [vmem:[%s467 + $0x110] sm:$0xff]
        %v1237 = vld [vmem:[%s467 + $0x118] sm:$0xff]
        %v1238 = vld [vmem:[%s467 + $0x120] sm:$0xff]
        %v1239 = vld [vmem:[%s467 + $0x128] sm:$0xff]
        %v1240 = vld [vmem:[%s467 + $0x130] sm:$0xff]
        %v1241 = vld [vmem:[%s467 + $0x138] sm:$0xff]
        %v1242 = vld [vmem:[%s467 + $0x140] sm:$0xff]
        %v1243 = vld [vmem:[%s467 + $0x148] sm:$0xff]
        %v1244 = vld [vmem:[%s467 + $0x150] sm:$0xff]
        %v1245 = vld [vmem:[%s467 + $0x158] sm:$0xff]
        %v1246 = vld [vmem:[%s467 + $0x160] sm:$0xff]
        %v1247 = vld [vmem:[%s467 + $0x168] sm:$0xff]
        %v1248 = vld [vmem:[%s467 + $0x170] sm:$0xff]
        %v1249 = vld [vmem:[%s467 + $0x178] sm:$0xff]
        %v1250 = vld [vmem:[%s467 + $0x180] sm:$0xff]
        %v1251 = vld [vmem:[%s467 + $0x188] sm:$0xff]
        %v1252 = vld [vmem:[%s467 + $0x190] sm:$0xff]
        %v1253 = vld [vmem:[%s467 + $0x198] sm:$0xff]
        %v1254 = vld [vmem:[%s467 + $0x1a0] sm:$0xff]
        %v1255 = vld [vmem:[%s467 + $0x1a8] sm:$0xff]
        %v1256 = vld [vmem:[%s467 + $0x1b0] sm:$0xff]
        %v1257 = vld [vmem:[%s467 + $0x1b8] sm:$0xff]
        %v1258 = vld [vmem:[%s467 + $0x1c0] sm:$0xff]
        %v1259 = vld [vmem:[%s467 + $0x1c8] sm:$0xff]
        %v1260 = vld [vmem:[%s467 + $0x1d0] sm:$0xff]
        %v1261 = vld [vmem:[%s467 + $0x1d8] sm:$0xff]
        %v1262 = vld [vmem:[%s467 + $0x1e0] sm:$0xff]
        %v1263 = vld [vmem:[%s467 + $0x1e8] sm:$0xff]
        %v1264 = vld [vmem:[%s467 + $0x1f0] sm:$0xff]
        %v1265 = vld [vmem:[%s467 + $0x1f8] sm:$0xff]
        %v1266 = vld [vmem:[%s467 + $0x200] sm:$0xff]
        %v1267 = vld [vmem:[%s467 + $0x208] sm:$0xff]
        %v1268 = vld [vmem:[%s467 + $0x210] sm:$0xff]
        %v1269 = vld [vmem:[%s467 + $0x218] sm:$0xff]
        %v1270 = vld [vmem:[%s467 + $0x220] sm:$0xff]
        %v1271 = vld [vmem:[%s467 + $0x228] sm:$0xff]
        %v1272 = vld [vmem:[%s467 + $0x230] sm:$0xff]
        %v1273 = vld [vmem:[%s467 + $0x238] sm:$0xff]
        %v1274 = vld [vmem:[%s467 + $0x240] sm:$0xff]
        %v1275 = vld [vmem:[%s467 + $0x248] sm:$0xff]
        %v1276 = vld [vmem:[%s467 + $0x250] sm:$0xff]
        %v1277 = vld [vmem:[%s467 + $0x258] sm:$0xff]
        %v1278 = vld [vmem:[%s467 + $0x260] sm:$0xff]
        %v1279 = vld [vmem:[%s467 + $0x268] sm:$0xff]
        %v1280 = vld [vmem:[%s467 + $0x270] sm:$0xff]
        %v1281 = vld [vmem:[%s467 + $0x278] sm:$0xff]
        %v1282 = vld [vmem:[%s467 + $0x280] sm:$0xff]
        %v1283 = vld [vmem:[%s467 + $0x288] sm:$0xff]
        %v1284 = vld [vmem:[%s467 + $0x290] sm:$0xff]
        %v1285 = vld [vmem:[%s467 + $0x298] sm:$0xff]
        %v1286 = vld [vmem:[%s467 + $0x2a0] sm:$0xff]
        %v1287 = vld [vmem:[%s467 + $0x2a8] sm:$0xff]
        %v1288 = vld [vmem:[%s467 + $0x2b0] sm:$0xff]
        %v1289 = vld [vmem:[%s467 + $0x2b8] sm:$0xff]
        %v1290 = vld [vmem:[%s467 + $0x2c0] sm:$0xff]
        %v1291 = vld [vmem:[%s467 + $0x2c8] sm:$0xff]
        %v1292 = vld [vmem:[%s467 + $0x2d0] sm:$0xff]
        %v1293 = vld [vmem:[%s467 + $0x2d8] sm:$0xff]
        %v1294 = vld [vmem:[%s467 + $0x2e0] sm:$0xff]
        %v1295 = vld [vmem:[%s467 + $0x2e8] sm:$0xff]
        %v1296 = vld [vmem:[%s467 + $0x2f0] sm:$0xff]
        %v1297 = vld [vmem:[%s467 + $0x2f8] sm:$0xff]
        %v1298 = vld [vmem:[%s467 + $0x300] sm:$0xff]
        %v1299 = vld [vmem:[%s467 + $0x308] sm:$0xff]
        %v1300 = vld [vmem:[%s467 + $0x310] sm:$0xff]
        %v1301 = vld [vmem:[%s467 + $0x318] sm:$0xff]
        %v1302 = vld [vmem:[%s467 + $0x320] sm:$0xff]
        %v1303 = vld [vmem:[%s467 + $0x328] sm:$0xff]
        %v1304 = vld [vmem:[%s467 + $0x330] sm:$0xff]
        %v1305 = vld [vmem:[%s467 + $0x338] sm:$0xff]
        %v1306 = vld [vmem:[%s467 + $0x340] sm:$0xff]
        %v1307 = vld [vmem:[%s467 + $0x348] sm:$0xff]
        %v1308 = vld [vmem:[%s467 + $0x350] sm:$0xff]
        %v1309 = vld [vmem:[%s467 + $0x358] sm:$0xff]
        %v1310 = vld [vmem:[%s467 + $0x360] sm:$0xff]
        %v1311 = vld [vmem:[%s467 + $0x368] sm:$0xff]
        %v1312 = vld [vmem:[%s467 + $0x370] sm:$0xff]
        %v1313 = vld [vmem:[%s467 + $0x378] sm:$0xff]
        %v1314 = vld [vmem:[%s467 + $0x380] sm:$0xff]
        %v1315 = vld [vmem:[%s467 + $0x388] sm:$0xff]
        %v1316 = vld [vmem:[%s467 + $0x390] sm:$0xff]
        %v1317 = vld [vmem:[%s467 + $0x398] sm:$0xff]
        %v1318 = vld [vmem:[%s467 + $0x3a0] sm:$0xff]
        %v1319 = vld [vmem:[%s467 + $0x3a8] sm:$0xff]
        %v1320 = vld [vmem:[%s467 + $0x3b0] sm:$0xff]
        %v1321 = vld [vmem:[%s467 + $0x3b8] sm:$0xff]
        %v1322 = vld [vmem:[%s467 + $0x3c0] sm:$0xff]
        %v1323 = vld [vmem:[%s467 + $0x3c8] sm:$0xff]
        %v1324 = vld [vmem:[%s467 + $0x3d0] sm:$0xff]
        %v1325 = vld [vmem:[%s467 + $0x3d8] sm:$0xff]
        %v1326 = vld [vmem:[%s467 + $0x3e0] sm:$0xff]
        %v1327 = vld [vmem:[%s467 + $0x3e8] sm:$0xff]
        %v1328 = vld [vmem:[%s467 + $0x3f0] sm:$0xff]
        %v1329 = vld [vmem:[%s467 + $0x3f8] sm:$0xff]
        %v1330 = vld [vmem:[#allocation10] sm:$0xff]
        %v1331 = vld [vmem:[#allocation10 + $0x8] sm:$0xff]
        %v1332 = vld [vmem:[#allocation10 + $0x10] sm:$0xff]
        %v1333 = vld [vmem:[#allocation10 + $0x18] sm:$0xff]
        %v1334 = vld [vmem:[#allocation10 + $0x20] sm:$0xff]
        %v1335 = vld [vmem:[#allocation10 + $0x28] sm:$0xff]
        %v1336 = vld [vmem:[#allocation10 + $0x30] sm:$0xff]
        %v1337 = vld [vmem:[#allocation10 + $0x38] sm:$0xff]
        %v1338 = vld [vmem:[#allocation10 + $0x40] sm:$0xff]
        %v1339 = vld [vmem:[#allocation10 + $0x48] sm:$0xff]
        %v1340 = vld [vmem:[#allocation10 + $0x50] sm:$0xff]
        %v1341 = vld [vmem:[#allocation10 + $0x58] sm:$0xff]
        %v1342 = vld [vmem:[#allocation10 + $0x60] sm:$0xff]
        %v1343 = vld [vmem:[#allocation10 + $0x68] sm:$0xff]
        %v1344 = vld [vmem:[#allocation10 + $0x70] sm:$0xff]
        %v1345 = vld [vmem:[#allocation10 + $0x78] sm:$0xff]
        %v1346 = vld [vmem:[#allocation10 + $0x80] sm:$0xff]
        %v1347 = vld [vmem:[#allocation10 + $0x88] sm:$0xff]
        %v1348 = vld [vmem:[#allocation10 + $0x90] sm:$0xff]
        %v1349 = vld [vmem:[#allocation10 + $0x98] sm:$0xff]
        %v1350 = vld [vmem:[#allocation10 + $0xa0] sm:$0xff]
        %v1351 = vld [vmem:[#allocation10 + $0xa8] sm:$0xff]
        %v1352 = vld [vmem:[#allocation10 + $0xb0] sm:$0xff]
        %v1353 = vld [vmem:[#allocation10 + $0xb8] sm:$0xff]
        %v1354 = vld [vmem:[#allocation10 + $0xc0] sm:$0xff]
        %v1355 = vld [vmem:[#allocation10 + $0xc8] sm:$0xff]
        %v1356 = vld [vmem:[#allocation10 + $0xd0] sm:$0xff]
        %v1357 = vld [vmem:[#allocation10 + $0xd8] sm:$0xff]
        %v1358 = vld [vmem:[#allocation10 + $0xe0] sm:$0xff]
        %v1359 = vld [vmem:[#allocation10 + $0xe8] sm:$0xff]
        %v1360 = vld [vmem:[#allocation10 + $0xf0] sm:$0xff]
        %v1361 = vld [vmem:[#allocation10 + $0xf8] sm:$0xff]
        %v1362 = vld [vmem:[#allocation10 + $0x100] sm:$0xff]
        %v1363 = vld [vmem:[#allocation10 + $0x108] sm:$0xff]
        %v1364 = vld [vmem:[#allocation10 + $0x110] sm:$0xff]
        %v1365 = vld [vmem:[#allocation10 + $0x118] sm:$0xff]
        %v1366 = vld [vmem:[#allocation10 + $0x120] sm:$0xff]
        %v1367 = vld [vmem:[#allocation10 + $0x128] sm:$0xff]
        %v1368 = vld [vmem:[#allocation10 + $0x130] sm:$0xff]
        %v1369 = vld [vmem:[#allocation10 + $0x138] sm:$0xff]
        %v1370 = vld [vmem:[#allocation10 + $0x140] sm:$0xff]
        %v1371 = vld [vmem:[#allocation10 + $0x148] sm:$0xff]
        %v1372 = vld [vmem:[#allocation10 + $0x150] sm:$0xff]
        %v1373 = vld [vmem:[#allocation10 + $0x158] sm:$0xff]
        %v1374 = vld [vmem:[#allocation10 + $0x160] sm:$0xff]
        %v1375 = vld [vmem:[#allocation10 + $0x168] sm:$0xff]
        %v1376 = vld [vmem:[#allocation10 + $0x170] sm:$0xff]
        %v1377 = vld [vmem:[#allocation10 + $0x178] sm:$0xff]
        %v1378 = vld [vmem:[#allocation10 + $0x180] sm:$0xff]
        %v1379 = vld [vmem:[#allocation10 + $0x188] sm:$0xff]
        %v1380 = vld [vmem:[#allocation10 + $0x190] sm:$0xff]
        %v1381 = vld [vmem:[#allocation10 + $0x198] sm:$0xff]
        %v1382 = vld [vmem:[#allocation10 + $0x1a0] sm:$0xff]
        %v1383 = vld [vmem:[#allocation10 + $0x1a8] sm:$0xff]
        %v1384 = vld [vmem:[#allocation10 + $0x1b0] sm:$0xff]
        %v1385 = vld [vmem:[#allocation10 + $0x1b8] sm:$0xff]
        %v1386 = vld [vmem:[#allocation10 + $0x1c0] sm:$0xff]
        %v1387 = vld [vmem:[#allocation10 + $0x1c8] sm:$0xff]
        %v1388 = vld [vmem:[#allocation10 + $0x1d0] sm:$0xff]
        %v1389 = vld [vmem:[#allocation10 + $0x1d8] sm:$0xff]
        %v1390 = vld [vmem:[#allocation10 + $0x1e0] sm:$0xff]
        %v1391 = vld [vmem:[#allocation10 + $0x1e8] sm:$0xff]
        %v1392 = vld [vmem:[#allocation10 + $0x1f0] sm:$0xff]
        %v1393 = vld [vmem:[#allocation10 + $0x1f8] sm:$0xff]
        %v1394 = vld [vmem:[%s6] sm:$0x1]
        %v1396 = vlaneseq
        %v1397 = vshrl.u32 %v1396, 7
        %v1398 = vsub.s32 0, %v1397
        %v1399 = vrot.slane %v1394, %v1398
        %1401 = vmatprep.subr.mxu0 0.0
        %1402 = vmatpush1.msra.mxu0 %v1330
        %1403 = vmatprep.subr.mxu0 0.0
        %1404 = vmatpush1.msra.mxu0 %v1331
        %1405 = vmatprep.subr.mxu0 0.0
        %1406 = vmatpush1.msra.mxu0 %v1332
        %1407 = vmatprep.subr.mxu0 0.0
        %1408 = vmatpush1.msra.mxu0 %v1333
        %1409 = vmatprep.subr.mxu0 0.0
        %1410 = vmatpush1.msra.mxu0 %v1334
        %1411 = vmatprep.subr.mxu0 0.0
        %1412 = vmatpush1.msra.mxu0 %v1335
        %1413 = vmatprep.subr.mxu0 0.0
        %1414 = vmatpush1.msra.mxu0 %v1336
        %1415 = vmatprep.subr.mxu0 0.0
        %1416 = vmatpush1.msra.mxu0 %v1337
        %1417 = vmatprep.subr.mxu0 0.0
        %1418 = vmatpush1.msra.mxu0 %v1338
        %1419 = vmatprep.subr.mxu0 0.0
        %1420 = vmatpush1.msra.mxu0 %v1339
        %1421 = vmatprep.subr.mxu0 0.0
        %1422 = vmatpush1.msra.mxu0 %v1340
        %1423 = vmatprep.subr.mxu0 0.0
        %1424 = vmatpush1.msra.mxu0 %v1341
        %1425 = vmatprep.subr.mxu0 0.0
        %1426 = vmatpush1.msra.mxu0 %v1342
        %1427 = vmatprep.subr.mxu0 0.0
        %1428 = vmatpush1.msra.mxu0 %v1343
        %1429 = vmatprep.subr.mxu0 0.0
        %1430 = vmatpush1.msra.mxu0 %v1344
        %1431 = vmatprep.subr.mxu0 0.0
        %1432 = vmatpush1.msra.mxu0 %v1345
        %1433 = vmatprep.subr.mxu0 0.0
        %1434 = vmatpush1.msra.mxu0 %v1346
        %1435 = vmatprep.subr.mxu0 0.0
        %1436 = vmatpush1.msra.mxu0 %v1347
        %1437 = vmatprep.subr.mxu0 0.0
        %1438 = vmatpush1.msra.mxu0 %v1348
        %1439 = vmatprep.subr.mxu0 0.0
        %1440 = vmatpush1.msra.mxu0 %v1349
        %1441 = vmatprep.subr.mxu0 0.0
        %1442 = vmatpush1.msra.mxu0 %v1350
        %1443 = vmatprep.subr.mxu0 0.0
        %1444 = vmatpush1.msra.mxu0 %v1351
        %1445 = vmatprep.subr.mxu0 0.0
        %1446 = vmatpush1.msra.mxu0 %v1352
        %1447 = vmatprep.subr.mxu0 0.0
        %1448 = vmatpush1.msra.mxu0 %v1353
        %1449 = vmatprep.subr.mxu0 0.0
        %1450 = vmatpush1.msra.mxu0 %v1354
        %1451 = vmatprep.subr.mxu0 0.0
        %1452 = vmatpush1.msra.mxu0 %v1355
        %1453 = vmatprep.subr.mxu0 0.0
        %1454 = vmatpush1.msra.mxu0 %v1356
        %1455 = vmatprep.subr.mxu0 0.0
        %1456 = vmatpush1.msra.mxu0 %v1357
        %1457 = vmatprep.subr.mxu0 0.0
        %1458 = vmatpush1.msra.mxu0 %v1358
        %1459 = vmatprep.subr.mxu0 0.0
        %1460 = vmatpush1.msra.mxu0 %v1359
        %1461 = vmatprep.subr.mxu0 0.0
        %1462 = vmatpush1.msra.mxu0 %v1360
        %1463 = vmatprep.subr.mxu0 0.0
        %1464 = vmatpush1.msra.mxu0 %v1361
        %1465 = vmatprep.mubr.f32.mxu0 %v1203
        %1466 = vmatmul.mubr.f32.gmra.mrb[0].mxu0 %v1202
        %v1467 = vpop.f32.mrb[0].mxu0
        %v1468 = vadd.f32 %v1399, %v1467
        %v1469 = vpop.f32.mrb[0].mxu0
        %1470 = vmatprep.mubr.f32.mxu0 %v1207
        %1471 = vmatmul.mubr.f32.gmra.mrb[0].mxu0 %v1206
        %v1472 = vpop.f32.mrb[0].mxu0
        %v1473 = vadd.f32 %v1399, %v1472
        %v1474 = vpop.f32.mrb[0].mxu0
        %1475 = vmatprep.mubr.f32.mxu0 %v1211
        %1476 = vmatmul.mubr.f32.gmra.mrb[0].mxu0 %v1210
        %v1477 = vpop.f32.mrb[0].mxu0
        %v1478 = vadd.f32 %v1399, %v1477
        %v1479 = vpop.f32.mrb[0].mxu0
        %1480 = vmatprep.mubr.f32.mxu0 %v1215
        %1481 = vmatmul.mubr.f32.gmra.mrb[0].mxu0 %v1214
        %v1482 = vpop.f32.mrb[0].mxu0
        %v1483 = vadd.f32 %v1399, %v1482
        %v1484 = vpop.f32.mrb[0].mxu0
        %1485 = vmatprep.mubr.f32.mxu0 %v1219
        %1486 = vmatmul.mubr.f32.gmra.mrb[0].mxu0 %v1218
        %v1487 = vpop.f32.mrb[0].mxu0
        %v1488 = vadd.f32 %v1399, %v1487
        %v1489 = vpop.f32.mrb[0].mxu0
        %1490 = vmatprep.mubr.f32.mxu0 %v1223
        %1491 = vmatmul.mubr.f32.gmra.mrb[0].mxu0 %v1222
        %v1492 = vpop.f32.mrb[0].mxu0
        %v1493 = vadd.f32 %v1399, %v1492
        %v1494 = vpop.f32.mrb[0].mxu0
        %1495 = vmatprep.mubr.f32.mxu0 %v1227
        %1496 = vmatmul.mubr.f32.gmra.mrb[0].mxu0 %v1226
        %v1497 = vpop.f32.mrb[0].mxu0
        %v1498 = vadd.f32 %v1399, %v1497
        %v1499 = vpop.f32.mrb[0].mxu0
        %1500 = vmatprep.mubr.f32.mxu0 %v1231
        %1501 = vmatmul.mubr.f32.gmra.mrb[0].mxu0 %v1230
        %v1502 = vpop.f32.mrb[0].mxu0
        %v1503 = vadd.f32 %v1399, %v1502
        %v1504 = vpop.f32.mrb[0].mxu0
        %1505 = vmatprep.mubr.f32.mxu0 %v1235
        %1506 = vmatmul.mubr.f32.gmra.mrb[0].mxu0 %v1234
        %v1507 = vpop.f32.mrb[0].mxu0
        %v1508 = vadd.f32 %v1399, %v1507
        %v1509 = vpop.f32.mrb[0].mxu0
        %1510 = vmatprep.mubr.f32.mxu0 %v1239
        %1511 = vmatmul.mubr.f32.gmra.mrb[0].mxu0 %v1238
        %v1512 = vpop.f32.mrb[0].mxu0
        %v1513 = vadd.f32 %v1399, %v1512
        %v1514 = vpop.f32.mrb[0].mxu0
        %1515 = vmatprep.mubr.f32.mxu0 %v1243
        %1516 = vmatmul.mubr.f32.gmra.mrb[0].mxu0 %v1242
        %v1517 = vpop.f32.mrb[0].mxu0
        %v1518 = vadd.f32 %v1399, %v1517
        %v1519 = vpop.f32.mrb[0].mxu0
        %1520 = vmatprep.mubr.f32.mxu0 %v1247
        %1521 = vmatmul.mubr.f32.gmra.mrb[0].mxu0 %v1246
        %v1522 = vpop.f32.mrb[0].mxu0
        %v1523 = vadd.f32 %v1399, %v1522
        %v1524 = vpop.f32.mrb[0].mxu0
        %1525 = vmatprep.mubr.f32.mxu0 %v1251
        %1526 = vmatmul.mubr.f32.gmra.mrb[0].mxu0 %v1250
        %v1527 = vpop.f32.mrb[0].mxu0
        %v1528 = vadd.f32 %v1399, %v1527
        %v1529 = vpop.f32.mrb[0].mxu0
        %1530 = vmatprep.mubr.f32.mxu0 %v1255
        %1531 = vmatmul.mubr.f32.gmra.mrb[0].mxu0 %v1254
        %v1532 = vpop.f32.mrb[0].mxu0
        %v1533 = vadd.f32 %v1399, %v1532
        %v1534 = vpop.f32.mrb[0].mxu0
        %1535 = vmatprep.mubr.f32.mxu0 %v1259
        %1536 = vmatmul.mubr.f32.gmra.mrb[0].mxu0 %v1258
        %v1537 = vpop.f32.mrb[0].mxu0
        %v1538 = vadd.f32 %v1399, %v1537
        %v1539 = vpop.f32.mrb[0].mxu0
        %1540 = vmatprep.mubr.f32.mxu0 %v1263
        %1541 = vmatmul.mubr.f32.gmra.mrb[0].mxu0 %v1262
        %v1542 = vpop.f32.mrb[0].mxu0
        %v1543 = vadd.f32 %v1399, %v1542
        %v1544 = vpop.f32.mrb[0].mxu0
        %1545 = vmatprep.mubr.f32.mxu0 %v1267
        %1546 = vmatmul.mubr.f32.gmra.mrb[0].mxu0 %v1266
        %v1547 = vpop.f32.mrb[0].mxu0
        %v1548 = vadd.f32 %v1399, %v1547
        %v1549 = vpop.f32.mrb[0].mxu0
        %1550 = vmatprep.mubr.f32.mxu0 %v1271
        %1551 = vmatmul.mubr.f32.gmra.mrb[0].mxu0 %v1270
        %v1552 = vpop.f32.mrb[0].mxu0
        %v1553 = vadd.f32 %v1399, %v1552
        %v1554 = vpop.f32.mrb[0].mxu0
        %1555 = vmatprep.mubr.f32.mxu0 %v1275
        %1556 = vmatmul.mubr.f32.gmra.mrb[0].mxu0 %v1274
        %v1557 = vpop.f32.mrb[0].mxu0
        %v1558 = vadd.f32 %v1399, %v1557
        %v1559 = vpop.f32.mrb[0].mxu0
        %1560 = vmatprep.mubr.f32.mxu0 %v1279
        %1561 = vmatmul.mubr.f32.gmra.mrb[0].mxu0 %v1278
        %v1562 = vpop.f32.mrb[0].mxu0
        %v1563 = vadd.f32 %v1399, %v1562
        %v1564 = vpop.f32.mrb[0].mxu0
        %1565 = vmatprep.mubr.f32.mxu0 %v1283
        %1566 = vmatmul.mubr.f32.gmra.mrb[0].mxu0 %v1282
        %v1567 = vpop.f32.mrb[0].mxu0
        %v1568 = vadd.f32 %v1399, %v1567
        %v1569 = vpop.f32.mrb[0].mxu0
        %1570 = vmatprep.mubr.f32.mxu0 %v1287
        %1571 = vmatmul.mubr.f32.gmra.mrb[0].mxu0 %v1286
        %v1572 = vpop.f32.mrb[0].mxu0
        %v1573 = vadd.f32 %v1399, %v1572
        %v1574 = vpop.f32.mrb[0].mxu0
        %1575 = vmatprep.mubr.f32.mxu0 %v1291
        %1576 = vmatmul.mubr.f32.gmra.mrb[0].mxu0 %v1290
        %v1577 = vpop.f32.mrb[0].mxu0
        %v1578 = vadd.f32 %v1399, %v1577
        %v1579 = vpop.f32.mrb[0].mxu0
        %1580 = vmatprep.mubr.f32.mxu0 %v1295
        %1581 = vmatmul.mubr.f32.gmra.mrb[0].mxu0 %v1294
        %v1582 = vpop.f32.mrb[0].mxu0
        %v1583 = vadd.f32 %v1399, %v1582
        %v1584 = vpop.f32.mrb[0].mxu0
        %1585 = vmatprep.mubr.f32.mxu0 %v1299
        %1586 = vmatmul.mubr.f32.gmra.mrb[0].mxu0 %v1298
        %v1587 = vpop.f32.mrb[0].mxu0
        %v1588 = vadd.f32 %v1399, %v1587
        %v1589 = vpop.f32.mrb[0].mxu0
        %1590 = vmatprep.mubr.f32.mxu0 %v1303
        %1591 = vmatmul.mubr.f32.gmra.mrb[0].mxu0 %v1302
        %v1592 = vpop.f32.mrb[0].mxu0
        %v1593 = vadd.f32 %v1399, %v1592
        %v1594 = vpop.f32.mrb[0].mxu0
        %1595 = vmatprep.mubr.f32.mxu0 %v1307
        %1596 = vmatmul.mubr.f32.gmra.mrb[0].mxu0 %v1306
        %v1597 = vpop.f32.mrb[0].mxu0
        %v1598 = vadd.f32 %v1399, %v1597
        %v1599 = vpop.f32.mrb[0].mxu0
        %1600 = vmatprep.mubr.f32.mxu0 %v1311
        %1601 = vmatmul.mubr.f32.gmra.mrb[0].mxu0 %v1310
        %v1602 = vpop.f32.mrb[0].mxu0
        %v1603 = vadd.f32 %v1399, %v1602
        %v1604 = vpop.f32.mrb[0].mxu0
        %1605 = vmatprep.mubr.f32.mxu0 %v1315
        %1606 = vmatmul.mubr.f32.gmra.mrb[0].mxu0 %v1314
        %v1607 = vpop.f32.mrb[0].mxu0
        %v1608 = vadd.f32 %v1399, %v1607
        %v1609 = vpop.f32.mrb[0].mxu0
        %1610 = vmatprep.mubr.f32.mxu0 %v1319
        %1611 = vmatmul.mubr.f32.gmra.mrb[0].mxu0 %v1318
        %v1612 = vpop.f32.mrb[0].mxu0
        %v1613 = vadd.f32 %v1399, %v1612
        %v1614 = vpop.f32.mrb[0].mxu0
        %1615 = vmatprep.mubr.f32.mxu0 %v1323
        %1616 = vmatmul.mubr.f32.gmra.mrb[0].mxu0 %v1322
        %v1617 = vpop.f32.mrb[0].mxu0
        %v1618 = vadd.f32 %v1399, %v1617
        %v1619 = vpop.f32.mrb[0].mxu0
        %1620 = vmatprep.mubr.f32.mxu0 %v1327
        %1621 = vmatmul.mubr.f32.gmra.mrb[0].mxu0 %v1326
        %v1622 = vpop.f32.mrb[0].mxu0
        %v1623 = vadd.f32 %v1399, %v1622
        %v1624 = vpop.f32.mrb[0].mxu0
        %1625 = vdwg.mxu0
        %1626 = vmatprep.subr.mxu0 0.0
        %1627 = vmatpush1.msra.mxu0 %v1362
        %1628 = vmatprep.subr.mxu0 0.0
        %1629 = vmatpush1.msra.mxu0 %v1363
        %1630 = vmatprep.subr.mxu0 0.0
        %1631 = vmatpush1.msra.mxu0 %v1364
        %1632 = vmatprep.subr.mxu0 0.0
        %1633 = vmatpush1.msra.mxu0 %v1365
        %1634 = vmatprep.subr.mxu0 0.0
        %1635 = vmatpush1.msra.mxu0 %v1366
        %1636 = vmatprep.subr.mxu0 0.0
        %1637 = vmatpush1.msra.mxu0 %v1367
        %1638 = vmatprep.subr.mxu0 0.0
        %1639 = vmatpush1.msra.mxu0 %v1368
        %1640 = vmatprep.subr.mxu0 0.0
        %1641 = vmatpush1.msra.mxu0 %v1369
        %1642 = vmatprep.subr.mxu0 0.0
        %1643 = vmatpush1.msra.mxu0 %v1370
        %1644 = vmatprep.subr.mxu0 0.0
        %1645 = vmatpush1.msra.mxu0 %v1371
        %1646 = vmatprep.subr.mxu0 0.0
        %1647 = vmatpush1.msra.mxu0 %v1372
        %1648 = vmatprep.subr.mxu0 0.0
        %1649 = vmatpush1.msra.mxu0 %v1373
        %1650 = vmatprep.subr.mxu0 0.0
        %1651 = vmatpush1.msra.mxu0 %v1374
        %1652 = vmatprep.subr.mxu0 0.0
        %1653 = vmatpush1.msra.mxu0 %v1375
        %1654 = vmatprep.subr.mxu0 0.0
        %1655 = vmatpush1.msra.mxu0 %v1376
        %1656 = vmatprep.subr.mxu0 0.0
        %1657 = vmatpush1.msra.mxu0 %v1377
        %1658 = vmatprep.subr.mxu0 0.0
        %1659 = vmatpush1.msra.mxu0 %v1378
        %1660 = vmatprep.subr.mxu0 0.0
        %1661 = vmatpush1.msra.mxu0 %v1379
        %1662 = vmatprep.subr.mxu0 0.0
        %1663 = vmatpush1.msra.mxu0 %v1380
        %1664 = vmatprep.subr.mxu0 0.0
        %1665 = vmatpush1.msra.mxu0 %v1381
        %1666 = vmatprep.subr.mxu0 0.0
        %1667 = vmatpush1.msra.mxu0 %v1382
        %1668 = vmatprep.subr.mxu0 0.0
        %1669 = vmatpush1.msra.mxu0 %v1383
        %1670 = vmatprep.subr.mxu0 0.0
        %1671 = vmatpush1.msra.mxu0 %v1384
        %1672 = vmatprep.subr.mxu0 0.0
        %1673 = vmatpush1.msra.mxu0 %v1385
        %1674 = vmatprep.subr.mxu0 0.0
        %1675 = vmatpush1.msra.mxu0 %v1386
        %1676 = vmatprep.subr.mxu0 0.0
        %1677 = vmatpush1.msra.mxu0 %v1387
        %1678 = vmatprep.subr.mxu0 0.0
        %1679 = vmatpush1.msra.mxu0 %v1388
        %1680 = vmatprep.subr.mxu0 0.0
        %1681 = vmatpush1.msra.mxu0 %v1389
        %1682 = vmatprep.subr.mxu0 0.0
        %1683 = vmatpush1.msra.mxu0 %v1390
        %1684 = vmatprep.subr.mxu0 0.0
        %1685 = vmatpush1.msra.mxu0 %v1391
        %1686 = vmatprep.subr.mxu0 0.0
        %1687 = vmatpush1.msra.mxu0 %v1392
        %1688 = vmatprep.subr.mxu0 0.0
        %1689 = vmatpush1.msra.mxu0 %v1393
        %1690 = vmatprep.mubr.f32.mxu0 %v1205
        %1691 = vmatmul.mubr.f32.gmra.mrb[0].mxu0 %v1204
        %v1692 = vpop.f32.mrb[0].mxu0
        %v1693 = vadd.f32 %v1468, %v1692
        %v1694 = vpop.f32.mrb[0].mxu0
        %1695 = vmatprep.mubr.f32.mxu0 %v1209
        %1696 = vmatmul.mubr.f32.gmra.mrb[0].mxu0 %v1208
        %v1697 = vpop.f32.mrb[0].mxu0
        %v1698 = vadd.f32 %v1473, %v1697
        %v1699 = vpop.f32.mrb[0].mxu0
        %1700 = vmatprep.mubr.f32.mxu0 %v1213
        %1701 = vmatmul.mubr.f32.gmra.mrb[0].mxu0 %v1212
        %v1702 = vpop.f32.mrb[0].mxu0
        %v1703 = vadd.f32 %v1478, %v1702
        %v1704 = vpop.f32.mrb[0].mxu0
        %1705 = vmatprep.mubr.f32.mxu0 %v1217
        %1706 = vmatmul.mubr.f32.gmra.mrb[0].mxu0 %v1216
        %v1707 = vpop.f32.mrb[0].mxu0
        %v1708 = vadd.f32 %v1483, %v1707
        %v1709 = vpop.f32.mrb[0].mxu0
        %1710 = vmatprep.mubr.f32.mxu0 %v1221
        %1711 = vmatmul.mubr.f32.gmra.mrb[0].mxu0 %v1220
        %v1712 = vpop.f32.mrb[0].mxu0
        %v1713 = vadd.f32 %v1488, %v1712
        %v1714 = vpop.f32.mrb[0].mxu0
        %1715 = vmatprep.mubr.f32.mxu0 %v1225
        %1716 = vmatmul.mubr.f32.gmra.mrb[0].mxu0 %v1224
        %v1717 = vpop.f32.mrb[0].mxu0
        %v1718 = vadd.f32 %v1493, %v1717
        %v1719 = vpop.f32.mrb[0].mxu0
        %1720 = vmatprep.mubr.f32.mxu0 %v1229
        %1721 = vmatmul.mubr.f32.gmra.mrb[0].mxu0 %v1228
        %v1722 = vpop.f32.mrb[0].mxu0
        %v1723 = vadd.f32 %v1498, %v1722
        %v1724 = vpop.f32.mrb[0].mxu0
        %1725 = vmatprep.mubr.f32.mxu0 %v1233
        %1726 = vmatmul.mubr.f32.gmra.mrb[0].mxu0 %v1232
        %v1727 = vpop.f32.mrb[0].mxu0
        %v1728 = vadd.f32 %v1503, %v1727
        %v1729 = vpop.f32.mrb[0].mxu0
        %1730 = vmatprep.mubr.f32.mxu0 %v1237
        %1731 = vmatmul.mubr.f32.gmra.mrb[0].mxu0 %v1236
        %v1732 = vpop.f32.mrb[0].mxu0
        %v1733 = vadd.f32 %v1508, %v1732
        %v1734 = vpop.f32.mrb[0].mxu0
        %1735 = vmatprep.mubr.f32.mxu0 %v1241
        %1736 = vmatmul.mubr.f32.gmra.mrb[0].mxu0 %v1240
        %v1737 = vpop.f32.mrb[0].mxu0
        %v1738 = vadd.f32 %v1513, %v1737
        %v1739 = vpop.f32.mrb[0].mxu0
        %1740 = vmatprep.mubr.f32.mxu0 %v1245
        %1741 = vmatmul.mubr.f32.gmra.mrb[0].mxu0 %v1244
        %v1742 = vpop.f32.mrb[0].mxu0
        %v1743 = vadd.f32 %v1518, %v1742
        %v1744 = vpop.f32.mrb[0].mxu0
        %1745 = vmatprep.mubr.f32.mxu0 %v1249
        %1746 = vmatmul.mubr.f32.gmra.mrb[0].mxu0 %v1248
        %v1747 = vpop.f32.mrb[0].mxu0
        %v1748 = vadd.f32 %v1523, %v1747
        %v1749 = vpop.f32.mrb[0].mxu0
        %1750 = vmatprep.mubr.f32.mxu0 %v1253
        %1751 = vmatmul.mubr.f32.gmra.mrb[0].mxu0 %v1252
        %v1752 = vpop.f32.mrb[0].mxu0
        %v1753 = vadd.f32 %v1528, %v1752
        %v1754 = vpop.f32.mrb[0].mxu0
        %1755 = vmatprep.mubr.f32.mxu0 %v1257
        %1756 = vmatmul.mubr.f32.gmra.mrb[0].mxu0 %v1256
        %v1757 = vpop.f32.mrb[0].mxu0
        %v1758 = vadd.f32 %v1533, %v1757
        %v1759 = vpop.f32.mrb[0].mxu0
        %1760 = vmatprep.mubr.f32.mxu0 %v1261
        %1761 = vmatmul.mubr.f32.gmra.mrb[0].mxu0 %v1260
        %v1762 = vpop.f32.mrb[0].mxu0
        %v1763 = vadd.f32 %v1538, %v1762
        %v1764 = vpop.f32.mrb[0].mxu0
        %1765 = vmatprep.mubr.f32.mxu0 %v1265
        %1766 = vmatmul.mubr.f32.gmra.mrb[0].mxu0 %v1264
        %v1767 = vpop.f32.mrb[0].mxu0
        %v1768 = vadd.f32 %v1543, %v1767
        %v1769 = vpop.f32.mrb[0].mxu0
        %1770 = vmatprep.mubr.f32.mxu0 %v1269
        %1771 = vmatmul.mubr.f32.gmra.mrb[0].mxu0 %v1268
        %v1772 = vpop.f32.mrb[0].mxu0
        %v1773 = vadd.f32 %v1548, %v1772
        %v1774 = vpop.f32.mrb[0].mxu0
        %1775 = vmatprep.mubr.f32.mxu0 %v1273
        %1776 = vmatmul.mubr.f32.gmra.mrb[0].mxu0 %v1272
        %v1777 = vpop.f32.mrb[0].mxu0
        %v1778 = vadd.f32 %v1553, %v1777
        %v1779 = vpop.f32.mrb[0].mxu0
        %1780 = vmatprep.mubr.f32.mxu0 %v1277
        %1781 = vmatmul.mubr.f32.gmra.mrb[0].mxu0 %v1276
        %v1782 = vpop.f32.mrb[0].mxu0
        %v1783 = vadd.f32 %v1558, %v1782
        %v1784 = vpop.f32.mrb[0].mxu0
        %1785 = vmatprep.mubr.f32.mxu0 %v1281
        %1786 = vmatmul.mubr.f32.gmra.mrb[0].mxu0 %v1280
        %v1787 = vpop.f32.mrb[0].mxu0
        %v1788 = vadd.f32 %v1563, %v1787
        %v1789 = vpop.f32.mrb[0].mxu0
        %1790 = vmatprep.mubr.f32.mxu0 %v1285
        %1791 = vmatmul.mubr.f32.gmra.mrb[0].mxu0 %v1284
        %v1792 = vpop.f32.mrb[0].mxu0
        %v1793 = vadd.f32 %v1568, %v1792
        %v1794 = vpop.f32.mrb[0].mxu0
        %1795 = vmatprep.mubr.f32.mxu0 %v1289
        %1796 = vmatmul.mubr.f32.gmra.mrb[0].mxu0 %v1288
        %v1797 = vpop.f32.mrb[0].mxu0
        %v1798 = vadd.f32 %v1573, %v1797
        %v1799 = vpop.f32.mrb[0].mxu0
        %1800 = vmatprep.mubr.f32.mxu0 %v1293
        %1801 = vmatmul.mubr.f32.gmra.mrb[0].mxu0 %v1292
        %v1802 = vpop.f32.mrb[0].mxu0
        %v1803 = vadd.f32 %v1578, %v1802
        %v1804 = vpop.f32.mrb[0].mxu0
        %1805 = vmatprep.mubr.f32.mxu0 %v1297
        %1806 = vmatmul.mubr.f32.gmra.mrb[0].mxu0 %v1296
        %v1807 = vpop.f32.mrb[0].mxu0
        %v1808 = vadd.f32 %v1583, %v1807
        %v1809 = vpop.f32.mrb[0].mxu0
        %1810 = vmatprep.mubr.f32.mxu0 %v1301
        %1811 = vmatmul.mubr.f32.gmra.mrb[0].mxu0 %v1300
        %v1812 = vpop.f32.mrb[0].mxu0
        %v1813 = vadd.f32 %v1588, %v1812
        %v1814 = vpop.f32.mrb[0].mxu0
        %1815 = vmatprep.mubr.f32.mxu0 %v1305
        %1816 = vmatmul.mubr.f32.gmra.mrb[0].mxu0 %v1304
        %v1817 = vpop.f32.mrb[0].mxu0
        %v1818 = vadd.f32 %v1593, %v1817
        %v1819 = vpop.f32.mrb[0].mxu0
        %1820 = vmatprep.mubr.f32.mxu0 %v1309
        %1821 = vmatmul.mubr.f32.gmra.mrb[0].mxu0 %v1308
        %v1822 = vpop.f32.mrb[0].mxu0
        %v1823 = vadd.f32 %v1598, %v1822
        %v1824 = vpop.f32.mrb[0].mxu0
        %1825 = vmatprep.mubr.f32.mxu0 %v1313
        %1826 = vmatmul.mubr.f32.gmra.mrb[0].mxu0 %v1312
        %v1827 = vpop.f32.mrb[0].mxu0
        %v1828 = vadd.f32 %v1603, %v1827
        %v1829 = vpop.f32.mrb[0].mxu0
        %1830 = vmatprep.mubr.f32.mxu0 %v1317
        %1831 = vmatmul.mubr.f32.gmra.mrb[0].mxu0 %v1316
        %v1832 = vpop.f32.mrb[0].mxu0
        %v1833 = vadd.f32 %v1608, %v1832
        %v1834 = vpop.f32.mrb[0].mxu0
        %1835 = vmatprep.mubr.f32.mxu0 %v1321
        %1836 = vmatmul.mubr.f32.gmra.mrb[0].mxu0 %v1320
        %v1837 = vpop.f32.mrb[0].mxu0
        %v1838 = vadd.f32 %v1613, %v1837
        %v1839 = vpop.f32.mrb[0].mxu0
        %1840 = vmatprep.mubr.f32.mxu0 %v1325
        %1841 = vmatmul.mubr.f32.gmra.mrb[0].mxu0 %v1324
        %v1842 = vpop.f32.mrb[0].mxu0
        %v1843 = vadd.f32 %v1618, %v1842
        %v1844 = vpop.f32.mrb[0].mxu0
        %1845 = vmatprep.mubr.f32.mxu0 %v1329
        %1846 = vmatmul.mubr.f32.gmra.mrb[0].mxu0 %v1328
        %v1847 = vpop.f32.mrb[0].mxu0
        %v1848 = vadd.f32 %v1623, %v1847
        %v1849 = vpop.f32.mrb[0].mxu0
        %1850 = vdwg.mxu0
        %v1851 = vld [vmem:[%s476] sm:$0xff]
        %v1852 = vld [vmem:[%s476 + $0x8] sm:$0xff]
        %v1853 = vld [vmem:[%s476 + $0x10] sm:$0xff]
        %v1854 = vld [vmem:[%s476 + $0x18] sm:$0xff]
        %v1855 = vld [vmem:[%s476 + $0x20] sm:$0xff]
        %v1856 = vld [vmem:[%s476 + $0x28] sm:$0xff]
        %v1857 = vld [vmem:[%s476 + $0x30] sm:$0xff]
        %v1858 = vld [vmem:[%s476 + $0x38] sm:$0xff]
        %v1859 = vld [vmem:[%s476 + $0x40] sm:$0xff]
        %v1860 = vld [vmem:[%s476 + $0x48] sm:$0xff]
        %v1861 = vld [vmem:[%s476 + $0x50] sm:$0xff]
        %v1862 = vld [vmem:[%s476 + $0x58] sm:$0xff]
        %v1863 = vld [vmem:[%s476 + $0x60] sm:$0xff]
        %v1864 = vld [vmem:[%s476 + $0x68] sm:$0xff]
        %v1865 = vld [vmem:[%s476 + $0x70] sm:$0xff]
        %v1866 = vld [vmem:[%s476 + $0x78] sm:$0xff]
        %v1867 = vld [vmem:[%s476 + $0x80] sm:$0xff]
        %v1868 = vld [vmem:[%s476 + $0x88] sm:$0xff]
        %v1869 = vld [vmem:[%s476 + $0x90] sm:$0xff]
        %v1870 = vld [vmem:[%s476 + $0x98] sm:$0xff]
        %v1871 = vld [vmem:[%s476 + $0xa0] sm:$0xff]
        %v1872 = vld [vmem:[%s476 + $0xa8] sm:$0xff]
        %v1873 = vld [vmem:[%s476 + $0xb0] sm:$0xff]
        %v1874 = vld [vmem:[%s476 + $0xb8] sm:$0xff]
        %v1875 = vld [vmem:[%s476 + $0xc0] sm:$0xff]
        %v1876 = vld [vmem:[%s476 + $0xc8] sm:$0xff]
        %v1877 = vld [vmem:[%s476 + $0xd0] sm:$0xff]
        %v1878 = vld [vmem:[%s476 + $0xd8] sm:$0xff]
        %v1879 = vld [vmem:[%s476 + $0xe0] sm:$0xff]
        %v1880 = vld [vmem:[%s476 + $0xe8] sm:$0xff]
        %v1881 = vld [vmem:[%s476 + $0xf0] sm:$0xff]
        %v1882 = vld [vmem:[%s476 + $0xf8] sm:$0xff]
        %v1883 = vld [vmem:[%s476 + $0x100] sm:$0xff]
        %v1884 = vld [vmem:[%s476 + $0x108] sm:$0xff]
        %v1885 = vld [vmem:[%s476 + $0x110] sm:$0xff]
        %v1886 = vld [vmem:[%s476 + $0x118] sm:$0xff]
        %v1887 = vld [vmem:[%s476 + $0x120] sm:$0xff]
        %v1888 = vld [vmem:[%s476 + $0x128] sm:$0xff]
        %v1889 = vld [vmem:[%s476 + $0x130] sm:$0xff]
        %v1890 = vld [vmem:[%s476 + $0x138] sm:$0xff]
        %v1891 = vld [vmem:[%s476 + $0x140] sm:$0xff]
        %v1892 = vld [vmem:[%s476 + $0x148] sm:$0xff]
        %v1893 = vld [vmem:[%s476 + $0x150] sm:$0xff]
        %v1894 = vld [vmem:[%s476 + $0x158] sm:$0xff]
        %v1895 = vld [vmem:[%s476 + $0x160] sm:$0xff]
        %v1896 = vld [vmem:[%s476 + $0x168] sm:$0xff]
        %v1897 = vld [vmem:[%s476 + $0x170] sm:$0xff]
        %v1898 = vld [vmem:[%s476 + $0x178] sm:$0xff]
        %v1899 = vld [vmem:[%s476 + $0x180] sm:$0xff]
        %v1900 = vld [vmem:[%s476 + $0x188] sm:$0xff]
        %v1901 = vld [vmem:[%s476 + $0x190] sm:$0xff]
        %v1902 = vld [vmem:[%s476 + $0x198] sm:$0xff]
        %v1903 = vld [vmem:[%s476 + $0x1a0] sm:$0xff]
        %v1904 = vld [vmem:[%s476 + $0x1a8] sm:$0xff]
        %v1905 = vld [vmem:[%s476 + $0x1b0] sm:$0xff]
        %v1906 = vld [vmem:[%s476 + $0x1b8] sm:$0xff]
        %v1907 = vld [vmem:[%s476 + $0x1c0] sm:$0xff]
        %v1908 = vld [vmem:[%s476 + $0x1c8] sm:$0xff]
        %v1909 = vld [vmem:[%s476 + $0x1d0] sm:$0xff]
        %v1910 = vld [vmem:[%s476 + $0x1d8] sm:$0xff]
        %v1911 = vld [vmem:[%s476 + $0x1e0] sm:$0xff]
        %v1912 = vld [vmem:[%s476 + $0x1e8] sm:$0xff]
        %v1913 = vld [vmem:[%s476 + $0x1f0] sm:$0xff]
        %v1914 = vld [vmem:[%s476 + $0x1f8] sm:$0xff]
        %v1915 = vld [vmem:[%s476 + $0x200] sm:$0xff]
        %v1916 = vld [vmem:[%s476 + $0x208] sm:$0xff]
        %v1917 = vld [vmem:[%s476 + $0x210] sm:$0xff]
        %v1918 = vld [vmem:[%s476 + $0x218] sm:$0xff]
        %v1919 = vld [vmem:[%s476 + $0x220] sm:$0xff]
        %v1920 = vld [vmem:[%s476 + $0x228] sm:$0xff]
        %v1921 = vld [vmem:[%s476 + $0x230] sm:$0xff]
        %v1922 = vld [vmem:[%s476 + $0x238] sm:$0xff]
        %v1923 = vld [vmem:[%s476 + $0x240] sm:$0xff]
        %v1924 = vld [vmem:[%s476 + $0x248] sm:$0xff]
        %v1925 = vld [vmem:[%s476 + $0x250] sm:$0xff]
        %v1926 = vld [vmem:[%s476 + $0x258] sm:$0xff]
        %v1927 = vld [vmem:[%s476 + $0x260] sm:$0xff]
        %v1928 = vld [vmem:[%s476 + $0x268] sm:$0xff]
        %v1929 = vld [vmem:[%s476 + $0x270] sm:$0xff]
        %v1930 = vld [vmem:[%s476 + $0x278] sm:$0xff]
        %v1931 = vld [vmem:[%s476 + $0x280] sm:$0xff]
        %v1932 = vld [vmem:[%s476 + $0x288] sm:$0xff]
        %v1933 = vld [vmem:[%s476 + $0x290] sm:$0xff]
        %v1934 = vld [vmem:[%s476 + $0x298] sm:$0xff]
        %v1935 = vld [vmem:[%s476 + $0x2a0] sm:$0xff]
        %v1936 = vld [vmem:[%s476 + $0x2a8] sm:$0xff]
        %v1937 = vld [vmem:[%s476 + $0x2b0] sm:$0xff]
        %v1938 = vld [vmem:[%s476 + $0x2b8] sm:$0xff]
        %v1939 = vld [vmem:[%s476 + $0x2c0] sm:$0xff]
        %v1940 = vld [vmem:[%s476 + $0x2c8] sm:$0xff]
        %v1941 = vld [vmem:[%s476 + $0x2d0] sm:$0xff]
        %v1942 = vld [vmem:[%s476 + $0x2d8] sm:$0xff]
        %v1943 = vld [vmem:[%s476 + $0x2e0] sm:$0xff]
        %v1944 = vld [vmem:[%s476 + $0x2e8] sm:$0xff]
        %v1945 = vld [vmem:[%s476 + $0x2f0] sm:$0xff]
        %v1946 = vld [vmem:[%s476 + $0x2f8] sm:$0xff]
        %v1947 = vld [vmem:[%s476 + $0x300] sm:$0xff]
        %v1948 = vld [vmem:[%s476 + $0x308] sm:$0xff]
        %v1949 = vld [vmem:[%s476 + $0x310] sm:$0xff]
        %v1950 = vld [vmem:[%s476 + $0x318] sm:$0xff]
        %v1951 = vld [vmem:[%s476 + $0x320] sm:$0xff]
        %v1952 = vld [vmem:[%s476 + $0x328] sm:$0xff]
        %v1953 = vld [vmem:[%s476 + $0x330] sm:$0xff]
        %v1954 = vld [vmem:[%s476 + $0x338] sm:$0xff]
        %v1955 = vld [vmem:[%s476 + $0x340] sm:$0xff]
        %v1956 = vld [vmem:[%s476 + $0x348] sm:$0xff]
        %v1957 = vld [vmem:[%s476 + $0x350] sm:$0xff]
        %v1958 = vld [vmem:[%s476 + $0x358] sm:$0xff]
        %v1959 = vld [vmem:[%s476 + $0x360] sm:$0xff]
        %v1960 = vld [vmem:[%s476 + $0x368] sm:$0xff]
        %v1961 = vld [vmem:[%s476 + $0x370] sm:$0xff]
        %v1962 = vld [vmem:[%s476 + $0x378] sm:$0xff]
        %v1963 = vld [vmem:[%s476 + $0x380] sm:$0xff]
        %v1964 = vld [vmem:[%s476 + $0x388] sm:$0xff]
        %v1965 = vld [vmem:[%s476 + $0x390] sm:$0xff]
        %v1966 = vld [vmem:[%s476 + $0x398] sm:$0xff]
        %v1967 = vld [vmem:[%s476 + $0x3a0] sm:$0xff]
        %v1968 = vld [vmem:[%s476 + $0x3a8] sm:$0xff]
        %v1969 = vld [vmem:[%s476 + $0x3b0] sm:$0xff]
        %v1970 = vld [vmem:[%s476 + $0x3b8] sm:$0xff]
        %v1971 = vld [vmem:[%s476 + $0x3c0] sm:$0xff]
        %v1972 = vld [vmem:[%s476 + $0x3c8] sm:$0xff]
        %v1973 = vld [vmem:[%s476 + $0x3d0] sm:$0xff]
        %v1974 = vld [vmem:[%s476 + $0x3d8] sm:$0xff]
        %v1975 = vld [vmem:[%s476 + $0x3e0] sm:$0xff]
        %v1976 = vld [vmem:[%s476 + $0x3e8] sm:$0xff]
        %v1977 = vld [vmem:[%s476 + $0x3f0] sm:$0xff]
        %v1978 = vld [vmem:[%s476 + $0x3f8] sm:$0xff]
        %v1979 = vld [vmem:[#allocation11] sm:$0xff]
        %v1980 = vld [vmem:[#allocation11 + $0x8] sm:$0xff]
        %v1981 = vld [vmem:[#allocation11 + $0x10] sm:$0xff]
        %v1982 = vld [vmem:[#allocation11 + $0x18] sm:$0xff]
        %v1983 = vld [vmem:[#allocation11 + $0x20] sm:$0xff]
        %v1984 = vld [vmem:[#allocation11 + $0x28] sm:$0xff]
        %v1985 = vld [vmem:[#allocation11 + $0x30] sm:$0xff]
        %v1986 = vld [vmem:[#allocation11 + $0x38] sm:$0xff]
        %v1987 = vld [vmem:[#allocation11 + $0x40] sm:$0xff]
        %v1988 = vld [vmem:[#allocation11 + $0x48] sm:$0xff]
        %v1989 = vld [vmem:[#allocation11 + $0x50] sm:$0xff]
        %v1990 = vld [vmem:[#allocation11 + $0x58] sm:$0xff]
        %v1991 = vld [vmem:[#allocation11 + $0x60] sm:$0xff]
        %v1992 = vld [vmem:[#allocation11 + $0x68] sm:$0xff]
        %v1993 = vld [vmem:[#allocation11 + $0x70] sm:$0xff]
        %v1994 = vld [vmem:[#allocation11 + $0x78] sm:$0xff]
        %v1995 = vld [vmem:[#allocation11 + $0x80] sm:$0xff]
        %v1996 = vld [vmem:[#allocation11 + $0x88] sm:$0xff]
        %v1997 = vld [vmem:[#allocation11 + $0x90] sm:$0xff]
        %v1998 = vld [vmem:[#allocation11 + $0x98] sm:$0xff]
        %v1999 = vld [vmem:[#allocation11 + $0xa0] sm:$0xff]
        %v2000 = vld [vmem:[#allocation11 + $0xa8] sm:$0xff]
        %v2001 = vld [vmem:[#allocation11 + $0xb0] sm:$0xff]
        %v2002 = vld [vmem:[#allocation11 + $0xb8] sm:$0xff]
        %v2003 = vld [vmem:[#allocation11 + $0xc0] sm:$0xff]
        %v2004 = vld [vmem:[#allocation11 + $0xc8] sm:$0xff]
        %v2005 = vld [vmem:[#allocation11 + $0xd0] sm:$0xff]
        %v2006 = vld [vmem:[#allocation11 + $0xd8] sm:$0xff]
        %v2007 = vld [vmem:[#allocation11 + $0xe0] sm:$0xff]
        %v2008 = vld [vmem:[#allocation11 + $0xe8] sm:$0xff]
        %v2009 = vld [vmem:[#allocation11 + $0xf0] sm:$0xff]
        %v2010 = vld [vmem:[#allocation11 + $0xf8] sm:$0xff]
        %v2011 = vld [vmem:[#allocation11 + $0x100] sm:$0xff]
        %v2012 = vld [vmem:[#allocation11 + $0x108] sm:$0xff]
        %v2013 = vld [vmem:[#allocation11 + $0x110] sm:$0xff]
        %v2014 = vld [vmem:[#allocation11 + $0x118] sm:$0xff]
        %v2015 = vld [vmem:[#allocation11 + $0x120] sm:$0xff]
        %v2016 = vld [vmem:[#allocation11 + $0x128] sm:$0xff]
        %v2017 = vld [vmem:[#allocation11 + $0x130] sm:$0xff]
        %v2018 = vld [vmem:[#allocation11 + $0x138] sm:$0xff]
        %v2019 = vld [vmem:[#allocation11 + $0x140] sm:$0xff]
        %v2020 = vld [vmem:[#allocation11 + $0x148] sm:$0xff]
        %v2021 = vld [vmem:[#allocation11 + $0x150] sm:$0xff]
        %v2022 = vld [vmem:[#allocation11 + $0x158] sm:$0xff]
        %v2023 = vld [vmem:[#allocation11 + $0x160] sm:$0xff]
        %v2024 = vld [vmem:[#allocation11 + $0x168] sm:$0xff]
        %v2025 = vld [vmem:[#allocation11 + $0x170] sm:$0xff]
        %v2026 = vld [vmem:[#allocation11 + $0x178] sm:$0xff]
        %v2027 = vld [vmem:[#allocation11 + $0x180] sm:$0xff]
        %v2028 = vld [vmem:[#allocation11 + $0x188] sm:$0xff]
        %v2029 = vld [vmem:[#allocation11 + $0x190] sm:$0xff]
        %v2030 = vld [vmem:[#allocation11 + $0x198] sm:$0xff]
        %v2031 = vld [vmem:[#allocation11 + $0x1a0] sm:$0xff]
        %v2032 = vld [vmem:[#allocation11 + $0x1a8] sm:$0xff]
        %v2033 = vld [vmem:[#allocation11 + $0x1b0] sm:$0xff]
        %v2034 = vld [vmem:[#allocation11 + $0x1b8] sm:$0xff]
        %v2035 = vld [vmem:[#allocation11 + $0x1c0] sm:$0xff]
        %v2036 = vld [vmem:[#allocation11 + $0x1c8] sm:$0xff]
        %v2037 = vld [vmem:[#allocation11 + $0x1d0] sm:$0xff]
        %v2038 = vld [vmem:[#allocation11 + $0x1d8] sm:$0xff]
        %v2039 = vld [vmem:[#allocation11 + $0x1e0] sm:$0xff]
        %v2040 = vld [vmem:[#allocation11 + $0x1e8] sm:$0xff]
        %v2041 = vld [vmem:[#allocation11 + $0x1f0] sm:$0xff]
        %v2042 = vld [vmem:[#allocation11 + $0x1f8] sm:$0xff]
        %v2043 = vld [vmem:[%s8] sm:$0x1]
        %v2045 = vlaneseq
        %v2046 = vshrl.u32 %v2045, 7
        %v2047 = vsub.s32 0, %v2046
        %v2048 = vrot.slane %v2043, %v2047
        %2050 = vmatprep.subr.mxu0 0.0
        %2051 = vmatpush1.msra.mxu0 %v1979
        %2052 = vmatprep.subr.mxu0 0.0
        %2053 = vmatpush1.msra.mxu0 %v1980
        %2054 = vmatprep.subr.mxu0 0.0
        %2055 = vmatpush1.msra.mxu0 %v1981
        %2056 = vmatprep.subr.mxu0 0.0
        %2057 = vmatpush1.msra.mxu0 %v1982
        %2058 = vmatprep.subr.mxu0 0.0
        %2059 = vmatpush1.msra.mxu0 %v1983
        %2060 = vmatprep.subr.mxu0 0.0
        %2061 = vmatpush1.msra.mxu0 %v1984
        %2062 = vmatprep.subr.mxu0 0.0
        %2063 = vmatpush1.msra.mxu0 %v1985
        %2064 = vmatprep.subr.mxu0 0.0
        %2065 = vmatpush1.msra.mxu0 %v1986
        %2066 = vmatprep.subr.mxu0 0.0
        %2067 = vmatpush1.msra.mxu0 %v1987
        %2068 = vmatprep.subr.mxu0 0.0
        %2069 = vmatpush1.msra.mxu0 %v1988
        %2070 = vmatprep.subr.mxu0 0.0
        %2071 = vmatpush1.msra.mxu0 %v1989
        %2072 = vmatprep.subr.mxu0 0.0
        %2073 = vmatpush1.msra.mxu0 %v1990
        %2074 = vmatprep.subr.mxu0 0.0
        %2075 = vmatpush1.msra.mxu0 %v1991
        %2076 = vmatprep.subr.mxu0 0.0
        %2077 = vmatpush1.msra.mxu0 %v1992
        %2078 = vmatprep.subr.mxu0 0.0
        %2079 = vmatpush1.msra.mxu0 %v1993
        %2080 = vmatprep.subr.mxu0 0.0
        %2081 = vmatpush1.msra.mxu0 %v1994
        %2082 = vmatprep.subr.mxu0 0.0
        %2083 = vmatpush1.msra.mxu0 %v1995
        %2084 = vmatprep.subr.mxu0 0.0
        %2085 = vmatpush1.msra.mxu0 %v1996
        %2086 = vmatprep.subr.mxu0 0.0
        %2087 = vmatpush1.msra.mxu0 %v1997
        %2088 = vmatprep.subr.mxu0 0.0
        %2089 = vmatpush1.msra.mxu0 %v1998
        %2090 = vmatprep.subr.mxu0 0.0
        %2091 = vmatpush1.msra.mxu0 %v1999
        %2092 = vmatprep.subr.mxu0 0.0
        %2093 = vmatpush1.msra.mxu0 %v2000
        %2094 = vmatprep.subr.mxu0 0.0
        %2095 = vmatpush1.msra.mxu0 %v2001
        %2096 = vmatprep.subr.mxu0 0.0
        %2097 = vmatpush1.msra.mxu0 %v2002
        %2098 = vmatprep.subr.mxu0 0.0
        %2099 = vmatpush1.msra.mxu0 %v2003
        %2100 = vmatprep.subr.mxu0 0.0
        %2101 = vmatpush1.msra.mxu0 %v2004
        %2102 = vmatprep.subr.mxu0 0.0
        %2103 = vmatpush1.msra.mxu0 %v2005
        %2104 = vmatprep.subr.mxu0 0.0
        %2105 = vmatpush1.msra.mxu0 %v2006
        %2106 = vmatprep.subr.mxu0 0.0
        %2107 = vmatpush1.msra.mxu0 %v2007
        %2108 = vmatprep.subr.mxu0 0.0
        %2109 = vmatpush1.msra.mxu0 %v2008
        %2110 = vmatprep.subr.mxu0 0.0
        %2111 = vmatpush1.msra.mxu0 %v2009
        %2112 = vmatprep.subr.mxu0 0.0
        %2113 = vmatpush1.msra.mxu0 %v2010
        %2114 = vmatprep.mubr.f32.mxu0 %v1852
        %2115 = vmatmul.mubr.f32.gmra.mrb[0].mxu0 %v1851
        %v2116 = vpop.f32.mrb[0].mxu0
        %v2117 = vadd.f32 %v2048, %v2116
        %v2118 = vpop.f32.mrb[0].mxu0
        %2119 = vmatprep.mubr.f32.mxu0 %v1856
        %2120 = vmatmul.mubr.f32.gmra.mrb[0].mxu0 %v1855
        %v2121 = vpop.f32.mrb[0].mxu0
        %v2122 = vadd.f32 %v2048, %v2121
        %v2123 = vpop.f32.mrb[0].mxu0
        %2124 = vmatprep.mubr.f32.mxu0 %v1860
        %2125 = vmatmul.mubr.f32.gmra.mrb[0].mxu0 %v1859
        %v2126 = vpop.f32.mrb[0].mxu0
        %v2127 = vadd.f32 %v2048, %v2126
        %v2128 = vpop.f32.mrb[0].mxu0
        %2129 = vmatprep.mubr.f32.mxu0 %v1864
        %2130 = vmatmul.mubr.f32.gmra.mrb[0].mxu0 %v1863
        %v2131 = vpop.f32.mrb[0].mxu0
        %v2132 = vadd.f32 %v2048, %v2131
        %v2133 = vpop.f32.mrb[0].mxu0
        %2134 = vmatprep.mubr.f32.mxu0 %v1868
        %2135 = vmatmul.mubr.f32.gmra.mrb[0].mxu0 %v1867
        %v2136 = vpop.f32.mrb[0].mxu0
        %v2137 = vadd.f32 %v2048, %v2136
        %v2138 = vpop.f32.mrb[0].mxu0
        %2139 = vmatprep.mubr.f32.mxu0 %v1872
        %2140 = vmatmul.mubr.f32.gmra.mrb[0].mxu0 %v1871
        %v2141 = vpop.f32.mrb[0].mxu0
        %v2142 = vadd.f32 %v2048, %v2141
        %v2143 = vpop.f32.mrb[0].mxu0
        %2144 = vmatprep.mubr.f32.mxu0 %v1876
        %2145 = vmatmul.mubr.f32.gmra.mrb[0].mxu0 %v1875
        %v2146 = vpop.f32.mrb[0].mxu0
        %v2147 = vadd.f32 %v2048, %v2146
        %v2148 = vpop.f32.mrb[0].mxu0
        %2149 = vmatprep.mubr.f32.mxu0 %v1880
        %2150 = vmatmul.mubr.f32.gmra.mrb[0].mxu0 %v1879
        %v2151 = vpop.f32.mrb[0].mxu0
        %v2152 = vadd.f32 %v2048, %v2151
        %v2153 = vpop.f32.mrb[0].mxu0
        %2154 = vmatprep.mubr.f32.mxu0 %v1884
        %2155 = vmatmul.mubr.f32.gmra.mrb[0].mxu0 %v1883
        %v2156 = vpop.f32.mrb[0].mxu0
        %v2157 = vadd.f32 %v2048, %v2156
        %v2158 = vpop.f32.mrb[0].mxu0
        %2159 = vmatprep.mubr.f32.mxu0 %v1888
        %2160 = vmatmul.mubr.f32.gmra.mrb[0].mxu0 %v1887
        %v2161 = vpop.f32.mrb[0].mxu0
        %v2162 = vadd.f32 %v2048, %v2161
        %v2163 = vpop.f32.mrb[0].mxu0
        %2164 = vmatprep.mubr.f32.mxu0 %v1892
        %2165 = vmatmul.mubr.f32.gmra.mrb[0].mxu0 %v1891
        %v2166 = vpop.f32.mrb[0].mxu0
        %v2167 = vadd.f32 %v2048, %v2166
        %v2168 = vpop.f32.mrb[0].mxu0
        %2169 = vmatprep.mubr.f32.mxu0 %v1896
        %2170 = vmatmul.mubr.f32.gmra.mrb[0].mxu0 %v1895
        %v2171 = vpop.f32.mrb[0].mxu0
        %v2172 = vadd.f32 %v2048, %v2171
        %v2173 = vpop.f32.mrb[0].mxu0
        %2174 = vmatprep.mubr.f32.mxu0 %v1900
        %2175 = vmatmul.mubr.f32.gmra.mrb[0].mxu0 %v1899
        %v2176 = vpop.f32.mrb[0].mxu0
        %v2177 = vadd.f32 %v2048, %v2176
        %v2178 = vpop.f32.mrb[0].mxu0
        %2179 = vmatprep.mubr.f32.mxu0 %v1904
        %2180 = vmatmul.mubr.f32.gmra.mrb[0].mxu0 %v1903
        %v2181 = vpop.f32.mrb[0].mxu0
        %v2182 = vadd.f32 %v2048, %v2181
        %v2183 = vpop.f32.mrb[0].mxu0
        %2184 = vmatprep.mubr.f32.mxu0 %v1908
        %2185 = vmatmul.mubr.f32.gmra.mrb[0].mxu0 %v1907
        %v2186 = vpop.f32.mrb[0].mxu0
        %v2187 = vadd.f32 %v2048, %v2186
        %v2188 = vpop.f32.mrb[0].mxu0
        %2189 = vmatprep.mubr.f32.mxu0 %v1912
        %2190 = vmatmul.mubr.f32.gmra.mrb[0].mxu0 %v1911
        %v2191 = vpop.f32.mrb[0].mxu0
        %v2192 = vadd.f32 %v2048, %v2191
        %v2193 = vpop.f32.mrb[0].mxu0
        %2194 = vmatprep.mubr.f32.mxu0 %v1916
        %2195 = vmatmul.mubr.f32.gmra.mrb[0].mxu0 %v1915
        %v2196 = vpop.f32.mrb[0].mxu0
        %v2197 = vadd.f32 %v2048, %v2196
        %v2198 = vpop.f32.mrb[0].mxu0
        %2199 = vmatprep.mubr.f32.mxu0 %v1920
        %2200 = vmatmul.mubr.f32.gmra.mrb[0].mxu0 %v1919
        %v2201 = vpop.f32.mrb[0].mxu0
        %v2202 = vadd.f32 %v2048, %v2201
        %v2203 = vpop.f32.mrb[0].mxu0
        %2204 = vmatprep.mubr.f32.mxu0 %v1924
        %2205 = vmatmul.mubr.f32.gmra.mrb[0].mxu0 %v1923
        %v2206 = vpop.f32.mrb[0].mxu0
        %v2207 = vadd.f32 %v2048, %v2206
        %v2208 = vpop.f32.mrb[0].mxu0
        %2209 = vmatprep.mubr.f32.mxu0 %v1928
        %2210 = vmatmul.mubr.f32.gmra.mrb[0].mxu0 %v1927
        %v2211 = vpop.f32.mrb[0].mxu0
        %v2212 = vadd.f32 %v2048, %v2211
        %v2213 = vpop.f32.mrb[0].mxu0
        %2214 = vmatprep.mubr.f32.mxu0 %v1932
        %2215 = vmatmul.mubr.f32.gmra.mrb[0].mxu0 %v1931
        %v2216 = vpop.f32.mrb[0].mxu0
        %v2217 = vadd.f32 %v2048, %v2216
        %v2218 = vpop.f32.mrb[0].mxu0
        %2219 = vmatprep.mubr.f32.mxu0 %v1936
        %2220 = vmatmul.mubr.f32.gmra.mrb[0].mxu0 %v1935
        %v2221 = vpop.f32.mrb[0].mxu0
        %v2222 = vadd.f32 %v2048, %v2221
        %v2223 = vpop.f32.mrb[0].mxu0
        %2224 = vmatprep.mubr.f32.mxu0 %v1940
        %2225 = vmatmul.mubr.f32.gmra.mrb[0].mxu0 %v1939
        %v2226 = vpop.f32.mrb[0].mxu0
        %v2227 = vadd.f32 %v2048, %v2226
        %v2228 = vpop.f32.mrb[0].mxu0
        %2229 = vmatprep.mubr.f32.mxu0 %v1944
        %2230 = vmatmul.mubr.f32.gmra.mrb[0].mxu0 %v1943
        %v2231 = vpop.f32.mrb[0].mxu0
        %v2232 = vadd.f32 %v2048, %v2231
        %v2233 = vpop.f32.mrb[0].mxu0
        %2234 = vmatprep.mubr.f32.mxu0 %v1948
        %2235 = vmatmul.mubr.f32.gmra.mrb[0].mxu0 %v1947
        %v2236 = vpop.f32.mrb[0].mxu0
        %v2237 = vadd.f32 %v2048, %v2236
        %v2238 = vpop.f32.mrb[0].mxu0
        %2239 = vmatprep.mubr.f32.mxu0 %v1952
        %2240 = vmatmul.mubr.f32.gmra.mrb[0].mxu0 %v1951
        %v2241 = vpop.f32.mrb[0].mxu0
        %v2242 = vadd.f32 %v2048, %v2241
        %v2243 = vpop.f32.mrb[0].mxu0
        %2244 = vmatprep.mubr.f32.mxu0 %v1956
        %2245 = vmatmul.mubr.f32.gmra.mrb[0].mxu0 %v1955
        %v2246 = vpop.f32.mrb[0].mxu0
        %v2247 = vadd.f32 %v2048, %v2246
        %v2248 = vpop.f32.mrb[0].mxu0
        %2249 = vmatprep.mubr.f32.mxu0 %v1960
        %2250 = vmatmul.mubr.f32.gmra.mrb[0].mxu0 %v1959
        %v2251 = vpop.f32.mrb[0].mxu0
        %v2252 = vadd.f32 %v2048, %v2251
        %v2253 = vpop.f32.mrb[0].mxu0
        %2254 = vmatprep.mubr.f32.mxu0 %v1964
        %2255 = vmatmul.mubr.f32.gmra.mrb[0].mxu0 %v1963
        %v2256 = vpop.f32.mrb[0].mxu0
        %v2257 = vadd.f32 %v2048, %v2256
        %v2258 = vpop.f32.mrb[0].mxu0
        %2259 = vmatprep.mubr.f32.mxu0 %v1968
        %2260 = vmatmul.mubr.f32.gmra.mrb[0].mxu0 %v1967
        %v2261 = vpop.f32.mrb[0].mxu0
        %v2262 = vadd.f32 %v2048, %v2261
        %v2263 = vpop.f32.mrb[0].mxu0
        %2264 = vmatprep.mubr.f32.mxu0 %v1972
        %2265 = vmatmul.mubr.f32.gmra.mrb[0].mxu0 %v1971
        %v2266 = vpop.f32.mrb[0].mxu0
        %v2267 = vadd.f32 %v2048, %v2266
        %v2268 = vpop.f32.mrb[0].mxu0
        %2269 = vmatprep.mubr.f32.mxu0 %v1976
        %2270 = vmatmul.mubr.f32.gmra.mrb[0].mxu0 %v1975
        %v2271 = vpop.f32.mrb[0].mxu0
        %v2272 = vadd.f32 %v2048, %v2271
        %v2273 = vpop.f32.mrb[0].mxu0
        %2274 = vdwg.mxu0
        %2275 = vmatprep.subr.mxu0 0.0
        %2276 = vmatpush1.msra.mxu0 %v2011
        %2277 = vmatprep.subr.mxu0 0.0
        %2278 = vmatpush1.msra.mxu0 %v2012
        %2279 = vmatprep.subr.mxu0 0.0
        %2280 = vmatpush1.msra.mxu0 %v2013
        %2281 = vmatprep.subr.mxu0 0.0
        %2282 = vmatpush1.msra.mxu0 %v2014
        %2283 = vmatprep.subr.mxu0 0.0
        %2284 = vmatpush1.msra.mxu0 %v2015
        %2285 = vmatprep.subr.mxu0 0.0
        %2286 = vmatpush1.msra.mxu0 %v2016
        %2287 = vmatprep.subr.mxu0 0.0
        %2288 = vmatpush1.msra.mxu0 %v2017
        %2289 = vmatprep.subr.mxu0 0.0
        %2290 = vmatpush1.msra.mxu0 %v2018
        %2291 = vmatprep.subr.mxu0 0.0
        %2292 = vmatpush1.msra.mxu0 %v2019
        %2293 = vmatprep.subr.mxu0 0.0
        %2294 = vmatpush1.msra.mxu0 %v2020
        %2295 = vmatprep.subr.mxu0 0.0
        %2296 = vmatpush1.msra.mxu0 %v2021
        %2297 = vmatprep.subr.mxu0 0.0
        %2298 = vmatpush1.msra.mxu0 %v2022
        %2299 = vmatprep.subr.mxu0 0.0
        %2300 = vmatpush1.msra.mxu0 %v2023
        %2301 = vmatprep.subr.mxu0 0.0
        %2302 = vmatpush1.msra.mxu0 %v2024
        %2303 = vmatprep.subr.mxu0 0.0
        %2304 = vmatpush1.msra.mxu0 %v2025
        %2305 = vmatprep.subr.mxu0 0.0
        %2306 = vmatpush1.msra.mxu0 %v2026
        %2307 = vmatprep.subr.mxu0 0.0
        %2308 = vmatpush1.msra.mxu0 %v2027
        %2309 = vmatprep.subr.mxu0 0.0
        %2310 = vmatpush1.msra.mxu0 %v2028
        %2311 = vmatprep.subr.mxu0 0.0
        %2312 = vmatpush1.msra.mxu0 %v2029
        %2313 = vmatprep.subr.mxu0 0.0
        %2314 = vmatpush1.msra.mxu0 %v2030
        %2315 = vmatprep.subr.mxu0 0.0
        %2316 = vmatpush1.msra.mxu0 %v2031
        %2317 = vmatprep.subr.mxu0 0.0
        %2318 = vmatpush1.msra.mxu0 %v2032
        %2319 = vmatprep.subr.mxu0 0.0
        %2320 = vmatpush1.msra.mxu0 %v2033
        %2321 = vmatprep.subr.mxu0 0.0
        %2322 = vmatpush1.msra.mxu0 %v2034
        %2323 = vmatprep.subr.mxu0 0.0
        %2324 = vmatpush1.msra.mxu0 %v2035
        %2325 = vmatprep.subr.mxu0 0.0
        %2326 = vmatpush1.msra.mxu0 %v2036
        %2327 = vmatprep.subr.mxu0 0.0
        %2328 = vmatpush1.msra.mxu0 %v2037
        %2329 = vmatprep.subr.mxu0 0.0
        %2330 = vmatpush1.msra.mxu0 %v2038
        %2331 = vmatprep.subr.mxu0 0.0
        %2332 = vmatpush1.msra.mxu0 %v2039
        %2333 = vmatprep.subr.mxu0 0.0
        %2334 = vmatpush1.msra.mxu0 %v2040
        %2335 = vmatprep.subr.mxu0 0.0
        %2336 = vmatpush1.msra.mxu0 %v2041
        %2337 = vmatprep.subr.mxu0 0.0
        %2338 = vmatpush1.msra.mxu0 %v2042
        %2339 = vmatprep.mubr.f32.mxu0 %v1854
        %2340 = vmatmul.mubr.f32.gmra.mrb[0].mxu0 %v1853
        %v2341 = vpop.f32.mrb[0].mxu0
        %v2342 = vadd.f32 %v2117, %v2341
        %v2343 = vpop.f32.mrb[0].mxu0
        %2344 = vmatprep.mubr.f32.mxu0 %v1858
        %2345 = vmatmul.mubr.f32.gmra.mrb[0].mxu0 %v1857
        %v2346 = vpop.f32.mrb[0].mxu0
        %v2347 = vadd.f32 %v2122, %v2346
        %v2348 = vpop.f32.mrb[0].mxu0
        %2349 = vmatprep.mubr.f32.mxu0 %v1862
        %2350 = vmatmul.mubr.f32.gmra.mrb[0].mxu0 %v1861
        %v2351 = vpop.f32.mrb[0].mxu0
        %v2352 = vadd.f32 %v2127, %v2351
        %v2353 = vpop.f32.mrb[0].mxu0
        %2354 = vmatprep.mubr.f32.mxu0 %v1866
        %2355 = vmatmul.mubr.f32.gmra.mrb[0].mxu0 %v1865
        %v2356 = vpop.f32.mrb[0].mxu0
        %v2357 = vadd.f32 %v2132, %v2356
        %v2358 = vpop.f32.mrb[0].mxu0
        %2359 = vmatprep.mubr.f32.mxu0 %v1870
        %2360 = vmatmul.mubr.f32.gmra.mrb[0].mxu0 %v1869
        %v2361 = vpop.f32.mrb[0].mxu0
        %v2362 = vadd.f32 %v2137, %v2361
        %v2363 = vpop.f32.mrb[0].mxu0
        %2364 = vmatprep.mubr.f32.mxu0 %v1874
        %2365 = vmatmul.mubr.f32.gmra.mrb[0].mxu0 %v1873
        %v2366 = vpop.f32.mrb[0].mxu0
        %v2367 = vadd.f32 %v2142, %v2366
        %v2368 = vpop.f32.mrb[0].mxu0
        %2369 = vmatprep.mubr.f32.mxu0 %v1878
        %2370 = vmatmul.mubr.f32.gmra.mrb[0].mxu0 %v1877
        %v2371 = vpop.f32.mrb[0].mxu0
        %v2372 = vadd.f32 %v2147, %v2371
        %v2373 = vpop.f32.mrb[0].mxu0
        %2374 = vmatprep.mubr.f32.mxu0 %v1882
        %2375 = vmatmul.mubr.f32.gmra.mrb[0].mxu0 %v1881
        %v2376 = vpop.f32.mrb[0].mxu0
        %v2377 = vadd.f32 %v2152, %v2376
        %v2378 = vpop.f32.mrb[0].mxu0
        %2379 = vmatprep.mubr.f32.mxu0 %v1886
        %2380 = vmatmul.mubr.f32.gmra.mrb[0].mxu0 %v1885
        %v2381 = vpop.f32.mrb[0].mxu0
        %v2382 = vadd.f32 %v2157, %v2381
        %v2383 = vpop.f32.mrb[0].mxu0
        %2384 = vmatprep.mubr.f32.mxu0 %v1890
        %2385 = vmatmul.mubr.f32.gmra.mrb[0].mxu0 %v1889
        %v2386 = vpop.f32.mrb[0].mxu0
        %v2387 = vadd.f32 %v2162, %v2386
        %v2388 = vpop.f32.mrb[0].mxu0
        %2389 = vmatprep.mubr.f32.mxu0 %v1894
        %2390 = vmatmul.mubr.f32.gmra.mrb[0].mxu0 %v1893
        %v2391 = vpop.f32.mrb[0].mxu0
        %v2392 = vadd.f32 %v2167, %v2391
        %v2393 = vpop.f32.mrb[0].mxu0
        %2394 = vmatprep.mubr.f32.mxu0 %v1898
        %2395 = vmatmul.mubr.f32.gmra.mrb[0].mxu0 %v1897
        %v2396 = vpop.f32.mrb[0].mxu0
        %v2397 = vadd.f32 %v2172, %v2396
        %v2398 = vpop.f32.mrb[0].mxu0
        %2399 = vmatprep.mubr.f32.mxu0 %v1902
        %2400 = vmatmul.mubr.f32.gmra.mrb[0].mxu0 %v1901
        %v2401 = vpop.f32.mrb[0].mxu0
        %v2402 = vadd.f32 %v2177, %v2401
        %v2403 = vpop.f32.mrb[0].mxu0
        %2404 = vmatprep.mubr.f32.mxu0 %v1906
        %2405 = vmatmul.mubr.f32.gmra.mrb[0].mxu0 %v1905
        %v2406 = vpop.f32.mrb[0].mxu0
        %v2407 = vadd.f32 %v2182, %v2406
        %v2408 = vpop.f32.mrb[0].mxu0
        %2409 = vmatprep.mubr.f32.mxu0 %v1910
        %2410 = vmatmul.mubr.f32.gmra.mrb[0].mxu0 %v1909
        %v2411 = vpop.f32.mrb[0].mxu0
        %v2412 = vadd.f32 %v2187, %v2411
        %v2413 = vpop.f32.mrb[0].mxu0
        %2414 = vmatprep.mubr.f32.mxu0 %v1914
        %2415 = vmatmul.mubr.f32.gmra.mrb[0].mxu0 %v1913
        %v2416 = vpop.f32.mrb[0].mxu0
        %v2417 = vadd.f32 %v2192, %v2416
        %v2418 = vpop.f32.mrb[0].mxu0
        %2419 = vmatprep.mubr.f32.mxu0 %v1918
        %2420 = vmatmul.mubr.f32.gmra.mrb[0].mxu0 %v1917
        %v2421 = vpop.f32.mrb[0].mxu0
        %v2422 = vadd.f32 %v2197, %v2421
        %v2423 = vpop.f32.mrb[0].mxu0
        %2424 = vmatprep.mubr.f32.mxu0 %v1922
        %2425 = vmatmul.mubr.f32.gmra.mrb[0].mxu0 %v1921
        %v2426 = vpop.f32.mrb[0].mxu0
        %v2427 = vadd.f32 %v2202, %v2426
        %v2428 = vpop.f32.mrb[0].mxu0
        %2429 = vmatprep.mubr.f32.mxu0 %v1926
        %2430 = vmatmul.mubr.f32.gmra.mrb[0].mxu0 %v1925
        %v2431 = vpop.f32.mrb[0].mxu0
        %v2432 = vadd.f32 %v2207, %v2431
        %v2433 = vpop.f32.mrb[0].mxu0
        %2434 = vmatprep.mubr.f32.mxu0 %v1930
        %2435 = vmatmul.mubr.f32.gmra.mrb[0].mxu0 %v1929
        %v2436 = vpop.f32.mrb[0].mxu0
        %v2437 = vadd.f32 %v2212, %v2436
        %v2438 = vpop.f32.mrb[0].mxu0
        %2439 = vmatprep.mubr.f32.mxu0 %v1934
        %2440 = vmatmul.mubr.f32.gmra.mrb[0].mxu0 %v1933
        %v2441 = vpop.f32.mrb[0].mxu0
        %v2442 = vadd.f32 %v2217, %v2441
        %v2443 = vpop.f32.mrb[0].mxu0
        %2444 = vmatprep.mubr.f32.mxu0 %v1938
        %2445 = vmatmul.mubr.f32.gmra.mrb[0].mxu0 %v1937
        %v2446 = vpop.f32.mrb[0].mxu0
        %v2447 = vadd.f32 %v2222, %v2446
        %v2448 = vpop.f32.mrb[0].mxu0
        %2449 = vmatprep.mubr.f32.mxu0 %v1942
        %2450 = vmatmul.mubr.f32.gmra.mrb[0].mxu0 %v1941
        %v2451 = vpop.f32.mrb[0].mxu0
        %v2452 = vadd.f32 %v2227, %v2451
        %v2453 = vpop.f32.mrb[0].mxu0
        %2454 = vmatprep.mubr.f32.mxu0 %v1946
        %2455 = vmatmul.mubr.f32.gmra.mrb[0].mxu0 %v1945
        %v2456 = vpop.f32.mrb[0].mxu0
        %v2457 = vadd.f32 %v2232, %v2456
        %v2458 = vpop.f32.mrb[0].mxu0
        %2459 = vmatprep.mubr.f32.mxu0 %v1950
        %2460 = vmatmul.mubr.f32.gmra.mrb[0].mxu0 %v1949
        %v2461 = vpop.f32.mrb[0].mxu0
        %v2462 = vadd.f32 %v2237, %v2461
        %v2463 = vpop.f32.mrb[0].mxu0
        %2464 = vmatprep.mubr.f32.mxu0 %v1954
        %2465 = vmatmul.mubr.f32.gmra.mrb[0].mxu0 %v1953
        %v2466 = vpop.f32.mrb[0].mxu0
        %v2467 = vadd.f32 %v2242, %v2466
        %v2468 = vpop.f32.mrb[0].mxu0
        %2469 = vmatprep.mubr.f32.mxu0 %v1958
        %2470 = vmatmul.mubr.f32.gmra.mrb[0].mxu0 %v1957
        %v2471 = vpop.f32.mrb[0].mxu0
        %v2472 = vadd.f32 %v2247, %v2471
        %v2473 = vpop.f32.mrb[0].mxu0
        %2474 = vmatprep.mubr.f32.mxu0 %v1962
        %2475 = vmatmul.mubr.f32.gmra.mrb[0].mxu0 %v1961
        %v2476 = vpop.f32.mrb[0].mxu0
        %v2477 = vadd.f32 %v2252, %v2476
        %v2478 = vpop.f32.mrb[0].mxu0
        %2479 = vmatprep.mubr.f32.mxu0 %v1966
        %2480 = vmatmul.mubr.f32.gmra.mrb[0].mxu0 %v1965
        %v2481 = vpop.f32.mrb[0].mxu0
        %v2482 = vadd.f32 %v2257, %v2481
        %v2483 = vpop.f32.mrb[0].mxu0
        %2484 = vmatprep.mubr.f32.mxu0 %v1970
        %2485 = vmatmul.mubr.f32.gmra.mrb[0].mxu0 %v1969
        %v2486 = vpop.f32.mrb[0].mxu0
        %v2487 = vadd.f32 %v2262, %v2486
        %v2488 = vpop.f32.mrb[0].mxu0
        %2489 = vmatprep.mubr.f32.mxu0 %v1974
        %2490 = vmatmul.mubr.f32.gmra.mrb[0].mxu0 %v1973
        %v2491 = vpop.f32.mrb[0].mxu0
        %v2492 = vadd.f32 %v2267, %v2491
        %v2493 = vpop.f32.mrb[0].mxu0
        %2494 = vmatprep.mubr.f32.mxu0 %v1978
        %2495 = vmatmul.mubr.f32.gmra.mrb[0].mxu0 %v1977
        %v2496 = vpop.f32.mrb[0].mxu0
        %v2497 = vadd.f32 %v2272, %v2496
        %v2498 = vpop.f32.mrb[0].mxu0
        %2499 = vdwg.mxu0
        %2500 = vst [vmem:[%s532] sm:$0xff] %v1044
        %2501 = vst [vmem:[%s532 + $0x8] sm:$0xff] %v1049
        %2502 = vst [vmem:[%s532 + $0x10] sm:$0xff] %v1054
        %2503 = vst [vmem:[%s532 + $0x18] sm:$0xff] %v1059
        %2504 = vst [vmem:[%s532 + $0x20] sm:$0xff] %v1064
        %2505 = vst [vmem:[%s532 + $0x28] sm:$0xff] %v1069
        %2506 = vst [vmem:[%s532 + $0x30] sm:$0xff] %v1074
        %2507 = vst [vmem:[%s532 + $0x38] sm:$0xff] %v1079
        %2508 = vst [vmem:[%s532 + $0x40] sm:$0xff] %v1084
        %2509 = vst [vmem:[%s532 + $0x48] sm:$0xff] %v1089
        %2510 = vst [vmem:[%s532 + $0x50] sm:$0xff] %v1094
        %2511 = vst [vmem:[%s532 + $0x58] sm:$0xff] %v1099
        %2512 = vst [vmem:[%s532 + $0x60] sm:$0xff] %v1104
        %2513 = vst [vmem:[%s532 + $0x68] sm:$0xff] %v1109
        %2514 = vst [vmem:[%s532 + $0x70] sm:$0xff] %v1114
        %2515 = vst [vmem:[%s532 + $0x78] sm:$0xff] %v1119
        %2516 = vst [vmem:[%s532 + $0x80] sm:$0xff] %v1124
        %2517 = vst [vmem:[%s532 + $0x88] sm:$0xff] %v1129
        %2518 = vst [vmem:[%s532 + $0x90] sm:$0xff] %v1134
        %2519 = vst [vmem:[%s532 + $0x98] sm:$0xff] %v1139
        %2520 = vst [vmem:[%s532 + $0xa0] sm:$0xff] %v1144
        %2521 = vst [vmem:[%s532 + $0xa8] sm:$0xff] %v1149
        %2522 = vst [vmem:[%s532 + $0xb0] sm:$0xff] %v1154
        %2523 = vst [vmem:[%s532 + $0xb8] sm:$0xff] %v1159
        %2524 = vst [vmem:[%s532 + $0xc0] sm:$0xff] %v1164
        %2525 = vst [vmem:[%s532 + $0xc8] sm:$0xff] %v1169
        %2526 = vst [vmem:[%s532 + $0xd0] sm:$0xff] %v1174
        %2527 = vst [vmem:[%s532 + $0xd8] sm:$0xff] %v1179
        %2528 = vst [vmem:[%s532 + $0xe0] sm:$0xff] %v1184
        %2529 = vst [vmem:[%s532 + $0xe8] sm:$0xff] %v1189
        %2530 = vst [vmem:[%s532 + $0xf0] sm:$0xff] %v1194
        %2531 = vst [vmem:[%s532 + $0xf8] sm:$0xff] %v1199
        %2532 = vst [vmem:[%s539] sm:$0xff] %v1693
        %2533 = vst [vmem:[%s539 + $0x8] sm:$0xff] %v1698
        %2534 = vst [vmem:[%s539 + $0x10] sm:$0xff] %v1703
        %2535 = vst [vmem:[%s539 + $0x18] sm:$0xff] %v1708
        %2536 = vst [vmem:[%s539 + $0x20] sm:$0xff] %v1713
        %2537 = vst [vmem:[%s539 + $0x28] sm:$0xff] %v1718
        %2538 = vst [vmem:[%s539 + $0x30] sm:$0xff] %v1723
        %2539 = vst [vmem:[%s539 + $0x38] sm:$0xff] %v1728
        %2540 = vst [vmem:[%s539 + $0x40] sm:$0xff] %v1733
        %2541 = vst [vmem:[%s539 + $0x48] sm:$0xff] %v1738
        %2542 = vst [vmem:[%s539 + $0x50] sm:$0xff] %v1743
        %2543 = vst [vmem:[%s539 + $0x58] sm:$0xff] %v1748
        %2544 = vst [vmem:[%s539 + $0x60] sm:$0xff] %v1753
        %2545 = vst [vmem:[%s539 + $0x68] sm:$0xff] %v1758
        %2546 = vst [vmem:[%s539 + $0x70] sm:$0xff] %v1763
        %2547 = vst [vmem:[%s539 + $0x78] sm:$0xff] %v1768
        %2548 = vst [vmem:[%s539 + $0x80] sm:$0xff] %v1773
        %2549 = vst [vmem:[%s539 + $0x88] sm:$0xff] %v1778
        %2550 = vst [vmem:[%s539 + $0x90] sm:$0xff] %v1783
        %2551 = vst [vmem:[%s539 + $0x98] sm:$0xff] %v1788
        %2552 = vst [vmem:[%s539 + $0xa0] sm:$0xff] %v1793
        %2553 = vst [vmem:[%s539 + $0xa8] sm:$0xff] %v1798
        %2554 = vst [vmem:[%s539 + $0xb0] sm:$0xff] %v1803
        %2555 = vst [vmem:[%s539 + $0xb8] sm:$0xff] %v1808
        %2556 = vst [vmem:[%s539 + $0xc0] sm:$0xff] %v1813
        %2557 = vst [vmem:[%s539 + $0xc8] sm:$0xff] %v1818
        %2558 = vst [vmem:[%s539 + $0xd0] sm:$0xff] %v1823
        %2559 = vst [vmem:[%s539 + $0xd8] sm:$0xff] %v1828
        %2560 = vst [vmem:[%s539 + $0xe0] sm:$0xff] %v1833
        %2561 = vst [vmem:[%s539 + $0xe8] sm:$0xff] %v1838
        %2562 = vst [vmem:[%s539 + $0xf0] sm:$0xff] %v1843
        %2563 = vst [vmem:[%s539 + $0xf8] sm:$0xff] %v1848
        %2564 = vst [vmem:[%s546] sm:$0xff] %v2342
        %2565 = vst [vmem:[%s546 + $0x8] sm:$0xff] %v2347
        %2566 = vst [vmem:[%s546 + $0x10] sm:$0xff] %v2352
        %2567 = vst [vmem:[%s546 + $0x18] sm:$0xff] %v2357
        %2568 = vst [vmem:[%s546 + $0x20] sm:$0xff] %v2362
        %2569 = vst [vmem:[%s546 + $0x28] sm:$0xff] %v2367
        %2570 = vst [vmem:[%s546 + $0x30] sm:$0xff] %v2372
        %2571 = vst [vmem:[%s546 + $0x38] sm:$0xff] %v2377
        %2572 = vst [vmem:[%s546 + $0x40] sm:$0xff] %v2382
        %2573 = vst [vmem:[%s546 + $0x48] sm:$0xff] %v2387
        %2574 = vst [vmem:[%s546 + $0x50] sm:$0xff] %v2392
        %2575 = vst [vmem:[%s546 + $0x58] sm:$0xff] %v2397
        %2576 = vst [vmem:[%s546 + $0x60] sm:$0xff] %v2402
        %2577 = vst [vmem:[%s546 + $0x68] sm:$0xff] %v2407
        %2578 = vst [vmem:[%s546 + $0x70] sm:$0xff] %v2412
        %2579 = vst [vmem:[%s546 + $0x78] sm:$0xff] %v2417
        %2580 = vst [vmem:[%s546 + $0x80] sm:$0xff] %v2422
        %2581 = vst [vmem:[%s546 + $0x88] sm:$0xff] %v2427
        %2582 = vst [vmem:[%s546 + $0x90] sm:$0xff] %v2432
        %2583 = vst [vmem:[%s546 + $0x98] sm:$0xff] %v2437
        %2584 = vst [vmem:[%s546 + $0xa0] sm:$0xff] %v2442
        %2585 = vst [vmem:[%s546 + $0xa8] sm:$0xff] %v2447
        %2586 = vst [vmem:[%s546 + $0xb0] sm:$0xff] %v2452
        %2587 = vst [vmem:[%s546 + $0xb8] sm:$0xff] %v2457
        %2588 = vst [vmem:[%s546 + $0xc0] sm:$0xff] %v2462
        %2589 = vst [vmem:[%s546 + $0xc8] sm:$0xff] %v2467
        %2590 = vst [vmem:[%s546 + $0xd0] sm:$0xff] %v2472
        %2591 = vst [vmem:[%s546 + $0xd8] sm:$0xff] %v2477
        %2592 = vst [vmem:[%s546 + $0xe0] sm:$0xff] %v2482
        %2593 = vst [vmem:[%s546 + $0xe8] sm:$0xff] %v2487
        %2594 = vst [vmem:[%s546 + $0xf0] sm:$0xff] %v2492
        %2595 = vst [vmem:[%s546 + $0xf8] sm:$0xff] %v2497
        %s2596 = sand.u32 %s249, 1
        %s2597 = scalar_lea.sflag [#allocation4], %s2596
        %s2598 = sand.u32 %s249, 1
        %s2599 = smul.addr %s2598, 256
        %s2600 = scalar_lea.vmem [#allocation13], %s2599
        %s2601 = sand.u32 %s37, 1
        %s2602 = scalar_lea.sflag [#allocation15], %s2601
        %s2603 = sand.u32 %s275, 1
        %s2604 = smul.addr %s2603, 256
        %s2605 = scalar_lea.vmem [#allocation14], %s2604
        %s2606 = sand.u32 %s37, 1
        %s2607 = scalar_lea.sflag [#allocation15], %s2606
        %s2608 = sand.u32 %s301, 1
        %s2609 = smul.addr %s2608, 256
        %s2610 = scalar_lea.vmem [#allocation16], %s2609
        // Predicated region
        $region81: #{tpu_custom_call.1} parent=55 // pred_check
          %p2611 = pneg %p259
        $region82: #{tpu_custom_call.1} parent=55 // pred_check_branch
          %2613 = sbr.rel (%p2611) target = $region84
        $region83: #{tpu_custom_call.1} parent=55 // pred_region
          %s2614 = smul.u32 32, %s37
          %s2616 = ssub.s32 4096, 4096
          %2617 = vsyncadd %s2597, %s2616
          %s2618 = smul.addr %s2614, 128
          %s2619 = scalar_lea.hbm %s9, %s2618
          %s2620 = sshll.u32 %s2600, 4
          %s2621 = int_to_ptr.vmem [resolvable:$true] %s2620
          %2626 = dma.vmem_to_hbm [thread:$0]  %s2621, 4096, %s2619, %s2597, 128, 128, 8
        $region84: #{tpu_custom_call.1} parent=55 // pred_fallthru
          _
        // Predicated region
        $region85: #{tpu_custom_call.1} parent=55 // pred_check
          %p2627 = pneg %p285
        $region86: #{tpu_custom_call.1} parent=55 // pred_check_branch
          %2629 = sbr.rel (%p2627) target = $region88
        $region87: #{tpu_custom_call.1} parent=55 // pred_region
          %s2630 = smul.u32 32, %s37
          %s2632 = ssub.s32 4096, 4096
          %2633 = vsyncadd %s2602, %s2632
          %s2634 = smul.addr %s2630, 128
          %s2635 = scalar_lea.hbm %s10, %s2634
          %s2636 = sshll.u32 %s2605, 4
          %s2637 = int_to_ptr.vmem [resolvable:$true] %s2636
          %2642 = dma.vmem_to_hbm [thread:$0]  %s2637, 4096, %s2635, %s2602, 128, 128, 8
        $region88: #{tpu_custom_call.1} parent=55 // pred_fallthru
          _
        // Predicated region
        $region89: #{tpu_custom_call.1} parent=55 // pred_check
          %p2643 = pneg %p311
        $region90: #{tpu_custom_call.1} parent=55 // pred_check_branch
          %2645 = sbr.rel (%p2643) target = $region92
        $region91: #{tpu_custom_call.1} parent=55 // pred_region
          %s2646 = smul.u32 32, %s37
          %s2648 = ssub.s32 4096, 4096
          %2649 = vsyncadd %s2607, %s2648
          %s2650 = smul.addr %s2646, 128
          %s2651 = scalar_lea.hbm %s11, %s2650
          %s2652 = sshll.u32 %s2610, 4
          %s2653 = int_to_ptr.vmem [resolvable:$true] %s2652
          %2658 = dma.vmem_to_hbm [thread:$0]  %s2653, 4096, %s2651, %s2607, 128, 128, 8
        $region92: #{tpu_custom_call.1} parent=55 // pred_fallthru
          _
      $region56: #{tpu_custom_call.1} parent=5 // pred_fallthru
        _
      %p2659 = scmp.le.s32.totalorder 2, %s32
      // Predicated region
      $region93: #{tpu_custom_call.1} parent=5 // pred_check
        %p2660 = pneg %p2659
      $region94: #{tpu_custom_call.1} parent=5 // pred_check_branch
        %2662 = sbr.rel (%p2660) target = $region96
      $region95: #{tpu_custom_call.1} parent=5 // pred_region
        %s2663 = ssub.s32 %s32, 2
        // Predicated region
        $region97: #{tpu_custom_call.1} parent=95 // pred_check
          %p2664 = pneg %p265
        $region98: #{tpu_custom_call.1} parent=95 // pred_check_branch
          %2666 = sbr.rel (%p2664) target = $region100
        $region99: #{tpu_custom_call.1} parent=95 // pred_region
          %s2667 = sand.u32 %s250, 1
          %s2668 = scalar_lea.sflag [#allocation4], %s2667
          %s2669 = sand.u32 %s250, 1
          %s2670 = smul.addr %s2669, 256
          %s2671 = scalar_lea.vmem [#allocation13], %s2670
          %2672 = dma.done %s2668, 4096
        $region100: #{tpu_custom_call.1} parent=95 // pred_fallthru
          _
        // Predicated region
        $region101: #{tpu_custom_call.1} parent=95 // pred_check
          %p2673 = pneg %p291
        $region102: #{tpu_custom_call.1} parent=95 // pred_check_branch
          %2675 = sbr.rel (%p2673) target = $region104
        $region103: #{tpu_custom_call.1} parent=95 // pred_region
          %s2676 = sand.u32 %s38, 1
          %s2677 = scalar_lea.sflag [#allocation15], %s2676
          %s2678 = sand.u32 %s276, 1
          %s2679 = smul.addr %s2678, 256
          %s2680 = scalar_lea.vmem [#allocation14], %s2679
          %2681 = dma.done %s2677, 4096
        $region104: #{tpu_custom_call.1} parent=95 // pred_fallthru
          _
        // Predicated region
        $region105: #{tpu_custom_call.1} parent=95 // pred_check
          %p2682 = pneg %p317
        $region106: #{tpu_custom_call.1} parent=95 // pred_check_branch
          %2684 = sbr.rel (%p2682) target = $region108
        $region107: #{tpu_custom_call.1} parent=95 // pred_region
          %s2685 = sand.u32 %s38, 1
          %s2686 = scalar_lea.sflag [#allocation15], %s2685
          %s2687 = sand.u32 %s302, 1
          %s2688 = smul.addr %s2687, 256
          %s2689 = scalar_lea.vmem [#allocation16], %s2688
          %2690 = dma.done %s2686, 4096
        $region108: #{tpu_custom_call.1} parent=95 // pred_fallthru
          _
      $region96: #{tpu_custom_call.1} parent=5 // pred_fallthru
        _
    $region6: #{tpu_custom_call.1} parent=1 // loop_footer
      %s36 = sadd.s32 1, %s32
    $region7: #{tpu_custom_call.1} parent=1 // loop_footer_branch
      %31 = sbr.rel target = $region3
    $region8: #{tpu_custom_call.1} parent=1 // loop_exit
      _
    %2691 = vsyncpa [#allocation3], 1
    %s2692 = scalar_lea.sflag [#allocation3], 1
    %2693 = vsyncpa %s2692, 1
    %2694 = vsyncpa [#allocation6], 1
    %s2695 = scalar_lea.sflag [#allocation6], 1
    %2696 = vsyncpa %s2695, 1
    %2697 = vsyncpa [#allocation9], 1
    %2698 = vsyncpa [#allocation12], 1
    %2699 = vsyncpa [#allocation4], 1
    %s2700 = scalar_lea.sflag [#allocation4], 1
    %2701 = vsyncpa %s2700, 1
    %2702 = vsyncpa [#allocation15], 1
    %s2703 = scalar_lea.sflag [#allocation15], 1
    %2704 = vsyncpa %s2703, 1

</llo_original>
